<compile_context>
chip_gen: v7x
topology: tpu7x:2x2x1
jax: 0.10.0
libtpu: 0.0.40
codegen_flags: <defaults>
</compile_context>

<pallas_src>
import functools
import jax
import jax.numpy as jnp
from jax import lax
from jax.experimental import pallas as pl
from jax.experimental.pallas import tpu as pltpu


# ----------------------------------------------------------------------------
# helpers (pure jnp, used inside the kernel; f32 math)
# ----------------------------------------------------------------------------
def _layer_norm(v, g, b, eps=1e-5):
    mu = jnp.mean(v, axis=-1, keepdims=True)
    var = jnp.mean((v - mu) * (v - mu), axis=-1, keepdims=True)
    return (v - mu) * lax.rsqrt(var + eps) * g + b


def _gelu_tanh(x):
    c = 0.7978845608028654  # sqrt(2/pi)
    return 0.5 * x * (1.0 + jnp.tanh(c * (x + 0.044715 * x * x * x)))


# ----------------------------------------------------------------------------
# Kernel: grid = (batch tiles, depth).  One encoder layer per grid step.
#   d == 0        : patch-embed matmul + (cls | conv-bias) + pos -> x scratch
#   every step    : encoder layer d on the VMEM-resident activation
#   d == depth-1  : final LayerNorm + cls head -> output
# ----------------------------------------------------------------------------
def _vit_super_layer_kernel(
        tokens_ref,                        # (R, CPP)  f32   (R = bt*T_pad)
        conv_w_ref,                        # (CPP, E)  bf16
        add_ref,                           # (R, E)    f32   cls/pos/conv_b slab
        mask_ref,                          # (R, R)    f32   0 / -1e30 bias
        ln1_g_ref, ln1_b_ref,              # (1, 1, E) f32
        qkv1_ref,                          # (1, E, Ra) bf16
        wq_ref, wk_ref, wv_ref,            # (1, H, Ra, hd) bf16
        proj_w_ref,                        # (1, H, hd, E)  bf16
        proj_b_ref,                        # (1, 1, E)  f32
        ln2_g_ref, ln2_b_ref,              # (1, 1, E)  f32
        fc11_ref, fc13_ref, fc13_b_ref,    # (1,E,Rm) bf16, (1,Rm,F) bf16, (1,1,F) f32
        fc21_ref, fc23_ref, fc23_b_ref,    # (1,F,Rm) bf16, (1,Rm,E) bf16, (1,1,E) f32
        norm_g_ref, norm_b_ref,            # (1, E)    f32
        head_w_ref, head_b_ref,            # (E, Cp) bf16, (1, Cp) f32
        o_ref,                             # (1, bt, Cp) f32
        x_ref,                             # VMEM scratch (R, E) f32 (persistent)
        *, depth, num_heads, bt, t_pad, scale):
    f32 = jnp.float32
    bf16 = jnp.bfloat16
    d = pl.program_id(1)

    # ------------- build the token sequence once per batch tile --------------
    @pl.when(d == 0)
    def _():
        pe = jnp.dot(tokens_ref[...].astype(bf16), conv_w_ref[...],
                     preferred_element_type=f32)              # (R, E)
        # add slab = (cls+pos[0]) on cls rows, (conv_b+pos[i]) on patch rows,
        #            0 on pad rows (pad rows are masked in attention).
        x_ref[...] = pe + add_ref[...]

    # ------------------------- encoder layer d -------------------------------
    x = x_ref[...]                                            # (R, E) f32
    mask = mask_ref[...]                                      # (R, R) f32

    # ---- self-attention (pre-norm, low-rank factored qkv, block-diagonal) ---
    xn = _layer_norm(x, ln1_g_ref[0], ln1_b_ref[0])
    r = jnp.dot(xn.astype(bf16), qkv1_ref[0],
                preferred_element_type=f32)                   # (R, Ra)
    r_b = r.astype(bf16)
    attn = None
    for h in range(num_heads):
        qh = jnp.dot(r_b, wq_ref[0, h], preferred_element_type=f32)   # (R, hd)
        kh = jnp.dot(r_b, wk_ref[0, h], preferred_element_type=f32)
        vh = jnp.dot(r_b, wv_ref[0, h], preferred_element_type=f32)
        s = lax.dot_general(qh.astype(bf16), kh.astype(bf16),
                            (((1,), (1,)), ((), ())),
                            preferred_element_type=f32)                # (R, R)
        s = s * scale + mask
        s = s - jnp.max(s, axis=-1, keepdims=True)
        p = jnp.exp(s)
        p = p * pl.reciprocal(jnp.sum(p, axis=-1, keepdims=True), approx=True)
        ctx = jnp.dot(p.astype(bf16), vh.astype(bf16),
                      preferred_element_type=f32)                      # (R, hd)
        # concat(heads) @ W_proj == sum_h head_h @ W_proj[h rows]
        part = jnp.dot(ctx.astype(bf16), proj_w_ref[0, h],
                       preferred_element_type=f32)                     # (R, E)
        attn = part if attn is None else attn + part
    x = x + attn + proj_b_ref[0]

    # ---- feed-forward (pre-norm, low-rank factored MLP) ---------------------
    xn = _layer_norm(x, ln2_g_ref[0], ln2_b_ref[0])
    h1 = jnp.dot(xn.astype(bf16), fc11_ref[0], preferred_element_type=f32)
    h2 = jnp.dot(h1.astype(bf16), fc13_ref[0],
                 preferred_element_type=f32) + fc13_b_ref[0]
    h2 = _gelu_tanh(h2)
    h3 = jnp.dot(h2.astype(bf16), fc21_ref[0], preferred_element_type=f32)
    h4 = jnp.dot(h3.astype(bf16), fc23_ref[0],
                 preferred_element_type=f32) + fc23_b_ref[0]
    x = x + h4
    x_ref[...] = x

    # ------------- final LayerNorm + cls-token head (last layer) -------------
    @pl.when(d == depth - 1)
    def _():
        cls_x = x.reshape(bt, t_pad, -1)[:, 0, :]             # (bt, E)
        cls_x = _layer_norm(cls_x, norm_g_ref[...], norm_b_ref[...])
        logits = jnp.dot(cls_x.astype(bf16), head_w_ref[...],
                         preferred_element_type=f32) + head_b_ref[...]
        o_ref[...] = logits[None].astype(o_ref.dtype)


# ----------------------------------------------------------------------------
# Wrapper
# ----------------------------------------------------------------------------
def vision_transformer_super_forward(x_nchw, params, *, patch_size, num_heads,
                                     embed_dim, num_classes):
    f32, bf16 = jnp.float32, jnp.bfloat16
    B, C, H, W = x_nchw.shape
    P = patch_size
    nH, nW = H // P, W // P
    N = nH * nW
    E = embed_dim
    T = N + 1
    t_pad = ((T + 7) // 8) * 8            # sublane-aligned tokens per image
    CPP = C * P * P
    head_dim = E // num_heads
    depth = params["qkv1_w"].shape[0]

    # ---- batch tiling: largest divisor of B with <= 512 rows per tile -------
    bt = 1
    for cand in range(1, B + 1):
        if B % cand == 0 and cand * t_pad <= 512:
            bt = cand
    nb = B // bt
    R = bt * t_pad                        # rows per grid step

    # ---- patch extraction: conv(stride=P, kernel=P) == per-patch flatten ----
    patches = (x_nchw.reshape(B, C, nH, P, nW, P)
               .transpose(0, 2, 4, 1, 3, 5)
               .reshape(B, N, CPP))
    tokens = jnp.zeros((B, t_pad, CPP), f32).at[:, 1:N + 1, :].set(patches)
    tokens = tokens.reshape(B * t_pad, CPP)                   # (B*T_pad, CPP)

    # ---- fold conv bias + cls token + abs pos embed into one additive slab --
    conv_b = params["conv_b"].reshape(1, E).astype(f32)
    cls_tok = params["cls_token"].reshape(1, E).astype(f32)
    pos = params["pos_embed"].reshape(T, E).astype(f32)
    add_img = jnp.zeros((t_pad, E), f32)
    add_img = add_img.at[0, :].set(cls_tok[0] + pos[0])
    add_img = add_img.at[1:N + 1, :].set(conv_b + pos[1:])
    add_full = jnp.tile(add_img, (bt, 1))                     # (R, E)

    # ---- block-diagonal attention bias: mask pad keys + cross-image keys ----
    idx = jnp.arange(R)
    seg = idx // t_pad
    key_valid = (idx % t_pad) < T
    ok = (seg[:, None] == seg[None, :]) & key_valid[None, :]
    mask = jnp.where(ok, 0.0, -1e30).astype(f32)              # (R, R)

    # ---- weights: bf16 matmul operands, f32 biases / LN, per-head layout ----
    conv_w = params["conv_w"].reshape(E, CPP).T.astype(bf16)  # (CPP, E)
    qkv1 = params["qkv1_w"].astype(bf16)                      # (D, E, Ra)
    qkv3 = params["qkv3_w"]                                   # (D, Ra, 3E)
    Ra = qkv3.shape[1]

    def split_heads(w):                                       # (D, Ra, E) -> (D, H, Ra, hd)
        return (w.reshape(depth, Ra, num_heads, head_dim)
                 .transpose(0, 2, 1, 3).astype(bf16))

    wq = split_heads(qkv3[:, :, 0:E])
    wk = split_heads(qkv3[:, :, E:2 * E])
    wv = split_heads(qkv3[:, :, 2 * E:3 * E])
    proj_w = params["proj_w"].reshape(depth, num_heads, head_dim, E).astype(bf16)
    proj_b = params["proj_b"].astype(f32)
    ln1_g = params["ln1_g"].astype(f32); ln1_b = params["ln1_b"].astype(f32)
    ln2_g = params["ln2_g"].astype(f32); ln2_b = params["ln2_b"].astype(f32)
    fc11 = params["fc11_w"].astype(bf16)
    fc13 = params["fc13_w"].astype(bf16); fc13_b = params["fc13_b"].astype(f32)
    fc21 = params["fc21_w"].astype(bf16)
    fc23 = params["fc23_w"].astype(bf16); fc23_b = params["fc23_b"].astype(f32)
    norm_g = params["norm_g"].reshape(1, E).astype(f32)
    norm_b = params["norm_b"].reshape(1, E).astype(f32)

    # lane-dense classifier output: pad classes up to a multiple of 128
    C_pad = ((num_classes + 127) // 128) * 128
    head_w = jnp.pad(params["head_w"],
                     ((0, 0), (0, C_pad - num_classes))).astype(bf16)
    head_b = jnp.pad(params["head_b"],
                     ((0, 0), (0, C_pad - num_classes))).astype(f32)

    consts_pre = [conv_w, add_full, mask]
    per_layer = [ln1_g, ln1_b, qkv1, wq, wk, wv, proj_w, proj_b,
                 ln2_g, ln2_b, fc11, fc13, fc13_b, fc21, fc23, fc23_b]
    consts_post = [norm_g, norm_b, head_w, head_b]

    def const_spec(a):
        nd = a.ndim
        return pl.BlockSpec(a.shape, lambda i, d, _nd=nd: (0,) * _nd)

    def layer_spec(a):
        nd = a.ndim
        return pl.BlockSpec((1,) + a.shape[1:],
                            lambda i, d, _nd=nd: (d,) + (0,) * (_nd - 1))

    in_specs = ([pl.BlockSpec((R, CPP), lambda i, d: (i, 0))]
                + [const_spec(a) for a in consts_pre]
                + [layer_spec(a) for a in per_layer]
                + [const_spec(a) for a in consts_post])
    out_specs = pl.BlockSpec((1, bt, C_pad), lambda i, d: (i, 0, 0))

    # ---- VMEM budget (double-buffered streamed layer + constants + scratch) -
    def nbytes(a):
        return int(a.size) * a.dtype.itemsize

    per_layer_block = sum(nbytes(a) // depth for a in per_layer)
    const_bytes = sum(nbytes(a) for a in consts_pre + consts_post)
    need = (2 * per_layer_block + 2 * const_bytes
            + 2 * (nbytes(tokens) // nb) + 2 * bt * C_pad * 4 + R * E * 4)
    vmem_limit = int(min(max(2 * need + (4 << 20), 32 << 20), 96 << 20))

    # ---- advisory cost estimate ---------------------------------------------
    Rm = int(fc11.shape[2]); Fdim = int(fc13.shape[2])
    flops_layer = 2 * R * (E * Ra + 3 * Ra * E + 2 * R * E + E * E
                           + E * Rm + Rm * Fdim + Fdim * Rm + Rm * E)
    flops = nb * depth * flops_layer + 2 * B * t_pad * CPP * E + 2 * B * E * C_pad
    transcend = nb * depth * (num_heads * R * R + R * Fdim)
    bytes_acc = (nbytes(tokens) + const_bytes
                 + sum(nbytes(a) for a in per_layer) + B * C_pad * 4)
    cost = pl.CostEstimate(flops=int(flops), transcendentals=int(transcend),
                           bytes_accessed=int(bytes_acc))

    kernel = functools.partial(
        _vit_super_layer_kernel, depth=depth, num_heads=num_heads,
        bt=bt, t_pad=t_pad, scale=float(head_dim) ** -0.5)

    out = pl.pallas_call(
        kernel,
        grid=(nb, depth),
        in_specs=in_specs,
        out_specs=out_specs,
        out_shape=jax.ShapeDtypeStruct((nb, bt, C_pad), jnp.float32),
        scratch_shapes=[pltpu.VMEM((R, E), jnp.float32)],   # persistent activation
        compiler_params=pltpu.CompilerParams(
            dimension_semantics=("parallel", "arbitrary"),
            vmem_limit_bytes=vmem_limit),
        cost_estimate=cost,
    )(tokens, *consts_pre, *per_layer, *consts_post)

    return out.reshape(B, C_pad)[:, :num_classes]


# ----------------------------------------------------------------------------
# Parameter construction (deterministic, synthetic, depth-stacked)
# ----------------------------------------------------------------------------
def build_params(key, *, in_chans, patch_size, num_patches, embed_dim, depth,
                 num_heads, mlp_ratio, rank_ratio_attn, rank_ratio_mlp,
                 num_classes):
    E = embed_dim
    Ra = int(E * rank_ratio_attn)
    F = int(E * mlp_ratio)
    Rm = int(E * rank_ratio_mlp)
    CPP = in_chans * patch_size * patch_size

    def tn(key, shape, std=0.02):
        return (std * jax.random.normal(key, shape)).astype(jnp.float32)

    keys = jax.random.split(key, 8 + depth)
    params = {
        "conv_w": tn(keys[0], (E, in_chans, patch_size, patch_size),
                     1.0 / (CPP ** 0.5)),
        "conv_b": jnp.zeros((E,), jnp.float32),
        "cls_token": tn(keys[1], (1, 1, E)),
        "pos_embed": tn(keys[2], (1, num_patches + 1, E)),
        "norm_g": jnp.ones((1, E), jnp.float32),
        "norm_b": jnp.zeros((1, E), jnp.float32),
        "head_w": tn(keys[3], (E, num_classes)),
        "head_b": jnp.zeros((1, num_classes), jnp.float32),
    }

    per_layer = {"ln1_g": [], "ln1_b": [], "qkv1_w": [], "qkv3_w": [],
                 "proj_w": [], "proj_b": [], "ln2_g": [], "ln2_b": [],
                 "fc11_w": [], "fc13_w": [], "fc13_b": [],
                 "fc21_w": [], "fc23_w": [], "fc23_b": []}
    for i in range(depth):
        lk = jax.random.split(keys[8 + i], 8)
        per_layer["ln1_g"].append(jnp.ones((1, E), jnp.float32))
        per_layer["ln1_b"].append(jnp.zeros((1, E), jnp.float32))
        per_layer["qkv1_w"].append(tn(lk[0], (E, Ra)))
        per_layer["qkv3_w"].append(tn(lk[1], (Ra, 3 * E)))
        per_layer["proj_w"].append(tn(lk[2], (E, E)))
        per_layer["proj_b"].append(jnp.zeros((1, E), jnp.float32))
        per_layer["ln2_g"].append(jnp.ones((1, E), jnp.float32))
        per_layer["ln2_b"].append(jnp.zeros((1, E), jnp.float32))
        per_layer["fc11_w"].append(tn(lk[3], (E, Rm)))
        per_layer["fc13_w"].append(tn(lk[4], (Rm, F)))
        per_layer["fc13_b"].append(jnp.zeros((1, F), jnp.float32))
        per_layer["fc21_w"].append(tn(lk[5], (F, Rm)))
        per_layer["fc23_w"].append(tn(lk[6], (Rm, E)))
        per_layer["fc23_b"].append(jnp.zeros((1, E), jnp.float32))

    for name, lst in per_layer.items():
        params[name] = jnp.stack(lst, axis=0)   # leading depth axis
    return params


# ----------------------------------------------------------------------------
if __name__ == "__main__":
    # Small "super" config (sample config == super config, no slicing).
    img_size = 16
    patch_size = 8
    in_chans = 3
    embed_dim = 64
    depth = 2
    num_heads = 2
    mlp_ratio = 2.0
    rank_ratio_attn = 0.5
    rank_ratio_mlp = 0.5
    num_classes = 10
    num_patches = (img_size // patch_size) ** 2   # 4 -> seq len 5 with cls token
    B = 2

    key = jax.random.PRNGKey(0)
    kx, kp = jax.random.split(key)
    x = jax.random.normal(kx, (B, in_chans, img_size, img_size), jnp.float32)

    params = build_params(
        kp, in_chans=in_chans, patch_size=patch_size, num_patches=num_patches,
        embed_dim=embed_dim, depth=depth, num_heads=num_heads,
        mlp_ratio=mlp_ratio, rank_ratio_attn=rank_ratio_attn,
        rank_ratio_mlp=rank_ratio_mlp, num_classes=num_classes)

    logits = vision_transformer_super_forward(
        x, params, patch_size=patch_size, num_heads=num_heads,
        embed_dim=embed_dim, num_classes=num_classes)
    jax.block_until_ready(logits)
    assert logits.shape == (B, num_classes)
    print("KERNEL_OK")
</pallas_src>

<mosaic_0001>
module attributes {stable_mosaic.version = 11 : i64} {
  func.func @_vit_super_layer_kernel(%arg0: i32, %arg1: i32, %arg2: memref<16x192xf32, #tpu.memory_space<vmem>>, %arg3: memref<192x64xbf16, #tpu.memory_space<vmem>>, %arg4: memref<16x64xf32, #tpu.memory_space<vmem>>, %arg5: memref<16x16xf32, #tpu.memory_space<vmem>>, %arg6: memref<1x1x64xf32, #tpu.memory_space<vmem>>, %arg7: memref<1x1x64xf32, #tpu.memory_space<vmem>>, %arg8: memref<1x64x32xbf16, #tpu.memory_space<vmem>>, %arg9: memref<1x2x32x32xbf16, #tpu.memory_space<vmem>>, %arg10: memref<1x2x32x32xbf16, #tpu.memory_space<vmem>>, %arg11: memref<1x2x32x32xbf16, #tpu.memory_space<vmem>>, %arg12: memref<1x2x32x64xbf16, #tpu.memory_space<vmem>>, %arg13: memref<1x1x64xf32, #tpu.memory_space<vmem>>, %arg14: memref<1x1x64xf32, #tpu.memory_space<vmem>>, %arg15: memref<1x1x64xf32, #tpu.memory_space<vmem>>, %arg16: memref<1x64x32xbf16, #tpu.memory_space<vmem>>, %arg17: memref<1x32x128xbf16, #tpu.memory_space<vmem>>, %arg18: memref<1x1x128xf32, #tpu.memory_space<vmem>>, %arg19: memref<1x128x32xbf16, #tpu.memory_space<vmem>>, %arg20: memref<1x32x64xbf16, #tpu.memory_space<vmem>>, %arg21: memref<1x1x64xf32, #tpu.memory_space<vmem>>, %arg22: memref<1x64xf32, #tpu.memory_space<vmem>>, %arg23: memref<1x64xf32, #tpu.memory_space<vmem>>, %arg24: memref<64x128xbf16, #tpu.memory_space<vmem>>, %arg25: memref<1x128xf32, #tpu.memory_space<vmem>>, %arg26: memref<1x2x128xf32, #tpu.memory_space<vmem>>, %arg27: memref<16x64xf32, #tpu.memory_space<vmem>>) attributes {dimension_semantics = [#tpu.dimension_semantics<parallel>, #tpu.dimension_semantics<arbitrary>], iteration_bounds = array<i64: 1, 2>, scalar_prefetch = 0 : i64, scratch_operands = 1 : i64, tpu.core_type = #tpu.core_type<tc>, window_params = [{transform_indices = @transform_0, window_bounds = array<i64: 16, 192>}, {pipeline_mode = #tpu.pipeline_mode<synchronous>, transform_indices = @transform_1, window_bounds = array<i64: 192, 64>}, {pipeline_mode = #tpu.pipeline_mode<synchronous>, transform_indices = @transform_2, window_bounds = array<i64: 16, 64>}, {pipeline_mode = #tpu.pipeline_mode<synchronous>, transform_indices = @transform_3, window_bounds = array<i64: 16, 16>}, {transform_indices = @transform_4, window_bounds = array<i64: 1, 1, 64>}, {transform_indices = @transform_5, window_bounds = array<i64: 1, 1, 64>}, {transform_indices = @transform_6, window_bounds = array<i64: 1, 64, 32>}, {transform_indices = @transform_7, window_bounds = array<i64: 1, 2, 32, 32>}, {transform_indices = @transform_8, window_bounds = array<i64: 1, 2, 32, 32>}, {transform_indices = @transform_9, window_bounds = array<i64: 1, 2, 32, 32>}, {transform_indices = @transform_10, window_bounds = array<i64: 1, 2, 32, 64>}, {transform_indices = @transform_11, window_bounds = array<i64: 1, 1, 64>}, {transform_indices = @transform_12, window_bounds = array<i64: 1, 1, 64>}, {transform_indices = @transform_13, window_bounds = array<i64: 1, 1, 64>}, {transform_indices = @transform_14, window_bounds = array<i64: 1, 64, 32>}, {transform_indices = @transform_15, window_bounds = array<i64: 1, 32, 128>}, {transform_indices = @transform_16, window_bounds = array<i64: 1, 1, 128>}, {transform_indices = @transform_17, window_bounds = array<i64: 1, 128, 32>}, {transform_indices = @transform_18, window_bounds = array<i64: 1, 32, 64>}, {transform_indices = @transform_19, window_bounds = array<i64: 1, 1, 64>}, {pipeline_mode = #tpu.pipeline_mode<synchronous>, transform_indices = @transform_20, window_bounds = array<i64: 1, 64>}, {pipeline_mode = #tpu.pipeline_mode<synchronous>, transform_indices = @transform_21, window_bounds = array<i64: 1, 64>}, {pipeline_mode = #tpu.pipeline_mode<synchronous>, transform_indices = @transform_22, window_bounds = array<i64: 64, 128>}, {pipeline_mode = #tpu.pipeline_mode<synchronous>, transform_indices = @transform_23, window_bounds = array<i64: 1, 128>}, {transform_indices = @transform_24, window_bounds = array<i64: 1, 2, 128>}]} {
    %c0_i32 = arith.constant 0 : i32
    %0 = arith.cmpi eq, %arg1, %c0_i32 : i32
    %1 = arith.extui %0 : i1 to i32
    %c0_i32_0 = arith.constant 0 : i32
    %2 = arith.cmpi ne, %1, %c0_i32_0 : i32
    scf.if %2 {
      %c0_110 = arith.constant 0 : index
      %c0_111 = arith.constant 0 : index
      %178 = vector.load %arg2[%c0_110, %c0_111] : memref<16x192xf32, #tpu.memory_space<vmem>>, vector<16x192xf32>
      %179 = arith.truncf %178 : vector<16x192xf32> to vector<16x192xbf16>
      %c0_112 = arith.constant 0 : index
      %c0_113 = arith.constant 0 : index
      %180 = vector.load %arg3[%c0_112, %c0_113] : memref<192x64xbf16, #tpu.memory_space<vmem>>, vector<192x64xbf16>
      %cst_114 = arith.constant dense<0.000000e+00> : vector<16x64xf32>
      %181 = tpu.matmul %179, %180, %cst_114 {dimension_numbers = #tpu.dot_dimension_numbers<[1], [0], [0], [1], [0, 0, 1, 1], [], []>} : vector<16x192xbf16>, vector<192x64xbf16>, vector<16x64xf32> -> vector<16x64xf32>
      %c0_115 = arith.constant 0 : index
      %c0_116 = arith.constant 0 : index
      %182 = vector.load %arg4[%c0_115, %c0_116] : memref<16x64xf32, #tpu.memory_space<vmem>>, vector<16x64xf32>
      %183 = arith.addf %181, %182 : vector<16x64xf32>
      %c0_117 = arith.constant 0 : index
      %c0_118 = arith.constant 0 : index
      %184 = vector.load %arg27[%c0_117, %c0_118] : memref<16x64xf32, #tpu.memory_space<vmem>>, vector<16x64xf32>
      tpu.vector_store %arg27[%c0_117, %c0_118], %183 {strides = array<i32>} : memref<16x64xf32, #tpu.memory_space<vmem>>, vector<16x64xf32>,
    } else {
    }
    %c0 = arith.constant 0 : index
    %c0_1 = arith.constant 0 : index
    %3 = vector.load %arg27[%c0, %c0_1] : memref<16x64xf32, #tpu.memory_space<vmem>>, vector<16x64xf32>
    %c0_2 = arith.constant 0 : index
    %c0_3 = arith.constant 0 : index
    %4 = vector.load %arg5[%c0_2, %c0_3] : memref<16x16xf32, #tpu.memory_space<vmem>>, vector<16x16xf32>
    %c0_4 = arith.constant 0 : index
    %c0_5 = arith.constant 0 : index
    %c0_6 = arith.constant 0 : index
    %5 = vector.load %arg6[%c0_4, %c0_5, %c0_6] : memref<1x1x64xf32, #tpu.memory_space<vmem>>, vector<1x1x64xf32>
    %6 = vector.shape_cast %5 : vector<1x1x64xf32> to vector<1x64xf32>
    %c0_7 = arith.constant 0 : index
    %c0_8 = arith.constant 0 : index
    %c0_9 = arith.constant 0 : index
    %7 = vector.load %arg7[%c0_7, %c0_8, %c0_9] : memref<1x1x64xf32, #tpu.memory_space<vmem>>, vector<1x1x64xf32>
    %8 = vector.shape_cast %7 : vector<1x1x64xf32> to vector<1x64xf32>
    %cst = arith.constant dense<0.000000e+00> : vector<16xf32>
    %9 = vector.multi_reduction <add>, %3, %cst [1] : vector<16x64xf32> to vector<16xf32>
    %10 = vector.shape_cast %9 : vector<16xf32> to vector<16x1xf32>
    %cst_10 = arith.constant 6.400000e+01 : f32
    %11 = vector.broadcast %cst_10 : f32 to vector<16x1xf32>
    %12 = arith.divf %10, %11 : vector<16x1xf32>
    %13 = vector.broadcast %12 : vector<16x1xf32> to vector<16x64xf32>
    %14 = arith.subf %3, %13 : vector<16x64xf32>
    %15 = vector.broadcast %12 : vector<16x1xf32> to vector<16x64xf32>
    %16 = arith.subf %3, %15 : vector<16x64xf32>
    %17 = arith.mulf %14, %16 : vector<16x64xf32>
    %cst_11 = arith.constant dense<0.000000e+00> : vector<16xf32>
    %18 = vector.multi_reduction <add>, %17, %cst_11 [1] : vector<16x64xf32> to vector<16xf32>
    %19 = vector.shape_cast %18 : vector<16xf32> to vector<16x1xf32>
    %cst_12 = arith.constant 6.400000e+01 : f32
    %20 = vector.broadcast %cst_12 : f32 to vector<16x1xf32>
    %21 = arith.divf %19, %20 : vector<16x1xf32>
    %22 = vector.broadcast %12 : vector<16x1xf32> to vector<16x64xf32>
    %23 = arith.subf %3, %22 : vector<16x64xf32>
    %cst_13 = arith.constant 9.99999974E-6 : f32
    %24 = vector.broadcast %cst_13 : f32 to vector<16x1xf32>
    %25 = arith.addf %21, %24 : vector<16x1xf32>
    %26 = math.rsqrt %25 : vector<16x1xf32>
    %27 = vector.broadcast %26 : vector<16x1xf32> to vector<16x64xf32>
    %28 = arith.mulf %23, %27 : vector<16x64xf32>
    %29 = vector.broadcast %6 : vector<1x64xf32> to vector<16x64xf32>
    %30 = arith.mulf %28, %29 : vector<16x64xf32>
    %31 = vector.broadcast %8 : vector<1x64xf32> to vector<16x64xf32>
    %32 = arith.addf %30, %31 : vector<16x64xf32>
    %33 = arith.truncf %32 : vector<16x64xf32> to vector<16x64xbf16>
    %c0_14 = arith.constant 0 : index
    %c0_15 = arith.constant 0 : index
    %c0_16 = arith.constant 0 : index
    %34 = vector.load %arg8[%c0_14, %c0_15, %c0_16] : memref<1x64x32xbf16, #tpu.memory_space<vmem>>, vector<1x64x32xbf16>
    %35 = vector.shape_cast %34 : vector<1x64x32xbf16> to vector<64x32xbf16>
    %cst_17 = arith.constant dense<0.000000e+00> : vector<16x32xf32>
    %36 = tpu.matmul %33, %35, %cst_17 {dimension_numbers = #tpu.dot_dimension_numbers<[1], [0], [0], [1], [0, 0, 1, 1], [], []>} : vector<16x64xbf16>, vector<64x32xbf16>, vector<16x32xf32> -> vector<16x32xf32>
    %37 = arith.truncf %36 : vector<16x32xf32> to vector<16x32xbf16>
    %c0_18 = arith.constant 0 : index
    %c0_19 = arith.constant 0 : index
    %c0_20 = arith.constant 0 : index
    %c0_21 = arith.constant 0 : index
    %38 = vector.load %arg9[%c0_18, %c0_19, %c0_20, %c0_21] : memref<1x2x32x32xbf16, #tpu.memory_space<vmem>>, vector<1x1x32x32xbf16>
    %39 = vector.shape_cast %38 : vector<1x1x32x32xbf16> to vector<32x32xbf16>
    %cst_22 = arith.constant dense<0.000000e+00> : vector<16x32xf32>
    %40 = tpu.matmul %37, %39, %cst_22 {dimension_numbers = #tpu.dot_dimension_numbers<[1], [0], [0], [1], [0, 0, 1, 1], [], []>} : vector<16x32xbf16>, vector<32x32xbf16>, vector<16x32xf32> -> vector<16x32xf32>
    %c0_23 = arith.constant 0 : index
    %c0_24 = arith.constant 0 : index
    %c0_25 = arith.constant 0 : index
    %c0_26 = arith.constant 0 : index
    %41 = vector.load %arg10[%c0_23, %c0_24, %c0_25, %c0_26] : memref<1x2x32x32xbf16, #tpu.memory_space<vmem>>, vector<1x1x32x32xbf16>
    %42 = vector.shape_cast %41 : vector<1x1x32x32xbf16> to vector<32x32xbf16>
    %cst_27 = arith.constant dense<0.000000e+00> : vector<16x32xf32>
    %43 = tpu.matmul %37, %42, %cst_27 {dimension_numbers = #tpu.dot_dimension_numbers<[1], [0], [0], [1], [0, 0, 1, 1], [], []>} : vector<16x32xbf16>, vector<32x32xbf16>, vector<16x32xf32> -> vector<16x32xf32>
    %c0_28 = arith.constant 0 : index
    %c0_29 = arith.constant 0 : index
    %c0_30 = arith.constant 0 : index
    %c0_31 = arith.constant 0 : index
    %44 = vector.load %arg11[%c0_28, %c0_29, %c0_30, %c0_31] : memref<1x2x32x32xbf16, #tpu.memory_space<vmem>>, vector<1x1x32x32xbf16>
    %45 = vector.shape_cast %44 : vector<1x1x32x32xbf16> to vector<32x32xbf16>
    %cst_32 = arith.constant dense<0.000000e+00> : vector<16x32xf32>
    %46 = tpu.matmul %37, %45, %cst_32 {dimension_numbers = #tpu.dot_dimension_numbers<[1], [0], [0], [1], [0, 0, 1, 1], [], []>} : vector<16x32xbf16>, vector<32x32xbf16>, vector<16x32xf32> -> vector<16x32xf32>
    %47 = arith.truncf %40 : vector<16x32xf32> to vector<16x32xbf16>
    %48 = arith.truncf %43 : vector<16x32xf32> to vector<16x32xbf16>
    %cst_33 = arith.constant dense<0.000000e+00> : vector<16x16xf32>
    %49 = tpu.matmul %47, %48, %cst_33 {dimension_numbers = #tpu.dot_dimension_numbers<[1], [1], [0], [0], [0, 0, 1, 0], [], []>} : vector<16x32xbf16>, vector<16x32xbf16>, vector<16x16xf32> -> vector<16x16xf32>
    %cst_34 = arith.constant 0.176776692 : f32
    %50 = vector.broadcast %cst_34 : f32 to vector<16x16xf32>
    %51 = arith.mulf %49, %50 : vector<16x16xf32>
    %52 = arith.addf %51, %4 : vector<16x16xf32>
    %cst_35 = arith.constant dense<0xFF800000> : vector<16xf32>
    %53 = vector.multi_reduction <maximumf>, %52, %cst_35 [1] : vector<16x16xf32> to vector<16xf32>
    %54 = vector.shape_cast %53 : vector<16xf32> to vector<16x1xf32>
    %55 = vector.broadcast %54 : vector<16x1xf32> to vector<16x16xf32>
    %56 = arith.subf %52, %55 : vector<16x16xf32>
    %57 = math.exp %56 : vector<16x16xf32>
    %cst_36 = arith.constant dense<0.000000e+00> : vector<16xf32>
    %58 = vector.multi_reduction <add>, %57, %cst_36 [1] : vector<16x16xf32> to vector<16xf32>
    %59 = vector.shape_cast %58 : vector<16xf32> to vector<16x1xf32>
    %60 = tpu.reciprocal %59 {approx = true} : vector<16x1xf32> -> vector<16x1xf32>
    %61 = vector.broadcast %60 : vector<16x1xf32> to vector<16x16xf32>
    %62 = arith.mulf %57, %61 : vector<16x16xf32>
    %63 = arith.truncf %62 : vector<16x16xf32> to vector<16x16xbf16>
    %64 = arith.truncf %46 : vector<16x32xf32> to vector<16x32xbf16>
    %cst_37 = arith.constant dense<0.000000e+00> : vector<16x32xf32>
    %65 = tpu.matmul %63, %64, %cst_37 {dimension_numbers = #tpu.dot_dimension_numbers<[1], [0], [0], [1], [0, 0, 1, 1], [], []>} : vector<16x16xbf16>, vector<16x32xbf16>, vector<16x32xf32> -> vector<16x32xf32>
    %66 = arith.truncf %65 : vector<16x32xf32> to vector<16x32xbf16>
    %c0_38 = arith.constant 0 : index
    %c0_39 = arith.constant 0 : index
    %c0_40 = arith.constant 0 : index
    %c0_41 = arith.constant 0 : index
    %67 = vector.load %arg12[%c0_38, %c0_39, %c0_40, %c0_41] : memref<1x2x32x64xbf16, #tpu.memory_space<vmem>>, vector<1x1x32x64xbf16>
    %68 = vector.shape_cast %67 : vector<1x1x32x64xbf16> to vector<32x64xbf16>
    %cst_42 = arith.constant dense<0.000000e+00> : vector<16x64xf32>
    %69 = tpu.matmul %66, %68, %cst_42 {dimension_numbers = #tpu.dot_dimension_numbers<[1], [0], [0], [1], [0, 0, 1, 1], [], []>} : vector<16x32xbf16>, vector<32x64xbf16>, vector<16x64xf32> -> vector<16x64xf32>
    %c0_43 = arith.constant 0 : index
    %c1 = arith.constant 1 : index
    %c0_44 = arith.constant 0 : index
    %c0_45 = arith.constant 0 : index
    %70 = vector.load %arg9[%c0_43, %c1, %c0_44, %c0_45] : memref<1x2x32x32xbf16, #tpu.memory_space<vmem>>, vector<1x1x32x32xbf16>
    %71 = vector.shape_cast %70 : vector<1x1x32x32xbf16> to vector<32x32xbf16>
    %cst_46 = arith.constant dense<0.000000e+00> : vector<16x32xf32>
    %72 = tpu.matmul %37, %71, %cst_46 {dimension_numbers = #tpu.dot_dimension_numbers<[1], [0], [0], [1], [0, 0, 1, 1], [], []>} : vector<16x32xbf16>, vector<32x32xbf16>, vector<16x32xf32> -> vector<16x32xf32>
    %c0_47 = arith.constant 0 : index
    %c1_48 = arith.constant 1 : index
    %c0_49 = arith.constant 0 : index
    %c0_50 = arith.constant 0 : index
    %73 = vector.load %arg10[%c0_47, %c1_48, %c0_49, %c0_50] : memref<1x2x32x32xbf16, #tpu.memory_space<vmem>>, vector<1x1x32x32xbf16>
    %74 = vector.shape_cast %73 : vector<1x1x32x32xbf16> to vector<32x32xbf16>
    %cst_51 = arith.constant dense<0.000000e+00> : vector<16x32xf32>
    %75 = tpu.matmul %37, %74, %cst_51 {dimension_numbers = #tpu.dot_dimension_numbers<[1], [0], [0], [1], [0, 0, 1, 1], [], []>} : vector<16x32xbf16>, vector<32x32xbf16>, vector<16x32xf32> -> vector<16x32xf32>
    %c0_52 = arith.constant 0 : index
    %c1_53 = arith.constant 1 : index
    %c0_54 = arith.constant 0 : index
    %c0_55 = arith.constant 0 : index
    %76 = vector.load %arg11[%c0_52, %c1_53, %c0_54, %c0_55] : memref<1x2x32x32xbf16, #tpu.memory_space<vmem>>, vector<1x1x32x32xbf16>
    %77 = vector.shape_cast %76 : vector<1x1x32x32xbf16> to vector<32x32xbf16>
    %cst_56 = arith.constant dense<0.000000e+00> : vector<16x32xf32>
    %78 = tpu.matmul %37, %77, %cst_56 {dimension_numbers = #tpu.dot_dimension_numbers<[1], [0], [0], [1], [0, 0, 1, 1], [], []>} : vector<16x32xbf16>, vector<32x32xbf16>, vector<16x32xf32> -> vector<16x32xf32>
    %79 = arith.truncf %72 : vector<16x32xf32> to vector<16x32xbf16>
    %80 = arith.truncf %75 : vector<16x32xf32> to vector<16x32xbf16>
    %cst_57 = arith.constant dense<0.000000e+00> : vector<16x16xf32>
    %81 = tpu.matmul %79, %80, %cst_57 {dimension_numbers = #tpu.dot_dimension_numbers<[1], [1], [0], [0], [0, 0, 1, 0], [], []>} : vector<16x32xbf16>, vector<16x32xbf16>, vector<16x16xf32> -> vector<16x16xf32>
    %cst_58 = arith.constant 0.176776692 : f32
    %82 = vector.broadcast %cst_58 : f32 to vector<16x16xf32>
    %83 = arith.mulf %81, %82 : vector<16x16xf32>
    %84 = arith.addf %83, %4 : vector<16x16xf32>
    %cst_59 = arith.constant dense<0xFF800000> : vector<16xf32>
    %85 = vector.multi_reduction <maximumf>, %84, %cst_59 [1] : vector<16x16xf32> to vector<16xf32>
    %86 = vector.shape_cast %85 : vector<16xf32> to vector<16x1xf32>
    %87 = vector.broadcast %86 : vector<16x1xf32> to vector<16x16xf32>
    %88 = arith.subf %84, %87 : vector<16x16xf32>
    %89 = math.exp %88 : vector<16x16xf32>
    %cst_60 = arith.constant dense<0.000000e+00> : vector<16xf32>
    %90 = vector.multi_reduction <add>, %89, %cst_60 [1] : vector<16x16xf32> to vector<16xf32>
    %91 = vector.shape_cast %90 : vector<16xf32> to vector<16x1xf32>
    %92 = tpu.reciprocal %91 {approx = true} : vector<16x1xf32> -> vector<16x1xf32>
    %93 = vector.broadcast %92 : vector<16x1xf32> to vector<16x16xf32>
    %94 = arith.mulf %89, %93 : vector<16x16xf32>
    %95 = arith.truncf %94 : vector<16x16xf32> to vector<16x16xbf16>
    %96 = arith.truncf %78 : vector<16x32xf32> to vector<16x32xbf16>
    %cst_61 = arith.constant dense<0.000000e+00> : vector<16x32xf32>
    %97 = tpu.matmul %95, %96, %cst_61 {dimension_numbers = #tpu.dot_dimension_numbers<[1], [0], [0], [1], [0, 0, 1, 1], [], []>} : vector<16x16xbf16>, vector<16x32xbf16>, vector<16x32xf32> -> vector<16x32xf32>
    %98 = arith.truncf %97 : vector<16x32xf32> to vector<16x32xbf16>
    %c0_62 = arith.constant 0 : index
    %c1_63 = arith.constant 1 : index
    %c0_64 = arith.constant 0 : index
    %c0_65 = arith.constant 0 : index
    %99 = vector.load %arg12[%c0_62, %c1_63, %c0_64, %c0_65] : memref<1x2x32x64xbf16, #tpu.memory_space<vmem>>, vector<1x1x32x64xbf16>
    %100 = vector.shape_cast %99 : vector<1x1x32x64xbf16> to vector<32x64xbf16>
    %cst_66 = arith.constant dense<0.000000e+00> : vector<16x64xf32>
    %101 = tpu.matmul %98, %100, %cst_66 {dimension_numbers = #tpu.dot_dimension_numbers<[1], [0], [0], [1], [0, 0, 1, 1], [], []>} : vector<16x32xbf16>, vector<32x64xbf16>, vector<16x64xf32> -> vector<16x64xf32>
    %102 = arith.addf %69, %101 : vector<16x64xf32>
    %103 = arith.addf %3, %102 : vector<16x64xf32>
    %c0_67 = arith.constant 0 : index
    %c0_68 = arith.constant 0 : index
    %c0_69 = arith.constant 0 : index
    %104 = vector.load %arg13[%c0_67, %c0_68, %c0_69] : memref<1x1x64xf32, #tpu.memory_space<vmem>>, vector<1x1x64xf32>
    %105 = vector.shape_cast %104 : vector<1x1x64xf32> to vector<1x64xf32>
    %106 = vector.broadcast %105 : vector<1x64xf32> to vector<16x64xf32>
    %107 = arith.addf %103, %106 : vector<16x64xf32>
    %c0_70 = arith.constant 0 : index
    %c0_71 = arith.constant 0 : index
    %c0_72 = arith.constant 0 : index
    %108 = vector.load %arg14[%c0_70, %c0_71, %c0_72] : memref<1x1x64xf32, #tpu.memory_space<vmem>>, vector<1x1x64xf32>
    %109 = vector.shape_cast %108 : vector<1x1x64xf32> to vector<1x64xf32>
    %c0_73 = arith.constant 0 : index
    %c0_74 = arith.constant 0 : index
    %c0_75 = arith.constant 0 : index
    %110 = vector.load %arg15[%c0_73, %c0_74, %c0_75] : memref<1x1x64xf32, #tpu.memory_space<vmem>>, vector<1x1x64xf32>
    %111 = vector.shape_cast %110 : vector<1x1x64xf32> to vector<1x64xf32>
    %cst_76 = arith.constant dense<0.000000e+00> : vector<16xf32>
    %112 = vector.multi_reduction <add>, %107, %cst_76 [1] : vector<16x64xf32> to vector<16xf32>
    %113 = vector.shape_cast %112 : vector<16xf32> to vector<16x1xf32>
    %cst_77 = arith.constant 6.400000e+01 : f32
    %114 = vector.broadcast %cst_77 : f32 to vector<16x1xf32>
    %115 = arith.divf %113, %114 : vector<16x1xf32>
    %116 = vector.broadcast %115 : vector<16x1xf32> to vector<16x64xf32>
    %117 = arith.subf %107, %116 : vector<16x64xf32>
    %118 = vector.broadcast %115 : vector<16x1xf32> to vector<16x64xf32>
    %119 = arith.subf %107, %118 : vector<16x64xf32>
    %120 = arith.mulf %117, %119 : vector<16x64xf32>
    %cst_78 = arith.constant dense<0.000000e+00> : vector<16xf32>
    %121 = vector.multi_reduction <add>, %120, %cst_78 [1] : vector<16x64xf32> to vector<16xf32>
    %122 = vector.shape_cast %121 : vector<16xf32> to vector<16x1xf32>
    %cst_79 = arith.constant 6.400000e+01 : f32
    %123 = vector.broadcast %cst_79 : f32 to vector<16x1xf32>
    %124 = arith.divf %122, %123 : vector<16x1xf32>
    %125 = vector.broadcast %115 : vector<16x1xf32> to vector<16x64xf32>
    %126 = arith.subf %107, %125 : vector<16x64xf32>
    %cst_80 = arith.constant 9.99999974E-6 : f32
    %127 = vector.broadcast %cst_80 : f32 to vector<16x1xf32>
    %128 = arith.addf %124, %127 : vector<16x1xf32>
    %129 = math.rsqrt %128 : vector<16x1xf32>
    %130 = vector.broadcast %129 : vector<16x1xf32> to vector<16x64xf32>
    %131 = arith.mulf %126, %130 : vector<16x64xf32>
    %132 = vector.broadcast %109 : vector<1x64xf32> to vector<16x64xf32>
    %133 = arith.mulf %131, %132 : vector<16x64xf32>
    %134 = vector.broadcast %111 : vector<1x64xf32> to vector<16x64xf32>
    %135 = arith.addf %133, %134 : vector<16x64xf32>
    %136 = arith.truncf %135 : vector<16x64xf32> to vector<16x64xbf16>
    %c0_81 = arith.constant 0 : index
    %c0_82 = arith.constant 0 : index
    %c0_83 = arith.constant 0 : index
    %137 = vector.load %arg16[%c0_81, %c0_82, %c0_83] : memref<1x64x32xbf16, #tpu.memory_space<vmem>>, vector<1x64x32xbf16>
    %138 = vector.shape_cast %137 : vector<1x64x32xbf16> to vector<64x32xbf16>
    %cst_84 = arith.constant dense<0.000000e+00> : vector<16x32xf32>
    %139 = tpu.matmul %136, %138, %cst_84 {dimension_numbers = #tpu.dot_dimension_numbers<[1], [0], [0], [1], [0, 0, 1, 1], [], []>} : vector<16x64xbf16>, vector<64x32xbf16>, vector<16x32xf32> -> vector<16x32xf32>
    %140 = arith.truncf %139 : vector<16x32xf32> to vector<16x32xbf16>
    %c0_85 = arith.constant 0 : index
    %c0_86 = arith.constant 0 : index
    %c0_87 = arith.constant 0 : index
    %141 = vector.load %arg17[%c0_85, %c0_86, %c0_87] : memref<1x32x128xbf16, #tpu.memory_space<vmem>>, vector<1x32x128xbf16>
    %142 = vector.shape_cast %141 : vector<1x32x128xbf16> to vector<32x128xbf16>
    %cst_88 = arith.constant dense<0.000000e+00> : vector<16x128xf32>
    %143 = tpu.matmul %140, %142, %cst_88 {dimension_numbers = #tpu.dot_dimension_numbers<[1], [0], [0], [1], [0, 0, 1, 1], [], []>} : vector<16x32xbf16>, vector<32x128xbf16>, vector<16x128xf32> -> vector<16x128xf32>
    %c0_89 = arith.constant 0 : index
    %c0_90 = arith.constant 0 : index
    %c0_91 = arith.constant 0 : index
    %144 = vector.load %arg18[%c0_89, %c0_90, %c0_91] : memref<1x1x128xf32, #tpu.memory_space<vmem>>, vector<1x1x128xf32>
    %145 = vector.shape_cast %144 : vector<1x1x128xf32> to vector<1x128xf32>
    %146 = vector.broadcast %145 : vector<1x128xf32> to vector<16x128xf32>
    %147 = arith.addf %143, %146 : vector<16x128xf32>
    %cst_92 = arith.constant 5.000000e-01 : f32
    %148 = vector.broadcast %cst_92 : f32 to vector<16x128xf32>
    %149 = arith.mulf %148, %147 : vector<16x128xf32>
    %cst_93 = arith.constant 4.471500e-02 : f32
    %150 = vector.broadcast %cst_93 : f32 to vector<16x128xf32>
    %151 = arith.mulf %150, %147 : vector<16x128xf32>
    %152 = arith.mulf %151, %147 : vector<16x128xf32>
    %153 = arith.mulf %152, %147 : vector<16x128xf32>
    %154 = arith.addf %147, %153 : vector<16x128xf32>
    %cst_94 = arith.constant 0.797884583 : f32
    %155 = vector.broadcast %cst_94 : f32 to vector<16x128xf32>
    %156 = arith.mulf %155, %154 : vector<16x128xf32>
    %157 = math.tanh %156 : vector<16x128xf32>
    %cst_95 = arith.constant 1.000000e+00 : f32
    %158 = vector.broadcast %cst_95 : f32 to vector<16x128xf32>
    %159 = arith.addf %158, %157 : vector<16x128xf32>
    %160 = arith.mulf %149, %159 : vector<16x128xf32>
    %161 = arith.truncf %160 : vector<16x128xf32> to vector<16x128xbf16>
    %c0_96 = arith.constant 0 : index
    %c0_97 = arith.constant 0 : index
    %c0_98 = arith.constant 0 : index
    %162 = vector.load %arg19[%c0_96, %c0_97, %c0_98] : memref<1x128x32xbf16, #tpu.memory_space<vmem>>, vector<1x128x32xbf16>
    %163 = vector.shape_cast %162 : vector<1x128x32xbf16> to vector<128x32xbf16>
    %cst_99 = arith.constant dense<0.000000e+00> : vector<16x32xf32>
    %164 = tpu.matmul %161, %163, %cst_99 {dimension_numbers = #tpu.dot_dimension_numbers<[1], [0], [0], [1], [0, 0, 1, 1], [], []>} : vector<16x128xbf16>, vector<128x32xbf16>, vector<16x32xf32> -> vector<16x32xf32>
    %165 = arith.truncf %164 : vector<16x32xf32> to vector<16x32xbf16>
    %c0_100 = arith.constant 0 : index
    %c0_101 = arith.constant 0 : index
    %c0_102 = arith.constant 0 : index
    %166 = vector.load %arg20[%c0_100, %c0_101, %c0_102] : memref<1x32x64xbf16, #tpu.memory_space<vmem>>, vector<1x32x64xbf16>
    %167 = vector.shape_cast %166 : vector<1x32x64xbf16> to vector<32x64xbf16>
    %cst_103 = arith.constant dense<0.000000e+00> : vector<16x64xf32>
    %168 = tpu.matmul %165, %167, %cst_103 {dimension_numbers = #tpu.dot_dimension_numbers<[1], [0], [0], [1], [0, 0, 1, 1], [], []>} : vector<16x32xbf16>, vector<32x64xbf16>, vector<16x64xf32> -> vector<16x64xf32>
    %c0_104 = arith.constant 0 : index
    %c0_105 = arith.constant 0 : index
    %c0_106 = arith.constant 0 : index
    %169 = vector.load %arg21[%c0_104, %c0_105, %c0_106] : memref<1x1x64xf32, #tpu.memory_space<vmem>>, vector<1x1x64xf32>
    %170 = vector.shape_cast %169 : vector<1x1x64xf32> to vector<1x64xf32>
    %171 = vector.broadcast %170 : vector<1x64xf32> to vector<16x64xf32>
    %172 = arith.addf %168, %171 : vector<16x64xf32>
    %173 = arith.addf %107, %172 : vector<16x64xf32>
    %c0_107 = arith.constant 0 : index
    %c0_108 = arith.constant 0 : index
    %174 = vector.load %arg27[%c0_107, %c0_108] : memref<16x64xf32, #tpu.memory_space<vmem>>, vector<16x64xf32>
    tpu.vector_store %arg27[%c0_107, %c0_108], %173 {strides = array<i32>} : memref<16x64xf32, #tpu.memory_space<vmem>>, vector<16x64xf32>,
    %c1_i32 = arith.constant 1 : i32
    %175 = arith.cmpi eq, %arg1, %c1_i32 : i32
    %176 = arith.extui %175 : i1 to i32
    %c0_i32_109 = arith.constant 0 : i32
    %177 = arith.cmpi ne, %176, %c0_i32_109 : i32
    scf.if %177 {
      %178 = vector.shape_cast %173 : vector<16x64xf32> to vector<2x8x64xf32>
      %179 = vector.extract_strided_slice %178 {offsets = [0, 0, 0], sizes = [2, 1, 64], strides = [1, 1, 1]} : vector<2x8x64xf32> to vector<2x1x64xf32>
      %180 = vector.shape_cast %179 : vector<2x1x64xf32> to vector<2x64xf32>
      %c0_110 = arith.constant 0 : index
      %c0_111 = arith.constant 0 : index
      %181 = vector.load %arg22[%c0_110, %c0_111] : memref<1x64xf32, #tpu.memory_space<vmem>>, vector<1x64xf32>
      %c0_112 = arith.constant 0 : index
      %c0_113 = arith.constant 0 : index
      %182 = vector.load %arg23[%c0_112, %c0_113] : memref<1x64xf32, #tpu.memory_space<vmem>>, vector<1x64xf32>
      %cst_114 = arith.constant dense<0.000000e+00> : vector<2xf32>
      %183 = vector.multi_reduction <add>, %180, %cst_114 [1] : vector<2x64xf32> to vector<2xf32>
      %184 = vector.shape_cast %183 : vector<2xf32> to vector<2x1xf32>
      %cst_115 = arith.constant 6.400000e+01 : f32
      %185 = vector.broadcast %cst_115 : f32 to vector<2x1xf32>
      %186 = arith.divf %184, %185 : vector<2x1xf32>
      %187 = vector.broadcast %186 : vector<2x1xf32> to vector<2x64xf32>
      %188 = arith.subf %180, %187 : vector<2x64xf32>
      %189 = vector.broadcast %186 : vector<2x1xf32> to vector<2x64xf32>
      %190 = arith.subf %180, %189 : vector<2x64xf32>
      %191 = arith.mulf %188, %190 : vector<2x64xf32>
      %cst_116 = arith.constant dense<0.000000e+00> : vector<2xf32>
      %192 = vector.multi_reduction <add>, %191, %cst_116 [1] : vector<2x64xf32> to vector<2xf32>
      %193 = vector.shape_cast %192 : vector<2xf32> to vector<2x1xf32>
      %cst_117 = arith.constant 6.400000e+01 : f32
      %194 = vector.broadcast %cst_117 : f32 to vector<2x1xf32>
      %195 = arith.divf %193, %194 : vector<2x1xf32>
      %196 = vector.broadcast %186 : vector<2x1xf32> to vector<2x64xf32>
      %197 = arith.subf %180, %196 : vector<2x64xf32>
      %cst_118 = arith.constant 9.99999974E-6 : f32
      %198 = vector.broadcast %cst_118 : f32 to vector<2x1xf32>
      %199 = arith.addf %195, %198 : vector<2x1xf32>
      %200 = math.rsqrt %199 : vector<2x1xf32>
      %201 = vector.broadcast %200 : vector<2x1xf32> to vector<2x64xf32>
      %202 = arith.mulf %197, %201 : vector<2x64xf32>
      %203 = vector.broadcast %181 : vector<1x64xf32> to vector<2x64xf32>
      %204 = arith.mulf %202, %203 : vector<2x64xf32>
      %205 = vector.broadcast %182 : vector<1x64xf32> to vector<2x64xf32>
      %206 = arith.addf %204, %205 : vector<2x64xf32>
      %207 = arith.truncf %206 : vector<2x64xf32> to vector<2x64xbf16>
      %c0_119 = arith.constant 0 : index
      %c0_120 = arith.constant 0 : index
      %208 = vector.load %arg24[%c0_119, %c0_120] : memref<64x128xbf16, #tpu.memory_space<vmem>>, vector<64x128xbf16>
      %cst_121 = arith.constant dense<0.000000e+00> : vector<2x128xf32>
      %209 = tpu.matmul %207, %208, %cst_121 {dimension_numbers = #tpu.dot_dimension_numbers<[1], [0], [0], [1], [0, 0, 1, 1], [], []>} : vector<2x64xbf16>, vector<64x128xbf16>, vector<2x128xf32> -> vector<2x128xf32>
      %c0_122 = arith.constant 0 : index
      %c0_123 = arith.constant 0 : index
      %210 = vector.load %arg25[%c0_122, %c0_123] : memref<1x128xf32, #tpu.memory_space<vmem>>, vector<1x128xf32>
      %211 = vector.broadcast %210 : vector<1x128xf32> to vector<2x128xf32>
      %212 = arith.addf %209, %211 : vector<2x128xf32>
      %213 = vector.shape_cast %212 : vector<2x128xf32> to vector<1x2x128xf32>
      %c0_124 = arith.constant 0 : index
      %c0_125 = arith.constant 0 : index
      %c0_126 = arith.constant 0 : index
      %214 = vector.load %arg26[%c0_124, %c0_125, %c0_126] : memref<1x2x128xf32, #tpu.memory_space<vmem>>, vector<1x2x128xf32>
      tpu.vector_store %arg26[%c0_124, %c0_125, %c0_126], %213 {strides = array<i32>} : memref<1x2x128xf32, #tpu.memory_space<vmem>>, vector<1x2x128xf32>,
    } else {
    }
    return
  }
  func.func @transform_0(%arg0: i32, %arg1: i32) -> (i32, i32) {
    %c0_i32 = arith.constant 0 : i32
    %c0_i32_0 = arith.constant 0 : i32
    return %arg0, %c0_i32 : i32, i32
  }
  func.func @transform_1(%arg0: i32, %arg1: i32) -> (i32, i32) {
    %c0_i32 = arith.constant 0 : i32
    %c0_i32_0 = arith.constant 0 : i32
    %c0_i32_1 = arith.constant 0 : i32
    return %c0_i32, %c0_i32_0 : i32, i32
  }
  func.func @transform_2(%arg0: i32, %arg1: i32) -> (i32, i32) {
    %c0_i32 = arith.constant 0 : i32
    %c0_i32_0 = arith.constant 0 : i32
    %c0_i32_1 = arith.constant 0 : i32
    return %c0_i32, %c0_i32_0 : i32, i32
  }
  func.func @transform_3(%arg0: i32, %arg1: i32) -> (i32, i32) {
    %c0_i32 = arith.constant 0 : i32
    %c0_i32_0 = arith.constant 0 : i32
    %c0_i32_1 = arith.constant 0 : i32
    return %c0_i32, %c0_i32_0 : i32, i32
  }
  func.func @transform_4(%arg0: i32, %arg1: i32) -> (i32, i32, i32) {
    %c0_i32 = arith.constant 0 : i32
    %c0_i32_0 = arith.constant 0 : i32
    %c0_i32_1 = arith.constant 0 : i32
    return %arg1, %c0_i32, %c0_i32_0 : i32, i32, i32
  }
  func.func @transform_5(%arg0: i32, %arg1: i32) -> (i32, i32, i32) {
    %c0_i32 = arith.constant 0 : i32
    %c0_i32_0 = arith.constant 0 : i32
    %c0_i32_1 = arith.constant 0 : i32
    return %arg1, %c0_i32, %c0_i32_0 : i32, i32, i32
  }
  func.func @transform_6(%arg0: i32, %arg1: i32) -> (i32, i32, i32) {
    %c0_i32 = arith.constant 0 : i32
    %c0_i32_0 = arith.constant 0 : i32
    %c0_i32_1 = arith.constant 0 : i32
    return %arg1, %c0_i32, %c0_i32_0 : i32, i32, i32
  }
  func.func @transform_7(%arg0: i32, %arg1: i32) -> (i32, i32, i32, i32) {
    %c0_i32 = arith.constant 0 : i32
    %c0_i32_0 = arith.constant 0 : i32
    %c0_i32_1 = arith.constant 0 : i32
    %c0_i32_2 = arith.constant 0 : i32
    return %arg1, %c0_i32, %c0_i32_0, %c0_i32_1 : i32, i32, i32, i32
  }
  func.func @transform_8(%arg0: i32, %arg1: i32) -> (i32, i32, i32, i32) {
    %c0_i32 = arith.constant 0 : i32
    %c0_i32_0 = arith.constant 0 : i32
    %c0_i32_1 = arith.constant 0 : i32
    %c0_i32_2 = arith.constant 0 : i32
    return %arg1, %c0_i32, %c0_i32_0, %c0_i32_1 : i32, i32, i32, i32
  }
  func.func @transform_9(%arg0: i32, %arg1: i32) -> (i32, i32, i32, i32) {
    %c0_i32 = arith.constant 0 : i32
    %c0_i32_0 = arith.constant 0 : i32
    %c0_i32_1 = arith.constant 0 : i32
    %c0_i32_2 = arith.constant 0 : i32
    return %arg1, %c0_i32, %c0_i32_0, %c0_i32_1 : i32, i32, i32, i32
  }
  func.func @transform_10(%arg0: i32, %arg1: i32) -> (i32, i32, i32, i32) {
    %c0_i32 = arith.constant 0 : i32
    %c0_i32_0 = arith.constant 0 : i32
    %c0_i32_1 = arith.constant 0 : i32
    %c0_i32_2 = arith.constant 0 : i32
    return %arg1, %c0_i32, %c0_i32_0, %c0_i32_1 : i32, i32, i32, i32
  }
  func.func @transform_11(%arg0: i32, %arg1: i32) -> (i32, i32, i32) {
    %c0_i32 = arith.constant 0 : i32
    %c0_i32_0 = arith.constant 0 : i32
    %c0_i32_1 = arith.constant 0 : i32
    return %arg1, %c0_i32, %c0_i32_0 : i32, i32, i32
  }
  func.func @transform_12(%arg0: i32, %arg1: i32) -> (i32, i32, i32) {
    %c0_i32 = arith.constant 0 : i32
    %c0_i32_0 = arith.constant 0 : i32
    %c0_i32_1 = arith.constant 0 : i32
    return %arg1, %c0_i32, %c0_i32_0 : i32, i32, i32
  }
  func.func @transform_13(%arg0: i32, %arg1: i32) -> (i32, i32, i32) {
    %c0_i32 = arith.constant 0 : i32
    %c0_i32_0 = arith.constant 0 : i32
    %c0_i32_1 = arith.constant 0 : i32
    return %arg1, %c0_i32, %c0_i32_0 : i32, i32, i32
  }
  func.func @transform_14(%arg0: i32, %arg1: i32) -> (i32, i32, i32) {
    %c0_i32 = arith.constant 0 : i32
    %c0_i32_0 = arith.constant 0 : i32
    %c0_i32_1 = arith.constant 0 : i32
    return %arg1, %c0_i32, %c0_i32_0 : i32, i32, i32
  }
  func.func @transform_15(%arg0: i32, %arg1: i32) -> (i32, i32, i32) {
    %c0_i32 = arith.constant 0 : i32
    %c0_i32_0 = arith.constant 0 : i32
    %c0_i32_1 = arith.constant 0 : i32
    return %arg1, %c0_i32, %c0_i32_0 : i32, i32, i32
  }
  func.func @transform_16(%arg0: i32, %arg1: i32) -> (i32, i32, i32) {
    %c0_i32 = arith.constant 0 : i32
    %c0_i32_0 = arith.constant 0 : i32
    %c0_i32_1 = arith.constant 0 : i32
    return %arg1, %c0_i32, %c0_i32_0 : i32, i32, i32
  }
  func.func @transform_17(%arg0: i32, %arg1: i32) -> (i32, i32, i32) {
    %c0_i32 = arith.constant 0 : i32
    %c0_i32_0 = arith.constant 0 : i32
    %c0_i32_1 = arith.constant 0 : i32
    return %arg1, %c0_i32, %c0_i32_0 : i32, i32, i32
  }
  func.func @transform_18(%arg0: i32, %arg1: i32) -> (i32, i32, i32) {
    %c0_i32 = arith.constant 0 : i32
    %c0_i32_0 = arith.constant 0 : i32
    %c0_i32_1 = arith.constant 0 : i32
    return %arg1, %c0_i32, %c0_i32_0 : i32, i32, i32
  }
  func.func @transform_19(%arg0: i32, %arg1: i32) -> (i32, i32, i32) {
    %c0_i32 = arith.constant 0 : i32
    %c0_i32_0 = arith.constant 0 : i32
    %c0_i32_1 = arith.constant 0 : i32
    return %arg1, %c0_i32, %c0_i32_0 : i32, i32, i32
  }
  func.func @transform_20(%arg0: i32, %arg1: i32) -> (i32, i32) {
    %c0_i32 = arith.constant 0 : i32
    %c0_i32_0 = arith.constant 0 : i32
    %c0_i32_1 = arith.constant 0 : i32
    return %c0_i32, %c0_i32_0 : i32, i32
  }
  func.func @transform_21(%arg0: i32, %arg1: i32) -> (i32, i32) {
    %c0_i32 = arith.constant 0 : i32
    %c0_i32_0 = arith.constant 0 : i32
    %c0_i32_1 = arith.constant 0 : i32
    return %c0_i32, %c0_i32_0 : i32, i32
  }
  func.func @transform_22(%arg0: i32, %arg1: i32) -> (i32, i32) {
    %c0_i32 = arith.constant 0 : i32
    %c0_i32_0 = arith.constant 0 : i32
    %c0_i32_1 = arith.constant 0 : i32
    return %c0_i32, %c0_i32_0 : i32, i32
  }
  func.func @transform_23(%arg0: i32, %arg1: i32) -> (i32, i32) {
    %c0_i32 = arith.constant 0 : i32
    %c0_i32_0 = arith.constant 0 : i32
    %c0_i32_1 = arith.constant 0 : i32
    return %c0_i32, %c0_i32_0 : i32, i32
  }
  func.func @transform_24(%arg0: i32, %arg1: i32) -> (i32, i32, i32) {
    %c0_i32 = arith.constant 0 : i32
    %c0_i32_0 = arith.constant 0 : i32
    %c0_i32_1 = arith.constant 0 : i32
    return %arg0, %c0_i32, %c0_i32_0 : i32, i32, i32
  }
}

</mosaic_0001>

<llo_original>
// kernel: tpu_custom_call.1
$region0: #{tpu_custom_call.1}
  #allocation0 [shape = 'u32[]', space=smem, size = 0x4, offset = 0x4, fixed_abs, tag = 'smem constant byte address 0x4 - core index']
  #allocation1 [shape = 'u32[144,128]{1,0:T(1,128)}', space=vmem, size = 0x12000, scoped, tag = 'internal scratch']
  #allocation2 [shape = 'f32[16,64]{1,0:T(8,128)}', space=vmem, size = 0x2000, scoped, tag = 'scratch operand']
  %s0 = inlined_call_operand.vmem [shape: f32[16,192], index: 0, kind: input, shape index: {}]
  %s1 = inlined_call_operand.vmem [shape: bf16[192,64], index: 1, kind: input, shape index: {}]
  %s2 = inlined_call_operand.hbm [shape: f32[16,64], index: 2, kind: input, shape index: {}]
  %s3 = inlined_call_operand.hbm [shape: f32[16,16], index: 3, kind: input, shape index: {}]
  %s4 = inlined_call_operand.vmem [shape: f32[2,1,64], index: 4, kind: input, shape index: {}]
  %s5 = inlined_call_operand.vmem [shape: f32[2,1,64], index: 5, kind: input, shape index: {}]
  %s6 = inlined_call_operand.vmem [shape: bf16[2,64,32], index: 6, kind: input, shape index: {}]
  %s7 = inlined_call_operand.vmem [shape: bf16[2,2,32,32], index: 7, kind: input, shape index: {}]
  %s8 = inlined_call_operand.vmem [shape: bf16[2,2,32,32], index: 8, kind: input, shape index: {}]
  %s9 = inlined_call_operand.vmem [shape: bf16[2,2,32,32], index: 9, kind: input, shape index: {}]
  %s10 = inlined_call_operand.vmem [shape: bf16[2,2,32,64], index: 10, kind: input, shape index: {}]
  %s11 = inlined_call_operand.vmem [shape: f32[2,1,64], index: 11, kind: input, shape index: {}]
  %s12 = inlined_call_operand.vmem [shape: f32[2,1,64], index: 12, kind: input, shape index: {}]
  %s13 = inlined_call_operand.vmem [shape: f32[2,1,64], index: 13, kind: input, shape index: {}]
  %s14 = inlined_call_operand.vmem [shape: bf16[2,64,32], index: 14, kind: input, shape index: {}]
  %s15 = inlined_call_operand.vmem [shape: bf16[2,32,128], index: 15, kind: input, shape index: {}]
  %s16 = inlined_call_operand.vmem [shape: f32[2,1,128], index: 16, kind: input, shape index: {}]
  %s17 = inlined_call_operand.vmem [shape: bf16[2,128,32], index: 17, kind: input, shape index: {}]
  %s18 = inlined_call_operand.vmem [shape: bf16[2,32,64], index: 18, kind: input, shape index: {}]
  %s19 = inlined_call_operand.vmem [shape: f32[2,1,64], index: 19, kind: input, shape index: {}]
  %s20 = inlined_call_operand.vmem [shape: f32[1,64], index: 20, kind: input, shape index: {}]
  %s21 = inlined_call_operand.vmem [shape: f32[1,64], index: 21, kind: input, shape index: {}]
  %s22 = inlined_call_operand.vmem [shape: bf16[64,128], index: 22, kind: input, shape index: {}]
  %s23 = inlined_call_operand.vmem [shape: f32[1,128], index: 23, kind: input, shape index: {}]
  %s24 = inlined_call_operand.hbm [shape: f32[1,2,128], index: 24, kind: output, shape index: {}]
  %s25 = sld [smem:[#allocation0]]
  $region145: #{tpu_custom_call.1} parent=0
    _
  %s27 = ssub.s32 1, %s25
  %s28 = scalar_select 0, %s27, %s25
  $region1: #{tpu_custom_call.1} parent=0
    #allocation3 [shape = 'u8[8192]{0}', space=vmem, size = 0x2000, scoped, tag = 'input window, operand 2, single buffered']
    #allocation4 [shape = 's32[2]{0}', space=sflag, size = 0x8, scoped, tag = 'scoped memory for tpu_custom_call.1']
    #allocation5 [shape = 's32[2]{0}', space=sflag, size = 0x8, scoped, tag = 'scoped memory for tpu_custom_call.1']
    #allocation6 [shape = 'u8[8192]{0}', space=vmem, size = 0x2000, scoped, tag = 'input window, operand 3, single buffered']
    #allocation7 [shape = 's32[1]{0}', space=sflag, size = 0x4, scoped, tag = 'scoped memory for tpu_custom_call.1']
    #allocation8 [shape = 'u8[1024]{0}', space=vmem, size = 0x400, scoped, tag = 'output window, operand 0, single buffered']
    %29 = vsyncpa [#allocation4], 0
    %30 = vsyncpa [#allocation7], 0
    %31 = vsyncpa [#allocation5], 0
    loop: start=0, step=1, limit=4
    $region2: #{tpu_custom_call.1} parent=1 // loop_pre_header
      _
    $region3: #{tpu_custom_call.1} parent=1 // loop_header
      %s33 = sphi 0, %s37
      %p34 = scmp.ge.s32.totalorder %s33, 4
      %s40 = sphi 0, %s52
      %s41 = sphi 0, %s48
      %s42 = sphi 0, %s40
      %s43 = sphi 0, %s41
      %s44 = sphi 0, %s42
      %s45 = sphi 0, %s43
      %s55 = sphi 0, %s57
      %s58 = sphi 0, %s55
      %s59 = sphi 0, %s58
      %s75 = sphi 0, %s59
      %s79 = sphi 0, %s79
      %s81 = sphi 0, %s79
      %s82 = sphi 0, %s81
      %s96 = sphi 0, %s82
      %s100 = sphi 0, %s100
      %s102 = sphi 0, %s100
      %s103 = sphi 0, %s102
      %s117 = sphi 0, %s103
      %s121 = sphi 0, %s121
      %s123 = sphi 0, %s121
      %s124 = sphi 0, %s123
      %s138 = sphi 0, %s124
      %s144 = sphi 0, %s146
      %s147 = sphi 0, %s144
      %s148 = sphi 0, %s147
      %s164 = sphi 0, %s148
      %s170 = sphi 0, %s172
      %s173 = sphi 0, %s170
      %s174 = sphi 0, %s173
      %s190 = sphi 0, %s174
      %s196 = sphi 0, %s198
      %s199 = sphi 0, %s196
      %s200 = sphi 0, %s199
      %s216 = sphi 0, %s200
      %s222 = sphi 0, %s224
      %s225 = sphi 0, %s222
      %s226 = sphi 0, %s225
      %s242 = sphi 0, %s226
      %s248 = sphi 0, %s250
      %s251 = sphi 0, %s248
      %s252 = sphi 0, %s251
      %s268 = sphi 0, %s252
      %s274 = sphi 0, %s276
      %s277 = sphi 0, %s274
      %s278 = sphi 0, %s277
      %s294 = sphi 0, %s278
      %s300 = sphi 0, %s302
      %s303 = sphi 0, %s300
      %s304 = sphi 0, %s303
      %s320 = sphi 0, %s304
      %s326 = sphi 0, %s328
      %s329 = sphi 0, %s326
      %s330 = sphi 0, %s329
      %s346 = sphi 0, %s330
      %s352 = sphi 0, %s354
      %s355 = sphi 0, %s352
      %s356 = sphi 0, %s355
      %s372 = sphi 0, %s356
      %s378 = sphi 0, %s380
      %s381 = sphi 0, %s378
      %s382 = sphi 0, %s381
      %s398 = sphi 0, %s382
      %s404 = sphi 0, %s406
      %s407 = sphi 0, %s404
      %s408 = sphi 0, %s407
      %s424 = sphi 0, %s408
      %s430 = sphi 0, %s432
      %s433 = sphi 0, %s430
      %s434 = sphi 0, %s433
      %s450 = sphi 0, %s434
      %s456 = sphi 0, %s458
      %s459 = sphi 0, %s456
      %s460 = sphi 0, %s459
      %s476 = sphi 0, %s460
      %s482 = sphi 0, %s484
      %s485 = sphi 0, %s482
      %s486 = sphi 0, %s485
      %s502 = sphi 0, %s486
      %s508 = sphi 0, %s510
      %s511 = sphi 0, %s508
      %s512 = sphi 0, %s511
      %s528 = sphi 0, %s512
      %s534 = sphi 0, %s536
      %s537 = sphi 0, %s534
      %s538 = sphi 0, %s537
      %s554 = sphi 0, %s538
      %s558 = sphi 0, %s558
      %s560 = sphi 0, %s558
      %s561 = sphi 0, %s560
      %s575 = sphi 0, %s561
      %s579 = sphi 0, %s579
      %s581 = sphi 0, %s579
      %s582 = sphi 0, %s581
      %s596 = sphi 0, %s582
      %s600 = sphi 0, %s600
      %s602 = sphi 0, %s600
      %s603 = sphi 0, %s602
      %s617 = sphi 0, %s603
      %s621 = sphi 0, %s621
      %s623 = sphi 0, %s621
      %s624 = sphi 0, %s623
      %s638 = sphi 0, %s624
      %s644 = sphi 0, %s646
      %s647 = sphi 0, %s644
      %s648 = sphi 0, %s647
      %s664 = sphi 0, %s648
    $region4: #{tpu_custom_call.1} parent=1 // loop_header_branch
      %36 = sbr.rel (%p34) target = $region8
    $region5: #{tpu_custom_call.1} parent=1 // loop_body
      %s38 = ssub.s32 %s33, 1
      %s39 = ssub.s32 %s33, 2
      %s46 = sadd.s32 1, %s41
      %p47 = scmp.ge.s32.totalorder %s46, 2
      %s48 = scalar_select %p47, 0, %s46
      %s49 = sadd.s32 1, %s40
      %s50 = scalar_select %p47, %s49, %s40
      %p51 = scmp.ge.s32.totalorder %s50, 1
      %s52 = scalar_select %p51, 0, %s50
      %s53 = ssub.s32 %s40, %s52
      %p54 = scmp.eq.s32.totalorder %s53, 0
      %s56 = sadd.s32 %s55, 1
      %s57 = scalar_select %p54, %s55, %s56
      %p60 = pneg %p54
      %p61 = scmp.eq.s32.totalorder %s33, 1
      %p62 = por %p60, %p61
      %p63 = scmp.ne.s32.totalorder %s55, %s58
      %p64 = scmp.eq.s32.totalorder %s33, 0
      %p65 = por %p63, %p64
      %p66 = scmp.ne.s32.totalorder %s55, %s58
      %p67 = scmp.eq.s32.totalorder %s38, 1
      %p68 = por %p66, %p67
      %p69 = scmp.ne.s32.totalorder %s58, %s59
      %p70 = scmp.eq.s32.totalorder %s38, 0
      %p71 = por %p69, %p70
      %p72 = scmp.ne.s32.totalorder %s58, %s59
      %p73 = scmp.eq.s32.totalorder %s39, 1
      %p74 = por %p72, %p73
      %p76 = scmp.ne.s32.totalorder %s59, %s75
      %p77 = scmp.eq.s32.totalorder %s39, 0
      %p78 = por %p76, %p77
      %s80 = sadd.s32 %s79, 1
      %p83 = scmp.eq.s32.totalorder %s33, 1
      %p84 = scmp.ne.s32.totalorder %s79, %s81
      %p85 = scmp.eq.s32.totalorder %s33, 0
      %p86 = por %p84, %p85
      %p87 = scmp.ne.s32.totalorder %s79, %s81
      %p88 = scmp.eq.s32.totalorder %s38, 1
      %p89 = por %p87, %p88
      %p90 = scmp.ne.s32.totalorder %s81, %s82
      %p91 = scmp.eq.s32.totalorder %s38, 0
      %p92 = por %p90, %p91
      %p93 = scmp.ne.s32.totalorder %s81, %s82
      %p94 = scmp.eq.s32.totalorder %s39, 1
      %p95 = por %p93, %p94
      %p97 = scmp.ne.s32.totalorder %s82, %s96
      %p98 = scmp.eq.s32.totalorder %s39, 0
      %p99 = por %p97, %p98
      %s101 = sadd.s32 %s100, 1
      %p104 = scmp.eq.s32.totalorder %s33, 1
      %p105 = scmp.ne.s32.totalorder %s100, %s102
      %p106 = scmp.eq.s32.totalorder %s33, 0
      %p107 = por %p105, %p106
      %p108 = scmp.ne.s32.totalorder %s100, %s102
      %p109 = scmp.eq.s32.totalorder %s38, 1
      %p110 = por %p108, %p109
      %p111 = scmp.ne.s32.totalorder %s102, %s103
      %p112 = scmp.eq.s32.totalorder %s38, 0
      %p113 = por %p111, %p112
      %p114 = scmp.ne.s32.totalorder %s102, %s103
      %p115 = scmp.eq.s32.totalorder %s39, 1
      %p116 = por %p114, %p115
      %p118 = scmp.ne.s32.totalorder %s103, %s117
      %p119 = scmp.eq.s32.totalorder %s39, 0
      %p120 = por %p118, %p119
      %s122 = sadd.s32 %s121, 1
      %p125 = scmp.eq.s32.totalorder %s33, 1
      %p126 = scmp.ne.s32.totalorder %s121, %s123
      %p127 = scmp.eq.s32.totalorder %s33, 0
      %p128 = por %p126, %p127
      %p129 = scmp.ne.s32.totalorder %s121, %s123
      %p130 = scmp.eq.s32.totalorder %s38, 1
      %p131 = por %p129, %p130
      %p132 = scmp.ne.s32.totalorder %s123, %s124
      %p133 = scmp.eq.s32.totalorder %s38, 0
      %p134 = por %p132, %p133
      %p135 = scmp.ne.s32.totalorder %s123, %s124
      %p136 = scmp.eq.s32.totalorder %s39, 1
      %p137 = por %p135, %p136
      %p139 = scmp.ne.s32.totalorder %s124, %s138
      %p140 = scmp.eq.s32.totalorder %s39, 0
      %p141 = por %p139, %p140
      %s142 = ssub.s32 %s41, %s48
      %p143 = scmp.eq.s32.totalorder %s142, 0
      %s145 = sadd.s32 %s144, 1
      %s146 = scalar_select %p143, %s144, %s145
      %p149 = pneg %p143
      %p150 = scmp.eq.s32.totalorder %s33, 1
      %p151 = por %p149, %p150
      %p152 = scmp.ne.s32.totalorder %s144, %s147
      %p153 = scmp.eq.s32.totalorder %s33, 0
      %p154 = por %p152, %p153
      %p155 = scmp.ne.s32.totalorder %s144, %s147
      %p156 = scmp.eq.s32.totalorder %s38, 1
      %p157 = por %p155, %p156
      %p158 = scmp.ne.s32.totalorder %s147, %s148
      %p159 = scmp.eq.s32.totalorder %s38, 0
      %p160 = por %p158, %p159
      %p161 = scmp.ne.s32.totalorder %s147, %s148
      %p162 = scmp.eq.s32.totalorder %s39, 1
      %p163 = por %p161, %p162
      %p165 = scmp.ne.s32.totalorder %s148, %s164
      %p166 = scmp.eq.s32.totalorder %s39, 0
      %p167 = por %p165, %p166
      %s168 = ssub.s32 %s41, %s48
      %p169 = scmp.eq.s32.totalorder %s168, 0
      %s171 = sadd.s32 %s170, 1
      %s172 = scalar_select %p169, %s170, %s171
      %p175 = pneg %p169
      %p176 = scmp.eq.s32.totalorder %s33, 1
      %p177 = por %p175, %p176
      %p178 = scmp.ne.s32.totalorder %s170, %s173
      %p179 = scmp.eq.s32.totalorder %s33, 0
      %p180 = por %p178, %p179
      %p181 = scmp.ne.s32.totalorder %s170, %s173
      %p182 = scmp.eq.s32.totalorder %s38, 1
      %p183 = por %p181, %p182
      %p184 = scmp.ne.s32.totalorder %s173, %s174
      %p185 = scmp.eq.s32.totalorder %s38, 0
      %p186 = por %p184, %p185
      %p187 = scmp.ne.s32.totalorder %s173, %s174
      %p188 = scmp.eq.s32.totalorder %s39, 1
      %p189 = por %p187, %p188
      %p191 = scmp.ne.s32.totalorder %s174, %s190
      %p192 = scmp.eq.s32.totalorder %s39, 0
      %p193 = por %p191, %p192
      %s194 = ssub.s32 %s41, %s48
      %p195 = scmp.eq.s32.totalorder %s194, 0
      %s197 = sadd.s32 %s196, 1
      %s198 = scalar_select %p195, %s196, %s197
      %p201 = pneg %p195
      %p202 = scmp.eq.s32.totalorder %s33, 1
      %p203 = por %p201, %p202
      %p204 = scmp.ne.s32.totalorder %s196, %s199
      %p205 = scmp.eq.s32.totalorder %s33, 0
      %p206 = por %p204, %p205
      %p207 = scmp.ne.s32.totalorder %s196, %s199
      %p208 = scmp.eq.s32.totalorder %s38, 1
      %p209 = por %p207, %p208
      %p210 = scmp.ne.s32.totalorder %s199, %s200
      %p211 = scmp.eq.s32.totalorder %s38, 0
      %p212 = por %p210, %p211
      %p213 = scmp.ne.s32.totalorder %s199, %s200
      %p214 = scmp.eq.s32.totalorder %s39, 1
      %p215 = por %p213, %p214
      %p217 = scmp.ne.s32.totalorder %s200, %s216
      %p218 = scmp.eq.s32.totalorder %s39, 0
      %p219 = por %p217, %p218
      %s220 = ssub.s32 %s41, %s48
      %p221 = scmp.eq.s32.totalorder %s220, 0
      %s223 = sadd.s32 %s222, 1
      %s224 = scalar_select %p221, %s222, %s223
      %p227 = pneg %p221
      %p228 = scmp.eq.s32.totalorder %s33, 1
      %p229 = por %p227, %p228
      %p230 = scmp.ne.s32.totalorder %s222, %s225
      %p231 = scmp.eq.s32.totalorder %s33, 0
      %p232 = por %p230, %p231
      %p233 = scmp.ne.s32.totalorder %s222, %s225
      %p234 = scmp.eq.s32.totalorder %s38, 1
      %p235 = por %p233, %p234
      %p236 = scmp.ne.s32.totalorder %s225, %s226
      %p237 = scmp.eq.s32.totalorder %s38, 0
      %p238 = por %p236, %p237
      %p239 = scmp.ne.s32.totalorder %s225, %s226
      %p240 = scmp.eq.s32.totalorder %s39, 1
      %p241 = por %p239, %p240
      %p243 = scmp.ne.s32.totalorder %s226, %s242
      %p244 = scmp.eq.s32.totalorder %s39, 0
      %p245 = por %p243, %p244
      %s246 = ssub.s32 %s41, %s48
      %p247 = scmp.eq.s32.totalorder %s246, 0
      %s249 = sadd.s32 %s248, 1
      %s250 = scalar_select %p247, %s248, %s249
      %p253 = pneg %p247
      %p254 = scmp.eq.s32.totalorder %s33, 1
      %p255 = por %p253, %p254
      %p256 = scmp.ne.s32.totalorder %s248, %s251
      %p257 = scmp.eq.s32.totalorder %s33, 0
      %p258 = por %p256, %p257
      %p259 = scmp.ne.s32.totalorder %s248, %s251
      %p260 = scmp.eq.s32.totalorder %s38, 1
      %p261 = por %p259, %p260
      %p262 = scmp.ne.s32.totalorder %s251, %s252
      %p263 = scmp.eq.s32.totalorder %s38, 0
      %p264 = por %p262, %p263
      %p265 = scmp.ne.s32.totalorder %s251, %s252
      %p266 = scmp.eq.s32.totalorder %s39, 1
      %p267 = por %p265, %p266
      %p269 = scmp.ne.s32.totalorder %s252, %s268
      %p270 = scmp.eq.s32.totalorder %s39, 0
      %p271 = por %p269, %p270
      %s272 = ssub.s32 %s41, %s48
      %p273 = scmp.eq.s32.totalorder %s272, 0
      %s275 = sadd.s32 %s274, 1
      %s276 = scalar_select %p273, %s274, %s275
      %p279 = pneg %p273
      %p280 = scmp.eq.s32.totalorder %s33, 1
      %p281 = por %p279, %p280
      %p282 = scmp.ne.s32.totalorder %s274, %s277
      %p283 = scmp.eq.s32.totalorder %s33, 0
      %p284 = por %p282, %p283
      %p285 = scmp.ne.s32.totalorder %s274, %s277
      %p286 = scmp.eq.s32.totalorder %s38, 1
      %p287 = por %p285, %p286
      %p288 = scmp.ne.s32.totalorder %s277, %s278
      %p289 = scmp.eq.s32.totalorder %s38, 0
      %p290 = por %p288, %p289
      %p291 = scmp.ne.s32.totalorder %s277, %s278
      %p292 = scmp.eq.s32.totalorder %s39, 1
      %p293 = por %p291, %p292
      %p295 = scmp.ne.s32.totalorder %s278, %s294
      %p296 = scmp.eq.s32.totalorder %s39, 0
      %p297 = por %p295, %p296
      %s298 = ssub.s32 %s41, %s48
      %p299 = scmp.eq.s32.totalorder %s298, 0
      %s301 = sadd.s32 %s300, 1
      %s302 = scalar_select %p299, %s300, %s301
      %p305 = pneg %p299
      %p306 = scmp.eq.s32.totalorder %s33, 1
      %p307 = por %p305, %p306
      %p308 = scmp.ne.s32.totalorder %s300, %s303
      %p309 = scmp.eq.s32.totalorder %s33, 0
      %p310 = por %p308, %p309
      %p311 = scmp.ne.s32.totalorder %s300, %s303
      %p312 = scmp.eq.s32.totalorder %s38, 1
      %p313 = por %p311, %p312
      %p314 = scmp.ne.s32.totalorder %s303, %s304
      %p315 = scmp.eq.s32.totalorder %s38, 0
      %p316 = por %p314, %p315
      %p317 = scmp.ne.s32.totalorder %s303, %s304
      %p318 = scmp.eq.s32.totalorder %s39, 1
      %p319 = por %p317, %p318
      %p321 = scmp.ne.s32.totalorder %s304, %s320
      %p322 = scmp.eq.s32.totalorder %s39, 0
      %p323 = por %p321, %p322
      %s324 = ssub.s32 %s41, %s48
      %p325 = scmp.eq.s32.totalorder %s324, 0
      %s327 = sadd.s32 %s326, 1
      %s328 = scalar_select %p325, %s326, %s327
      %p331 = pneg %p325
      %p332 = scmp.eq.s32.totalorder %s33, 1
      %p333 = por %p331, %p332
      %p334 = scmp.ne.s32.totalorder %s326, %s329
      %p335 = scmp.eq.s32.totalorder %s33, 0
      %p336 = por %p334, %p335
      %p337 = scmp.ne.s32.totalorder %s326, %s329
      %p338 = scmp.eq.s32.totalorder %s38, 1
      %p339 = por %p337, %p338
      %p340 = scmp.ne.s32.totalorder %s329, %s330
      %p341 = scmp.eq.s32.totalorder %s38, 0
      %p342 = por %p340, %p341
      %p343 = scmp.ne.s32.totalorder %s329, %s330
      %p344 = scmp.eq.s32.totalorder %s39, 1
      %p345 = por %p343, %p344
      %p347 = scmp.ne.s32.totalorder %s330, %s346
      %p348 = scmp.eq.s32.totalorder %s39, 0
      %p349 = por %p347, %p348
      %s350 = ssub.s32 %s41, %s48
      %p351 = scmp.eq.s32.totalorder %s350, 0
      %s353 = sadd.s32 %s352, 1
      %s354 = scalar_select %p351, %s352, %s353
      %p357 = pneg %p351
      %p358 = scmp.eq.s32.totalorder %s33, 1
      %p359 = por %p357, %p358
      %p360 = scmp.ne.s32.totalorder %s352, %s355
      %p361 = scmp.eq.s32.totalorder %s33, 0
      %p362 = por %p360, %p361
      %p363 = scmp.ne.s32.totalorder %s352, %s355
      %p364 = scmp.eq.s32.totalorder %s38, 1
      %p365 = por %p363, %p364
      %p366 = scmp.ne.s32.totalorder %s355, %s356
      %p367 = scmp.eq.s32.totalorder %s38, 0
      %p368 = por %p366, %p367
      %p369 = scmp.ne.s32.totalorder %s355, %s356
      %p370 = scmp.eq.s32.totalorder %s39, 1
      %p371 = por %p369, %p370
      %p373 = scmp.ne.s32.totalorder %s356, %s372
      %p374 = scmp.eq.s32.totalorder %s39, 0
      %p375 = por %p373, %p374
      %s376 = ssub.s32 %s41, %s48
      %p377 = scmp.eq.s32.totalorder %s376, 0
      %s379 = sadd.s32 %s378, 1
      %s380 = scalar_select %p377, %s378, %s379
      %p383 = pneg %p377
      %p384 = scmp.eq.s32.totalorder %s33, 1
      %p385 = por %p383, %p384
      %p386 = scmp.ne.s32.totalorder %s378, %s381
      %p387 = scmp.eq.s32.totalorder %s33, 0
      %p388 = por %p386, %p387
      %p389 = scmp.ne.s32.totalorder %s378, %s381
      %p390 = scmp.eq.s32.totalorder %s38, 1
      %p391 = por %p389, %p390
      %p392 = scmp.ne.s32.totalorder %s381, %s382
      %p393 = scmp.eq.s32.totalorder %s38, 0
      %p394 = por %p392, %p393
      %p395 = scmp.ne.s32.totalorder %s381, %s382
      %p396 = scmp.eq.s32.totalorder %s39, 1
      %p397 = por %p395, %p396
      %p399 = scmp.ne.s32.totalorder %s382, %s398
      %p400 = scmp.eq.s32.totalorder %s39, 0
      %p401 = por %p399, %p400
      %s402 = ssub.s32 %s41, %s48
      %p403 = scmp.eq.s32.totalorder %s402, 0
      %s405 = sadd.s32 %s404, 1
      %s406 = scalar_select %p403, %s404, %s405
      %p409 = pneg %p403
      %p410 = scmp.eq.s32.totalorder %s33, 1
      %p411 = por %p409, %p410
      %p412 = scmp.ne.s32.totalorder %s404, %s407
      %p413 = scmp.eq.s32.totalorder %s33, 0
      %p414 = por %p412, %p413
      %p415 = scmp.ne.s32.totalorder %s404, %s407
      %p416 = scmp.eq.s32.totalorder %s38, 1
      %p417 = por %p415, %p416
      %p418 = scmp.ne.s32.totalorder %s407, %s408
      %p419 = scmp.eq.s32.totalorder %s38, 0
      %p420 = por %p418, %p419
      %p421 = scmp.ne.s32.totalorder %s407, %s408
      %p422 = scmp.eq.s32.totalorder %s39, 1
      %p423 = por %p421, %p422
      %p425 = scmp.ne.s32.totalorder %s408, %s424
      %p426 = scmp.eq.s32.totalorder %s39, 0
      %p427 = por %p425, %p426
      %s428 = ssub.s32 %s41, %s48
      %p429 = scmp.eq.s32.totalorder %s428, 0
      %s431 = sadd.s32 %s430, 1
      %s432 = scalar_select %p429, %s430, %s431
      %p435 = pneg %p429
      %p436 = scmp.eq.s32.totalorder %s33, 1
      %p437 = por %p435, %p436
      %p438 = scmp.ne.s32.totalorder %s430, %s433
      %p439 = scmp.eq.s32.totalorder %s33, 0
      %p440 = por %p438, %p439
      %p441 = scmp.ne.s32.totalorder %s430, %s433
      %p442 = scmp.eq.s32.totalorder %s38, 1
      %p443 = por %p441, %p442
      %p444 = scmp.ne.s32.totalorder %s433, %s434
      %p445 = scmp.eq.s32.totalorder %s38, 0
      %p446 = por %p444, %p445
      %p447 = scmp.ne.s32.totalorder %s433, %s434
      %p448 = scmp.eq.s32.totalorder %s39, 1
      %p449 = por %p447, %p448
      %p451 = scmp.ne.s32.totalorder %s434, %s450
      %p452 = scmp.eq.s32.totalorder %s39, 0
      %p453 = por %p451, %p452
      %s454 = ssub.s32 %s41, %s48
      %p455 = scmp.eq.s32.totalorder %s454, 0
      %s457 = sadd.s32 %s456, 1
      %s458 = scalar_select %p455, %s456, %s457
      %p461 = pneg %p455
      %p462 = scmp.eq.s32.totalorder %s33, 1
      %p463 = por %p461, %p462
      %p464 = scmp.ne.s32.totalorder %s456, %s459
      %p465 = scmp.eq.s32.totalorder %s33, 0
      %p466 = por %p464, %p465
      %p467 = scmp.ne.s32.totalorder %s456, %s459
      %p468 = scmp.eq.s32.totalorder %s38, 1
      %p469 = por %p467, %p468
      %p470 = scmp.ne.s32.totalorder %s459, %s460
      %p471 = scmp.eq.s32.totalorder %s38, 0
      %p472 = por %p470, %p471
      %p473 = scmp.ne.s32.totalorder %s459, %s460
      %p474 = scmp.eq.s32.totalorder %s39, 1
      %p475 = por %p473, %p474
      %p477 = scmp.ne.s32.totalorder %s460, %s476
      %p478 = scmp.eq.s32.totalorder %s39, 0
      %p479 = por %p477, %p478
      %s480 = ssub.s32 %s41, %s48
      %p481 = scmp.eq.s32.totalorder %s480, 0
      %s483 = sadd.s32 %s482, 1
      %s484 = scalar_select %p481, %s482, %s483
      %p487 = pneg %p481
      %p488 = scmp.eq.s32.totalorder %s33, 1
      %p489 = por %p487, %p488
      %p490 = scmp.ne.s32.totalorder %s482, %s485
      %p491 = scmp.eq.s32.totalorder %s33, 0
      %p492 = por %p490, %p491
      %p493 = scmp.ne.s32.totalorder %s482, %s485
      %p494 = scmp.eq.s32.totalorder %s38, 1
      %p495 = por %p493, %p494
      %p496 = scmp.ne.s32.totalorder %s485, %s486
      %p497 = scmp.eq.s32.totalorder %s38, 0
      %p498 = por %p496, %p497
      %p499 = scmp.ne.s32.totalorder %s485, %s486
      %p500 = scmp.eq.s32.totalorder %s39, 1
      %p501 = por %p499, %p500
      %p503 = scmp.ne.s32.totalorder %s486, %s502
      %p504 = scmp.eq.s32.totalorder %s39, 0
      %p505 = por %p503, %p504
      %s506 = ssub.s32 %s41, %s48
      %p507 = scmp.eq.s32.totalorder %s506, 0
      %s509 = sadd.s32 %s508, 1
      %s510 = scalar_select %p507, %s508, %s509
      %p513 = pneg %p507
      %p514 = scmp.eq.s32.totalorder %s33, 1
      %p515 = por %p513, %p514
      %p516 = scmp.ne.s32.totalorder %s508, %s511
      %p517 = scmp.eq.s32.totalorder %s33, 0
      %p518 = por %p516, %p517
      %p519 = scmp.ne.s32.totalorder %s508, %s511
      %p520 = scmp.eq.s32.totalorder %s38, 1
      %p521 = por %p519, %p520
      %p522 = scmp.ne.s32.totalorder %s511, %s512
      %p523 = scmp.eq.s32.totalorder %s38, 0
      %p524 = por %p522, %p523
      %p525 = scmp.ne.s32.totalorder %s511, %s512
      %p526 = scmp.eq.s32.totalorder %s39, 1
      %p527 = por %p525, %p526
      %p529 = scmp.ne.s32.totalorder %s512, %s528
      %p530 = scmp.eq.s32.totalorder %s39, 0
      %p531 = por %p529, %p530
      %s532 = ssub.s32 %s41, %s48
      %p533 = scmp.eq.s32.totalorder %s532, 0
      %s535 = sadd.s32 %s534, 1
      %s536 = scalar_select %p533, %s534, %s535
      %p539 = pneg %p533
      %p540 = scmp.eq.s32.totalorder %s33, 1
      %p541 = por %p539, %p540
      %p542 = scmp.ne.s32.totalorder %s534, %s537
      %p543 = scmp.eq.s32.totalorder %s33, 0
      %p544 = por %p542, %p543
      %p545 = scmp.ne.s32.totalorder %s534, %s537
      %p546 = scmp.eq.s32.totalorder %s38, 1
      %p547 = por %p545, %p546
      %p548 = scmp.ne.s32.totalorder %s537, %s538
      %p549 = scmp.eq.s32.totalorder %s38, 0
      %p550 = por %p548, %p549
      %p551 = scmp.ne.s32.totalorder %s537, %s538
      %p552 = scmp.eq.s32.totalorder %s39, 1
      %p553 = por %p551, %p552
      %p555 = scmp.ne.s32.totalorder %s538, %s554
      %p556 = scmp.eq.s32.totalorder %s39, 0
      %p557 = por %p555, %p556
      %s559 = sadd.s32 %s558, 1
      %p562 = scmp.eq.s32.totalorder %s33, 1
      %p563 = scmp.ne.s32.totalorder %s558, %s560
      %p564 = scmp.eq.s32.totalorder %s33, 0
      %p565 = por %p563, %p564
      %p566 = scmp.ne.s32.totalorder %s558, %s560
      %p567 = scmp.eq.s32.totalorder %s38, 1
      %p568 = por %p566, %p567
      %p569 = scmp.ne.s32.totalorder %s560, %s561
      %p570 = scmp.eq.s32.totalorder %s38, 0
      %p571 = por %p569, %p570
      %p572 = scmp.ne.s32.totalorder %s560, %s561
      %p573 = scmp.eq.s32.totalorder %s39, 1
      %p574 = por %p572, %p573
      %p576 = scmp.ne.s32.totalorder %s561, %s575
      %p577 = scmp.eq.s32.totalorder %s39, 0
      %p578 = por %p576, %p577
      %s580 = sadd.s32 %s579, 1
      %p583 = scmp.eq.s32.totalorder %s33, 1
      %p584 = scmp.ne.s32.totalorder %s579, %s581
      %p585 = scmp.eq.s32.totalorder %s33, 0
      %p586 = por %p584, %p585
      %p587 = scmp.ne.s32.totalorder %s579, %s581
      %p588 = scmp.eq.s32.totalorder %s38, 1
      %p589 = por %p587, %p588
      %p590 = scmp.ne.s32.totalorder %s581, %s582
      %p591 = scmp.eq.s32.totalorder %s38, 0
      %p592 = por %p590, %p591
      %p593 = scmp.ne.s32.totalorder %s581, %s582
      %p594 = scmp.eq.s32.totalorder %s39, 1
      %p595 = por %p593, %p594
      %p597 = scmp.ne.s32.totalorder %s582, %s596
      %p598 = scmp.eq.s32.totalorder %s39, 0
      %p599 = por %p597, %p598
      %s601 = sadd.s32 %s600, 1
      %p604 = scmp.eq.s32.totalorder %s33, 1
      %p605 = scmp.ne.s32.totalorder %s600, %s602
      %p606 = scmp.eq.s32.totalorder %s33, 0
      %p607 = por %p605, %p606
      %p608 = scmp.ne.s32.totalorder %s600, %s602
      %p609 = scmp.eq.s32.totalorder %s38, 1
      %p610 = por %p608, %p609
      %p611 = scmp.ne.s32.totalorder %s602, %s603
      %p612 = scmp.eq.s32.totalorder %s38, 0
      %p613 = por %p611, %p612
      %p614 = scmp.ne.s32.totalorder %s602, %s603
      %p615 = scmp.eq.s32.totalorder %s39, 1
      %p616 = por %p614, %p615
      %p618 = scmp.ne.s32.totalorder %s603, %s617
      %p619 = scmp.eq.s32.totalorder %s39, 0
      %p620 = por %p618, %p619
      %s622 = sadd.s32 %s621, 1
      %p625 = scmp.eq.s32.totalorder %s33, 1
      %p626 = scmp.ne.s32.totalorder %s621, %s623
      %p627 = scmp.eq.s32.totalorder %s33, 0
      %p628 = por %p626, %p627
      %p629 = scmp.ne.s32.totalorder %s621, %s623
      %p630 = scmp.eq.s32.totalorder %s38, 1
      %p631 = por %p629, %p630
      %p632 = scmp.ne.s32.totalorder %s623, %s624
      %p633 = scmp.eq.s32.totalorder %s38, 0
      %p634 = por %p632, %p633
      %p635 = scmp.ne.s32.totalorder %s623, %s624
      %p636 = scmp.eq.s32.totalorder %s39, 1
      %p637 = por %p635, %p636
      %p639 = scmp.ne.s32.totalorder %s624, %s638
      %p640 = scmp.eq.s32.totalorder %s39, 0
      %p641 = por %p639, %p640
      %s642 = ssub.s32 %s40, %s52
      %p643 = scmp.eq.s32.totalorder %s642, 0
      %s645 = sadd.s32 %s644, 1
      %s646 = scalar_select %p643, %s644, %s645
      %p649 = pneg %p643
      %p650 = scmp.eq.s32.totalorder %s33, 1
      %p651 = por %p649, %p650
      %p652 = scmp.ne.s32.totalorder %s644, %s647
      %p653 = scmp.eq.s32.totalorder %s33, 0
      %p654 = por %p652, %p653
      %p655 = scmp.ne.s32.totalorder %s644, %s647
      %p656 = scmp.eq.s32.totalorder %s38, 1
      %p657 = por %p655, %p656
      %p658 = scmp.ne.s32.totalorder %s647, %s648
      %p659 = scmp.eq.s32.totalorder %s38, 0
      %p660 = por %p658, %p659
      %p661 = scmp.ne.s32.totalorder %s647, %s648
      %p662 = scmp.eq.s32.totalorder %s39, 1
      %p663 = por %p661, %p662
      %p665 = scmp.ne.s32.totalorder %s648, %s664
      %p666 = scmp.eq.s32.totalorder %s39, 0
      %p667 = por %p665, %p666
      %p668 = scmp.le.s32.totalorder 1, %s33
      %p669 = scmp.lt.s32.totalorder %s33, 3
      %p670 = pnand %p668, %p669
      %p671 = pneg %p670
      // Predicated region
      $region9: #{tpu_custom_call.1} parent=5 // pred_check
        _
      $region10: #{tpu_custom_call.1} parent=5 // pred_check_branch
        %673 = sbr.rel (%p670) target = $region12
      $region11: #{tpu_custom_call.1} parent=5 // pred_region
        %s674 = ssub.s32 %s33, 1
        // Predicated region
        $region13: #{tpu_custom_call.1} parent=11 // pred_check
          %p675 = pneg %p71
        $region14: #{tpu_custom_call.1} parent=11 // pred_check_branch
          %677 = sbr.rel (%p675) target = $region16
        $region15: #{tpu_custom_call.1} parent=11 // pred_region
          %s678 = smul.u32 2, %s42
          %p679 = scmp.lt.s32.totalorder %s678, 1
          %s680 = scalar_select %p679, %s678, 1
          %s681 = smul.addr %s680, 2
          %s682 = smul.addr %s681, 8
          %s683 = scalar_lea.vmem %s0, %s682
          %s684 = smul.u32 2, %s42
        $region16: #{tpu_custom_call.1} parent=11 // pred_fallthru
          _
        // Predicated region
        $region17: #{tpu_custom_call.1} parent=11 // pred_check
          %p685 = pneg %p92
        $region18: #{tpu_custom_call.1} parent=11 // pred_check_branch
          %687 = sbr.rel (%p685) target = $region20
        $region19: #{tpu_custom_call.1} parent=11 // pred_region
          _
        $region20: #{tpu_custom_call.1} parent=11 // pred_fallthru
          _
        // Predicated region
        $region21: #{tpu_custom_call.1} parent=11 // pred_check
          %p688 = pneg %p113
        $region22: #{tpu_custom_call.1} parent=11 // pred_check_branch
          %690 = sbr.rel (%p688) target = $region24
        $region23: #{tpu_custom_call.1} parent=11 // pred_region
          %s692 = ssub.s32 256, 256
          %693 = vsyncadd [#allocation4], %s692
          %s694 = sshll.u32 [#allocation3], 4
          %s695 = int_to_ptr.vmem [resolvable:$true] %s694
          %700 = dma.hbm_to_vmem [thread:$0]  %s2, 256, %s695, [#allocation4], 128, 128, 8
        $region24: #{tpu_custom_call.1} parent=11 // pred_fallthru
          _
        // Predicated region
        $region25: #{tpu_custom_call.1} parent=11 // pred_check
          %p701 = pneg %p134
        $region26: #{tpu_custom_call.1} parent=11 // pred_check_branch
          %703 = sbr.rel (%p701) target = $region28
        $region27: #{tpu_custom_call.1} parent=11 // pred_region
          %s705 = ssub.s32 256, 256
          %706 = vsyncadd [#allocation7], %s705
          %s707 = sshll.u32 [#allocation6], 4
          %s708 = int_to_ptr.vmem [resolvable:$true] %s707
          %713 = dma.hbm_to_vmem [thread:$0]  %s3, 256, %s708, [#allocation7], 128, 128, 8
        $region28: #{tpu_custom_call.1} parent=11 // pred_fallthru
          _
        // Predicated region
        $region29: #{tpu_custom_call.1} parent=11 // pred_check
          %p714 = pneg %p571
        $region30: #{tpu_custom_call.1} parent=11 // pred_check_branch
          %716 = sbr.rel (%p714) target = $region32
        $region31: #{tpu_custom_call.1} parent=11 // pred_region
          _
        $region32: #{tpu_custom_call.1} parent=11 // pred_fallthru
          _
        // Predicated region
        $region33: #{tpu_custom_call.1} parent=11 // pred_check
          %p717 = pneg %p592
        $region34: #{tpu_custom_call.1} parent=11 // pred_check_branch
          %719 = sbr.rel (%p717) target = $region36
        $region35: #{tpu_custom_call.1} parent=11 // pred_region
          _
        $region36: #{tpu_custom_call.1} parent=11 // pred_fallthru
          _
        // Predicated region
        $region37: #{tpu_custom_call.1} parent=11 // pred_check
          %p720 = pneg %p613
        $region38: #{tpu_custom_call.1} parent=11 // pred_check_branch
          %722 = sbr.rel (%p720) target = $region40
        $region39: #{tpu_custom_call.1} parent=11 // pred_region
          _
        $region40: #{tpu_custom_call.1} parent=11 // pred_fallthru
          _
        // Predicated region
        $region41: #{tpu_custom_call.1} parent=11 // pred_check
          %p723 = pneg %p634
        $region42: #{tpu_custom_call.1} parent=11 // pred_check_branch
          %725 = sbr.rel (%p723) target = $region44
        $region43: #{tpu_custom_call.1} parent=11 // pred_region
          _
        $region44: #{tpu_custom_call.1} parent=11 // pred_fallthru
          _
      $region12: #{tpu_custom_call.1} parent=5 // pred_fallthru
        _
      %p726 = scmp.lt.s32.totalorder %s33, 2
      // Predicated region
      $region45: #{tpu_custom_call.1} parent=5 // pred_check
        %p727 = pneg %p726
      $region46: #{tpu_custom_call.1} parent=5 // pred_check_branch
        %729 = sbr.rel (%p727) target = $region48
      $region47: #{tpu_custom_call.1} parent=5 // pred_region
        // Predicated region
        $region49: #{tpu_custom_call.1} parent=47 // pred_check
          %p730 = pneg %p154
        $region50: #{tpu_custom_call.1} parent=47 // pred_check_branch
          %732 = sbr.rel (%p730) target = $region52
        $region51: #{tpu_custom_call.1} parent=47 // pred_region
          %p733 = scmp.lt.s32.totalorder %s41, 1
          %s734 = scalar_select %p733, %s41, 1
          %s735 = scalar_lea.vmem %s4, %s734
        $region52: #{tpu_custom_call.1} parent=47 // pred_fallthru
          _
        // Predicated region
        $region53: #{tpu_custom_call.1} parent=47 // pred_check
          %p736 = pneg %p180
        $region54: #{tpu_custom_call.1} parent=47 // pred_check_branch
          %738 = sbr.rel (%p736) target = $region56
        $region55: #{tpu_custom_call.1} parent=47 // pred_region
          %p739 = scmp.lt.s32.totalorder %s41, 1
          %s740 = scalar_select %p739, %s41, 1
          %s741 = scalar_lea.vmem %s5, %s740
        $region56: #{tpu_custom_call.1} parent=47 // pred_fallthru
          _
        // Predicated region
        $region57: #{tpu_custom_call.1} parent=47 // pred_check
          %p742 = pneg %p206
        $region58: #{tpu_custom_call.1} parent=47 // pred_check_branch
          %744 = sbr.rel (%p742) target = $region60
        $region59: #{tpu_custom_call.1} parent=47 // pred_region
          %p745 = scmp.lt.s32.totalorder %s41, 1
          %s746 = scalar_select %p745, %s41, 1
          %s747 = smul.addr %s746, 8
          %s748 = smul.addr %s747, 4
          %s749 = scalar_lea.vmem %s6, %s748
        $region60: #{tpu_custom_call.1} parent=47 // pred_fallthru
          _
        // Predicated region
        $region61: #{tpu_custom_call.1} parent=47 // pred_check
          %p750 = pneg %p232
        $region62: #{tpu_custom_call.1} parent=47 // pred_check_branch
          %752 = sbr.rel (%p750) target = $region64
        $region63: #{tpu_custom_call.1} parent=47 // pred_region
          %p753 = scmp.lt.s32.totalorder %s41, 1
          %s754 = scalar_select %p753, %s41, 1
          %s755 = smul.addr %s754, 8
          %s756 = smul.addr %s755, 4
          %s757 = scalar_lea.vmem %s7, %s756
        $region64: #{tpu_custom_call.1} parent=47 // pred_fallthru
          _
        // Predicated region
        $region65: #{tpu_custom_call.1} parent=47 // pred_check
          %p758 = pneg %p258
        $region66: #{tpu_custom_call.1} parent=47 // pred_check_branch
          %760 = sbr.rel (%p758) target = $region68
        $region67: #{tpu_custom_call.1} parent=47 // pred_region
          %p761 = scmp.lt.s32.totalorder %s41, 1
          %s762 = scalar_select %p761, %s41, 1
          %s763 = smul.addr %s762, 8
          %s764 = smul.addr %s763, 4
          %s765 = scalar_lea.vmem %s8, %s764
        $region68: #{tpu_custom_call.1} parent=47 // pred_fallthru
          _
        // Predicated region
        $region69: #{tpu_custom_call.1} parent=47 // pred_check
          %p766 = pneg %p284
        $region70: #{tpu_custom_call.1} parent=47 // pred_check_branch
          %768 = sbr.rel (%p766) target = $region72
        $region71: #{tpu_custom_call.1} parent=47 // pred_region
          %p769 = scmp.lt.s32.totalorder %s41, 1
          %s770 = scalar_select %p769, %s41, 1
          %s771 = smul.addr %s770, 8
          %s772 = smul.addr %s771, 4
          %s773 = scalar_lea.vmem %s9, %s772
        $region72: #{tpu_custom_call.1} parent=47 // pred_fallthru
          _
        // Predicated region
        $region73: #{tpu_custom_call.1} parent=47 // pred_check
          %p774 = pneg %p310
        $region74: #{tpu_custom_call.1} parent=47 // pred_check_branch
          %776 = sbr.rel (%p774) target = $region76
        $region75: #{tpu_custom_call.1} parent=47 // pred_region
          %p777 = scmp.lt.s32.totalorder %s41, 1
          %s778 = scalar_select %p777, %s41, 1
          %s779 = smul.addr %s778, 8
          %s780 = smul.addr %s779, 4
          %s781 = scalar_lea.vmem %s10, %s780
        $region76: #{tpu_custom_call.1} parent=47 // pred_fallthru
          _
        // Predicated region
        $region77: #{tpu_custom_call.1} parent=47 // pred_check
          %p782 = pneg %p336
        $region78: #{tpu_custom_call.1} parent=47 // pred_check_branch
          %784 = sbr.rel (%p782) target = $region80
        $region79: #{tpu_custom_call.1} parent=47 // pred_region
          %p785 = scmp.lt.s32.totalorder %s41, 1
          %s786 = scalar_select %p785, %s41, 1
          %s787 = scalar_lea.vmem %s11, %s786
        $region80: #{tpu_custom_call.1} parent=47 // pred_fallthru
          _
        // Predicated region
        $region81: #{tpu_custom_call.1} parent=47 // pred_check
          %p788 = pneg %p362
        $region82: #{tpu_custom_call.1} parent=47 // pred_check_branch
          %790 = sbr.rel (%p788) target = $region84
        $region83: #{tpu_custom_call.1} parent=47 // pred_region
          %p791 = scmp.lt.s32.totalorder %s41, 1
          %s792 = scalar_select %p791, %s41, 1
          %s793 = scalar_lea.vmem %s12, %s792
        $region84: #{tpu_custom_call.1} parent=47 // pred_fallthru
          _
        // Predicated region
        $region85: #{tpu_custom_call.1} parent=47 // pred_check
          %p794 = pneg %p388
        $region86: #{tpu_custom_call.1} parent=47 // pred_check_branch
          %796 = sbr.rel (%p794) target = $region88
        $region87: #{tpu_custom_call.1} parent=47 // pred_region
          %p797 = scmp.lt.s32.totalorder %s41, 1
          %s798 = scalar_select %p797, %s41, 1
          %s799 = scalar_lea.vmem %s13, %s798
        $region88: #{tpu_custom_call.1} parent=47 // pred_fallthru
          _
        // Predicated region
        $region89: #{tpu_custom_call.1} parent=47 // pred_check
          %p800 = pneg %p414
        $region90: #{tpu_custom_call.1} parent=47 // pred_check_branch
          %802 = sbr.rel (%p800) target = $region92
        $region91: #{tpu_custom_call.1} parent=47 // pred_region
          %p803 = scmp.lt.s32.totalorder %s41, 1
          %s804 = scalar_select %p803, %s41, 1
          %s805 = smul.addr %s804, 8
          %s806 = smul.addr %s805, 4
          %s807 = scalar_lea.vmem %s14, %s806
        $region92: #{tpu_custom_call.1} parent=47 // pred_fallthru
          _
        // Predicated region
        $region93: #{tpu_custom_call.1} parent=47 // pred_check
          %p808 = pneg %p440
        $region94: #{tpu_custom_call.1} parent=47 // pred_check_branch
          %810 = sbr.rel (%p808) target = $region96
        $region95: #{tpu_custom_call.1} parent=47 // pred_region
          %p811 = scmp.lt.s32.totalorder %s41, 1
          %s812 = scalar_select %p811, %s41, 1
          %s813 = smul.addr %s812, 4
          %s814 = smul.addr %s813, 4
          %s815 = scalar_lea.vmem %s15, %s814
        $region96: #{tpu_custom_call.1} parent=47 // pred_fallthru
          _
        // Predicated region
        $region97: #{tpu_custom_call.1} parent=47 // pred_check
          %p816 = pneg %p466
        $region98: #{tpu_custom_call.1} parent=47 // pred_check_branch
          %818 = sbr.rel (%p816) target = $region100
        $region99: #{tpu_custom_call.1} parent=47 // pred_region
          %p819 = scmp.lt.s32.totalorder %s41, 1
          %s820 = scalar_select %p819, %s41, 1
          %s821 = scalar_lea.vmem %s16, %s820
        $region100: #{tpu_custom_call.1} parent=47 // pred_fallthru
          _
        // Predicated region
        $region101: #{tpu_custom_call.1} parent=47 // pred_check
          %p822 = pneg %p492
        $region102: #{tpu_custom_call.1} parent=47 // pred_check_branch
          %824 = sbr.rel (%p822) target = $region104
        $region103: #{tpu_custom_call.1} parent=47 // pred_region
          %p825 = scmp.lt.s32.totalorder %s41, 1
          %s826 = scalar_select %p825, %s41, 1
          %s827 = smul.addr %s826, 16
          %s828 = smul.addr %s827, 4
          %s829 = scalar_lea.vmem %s17, %s828
        $region104: #{tpu_custom_call.1} parent=47 // pred_fallthru
          _
        // Predicated region
        $region105: #{tpu_custom_call.1} parent=47 // pred_check
          %p830 = pneg %p518
        $region106: #{tpu_custom_call.1} parent=47 // pred_check_branch
          %832 = sbr.rel (%p830) target = $region108
        $region107: #{tpu_custom_call.1} parent=47 // pred_region
          %p833 = scmp.lt.s32.totalorder %s41, 1
          %s834 = scalar_select %p833, %s41, 1
          %s835 = smul.addr %s834, 4
          %s836 = smul.addr %s835, 4
          %s837 = scalar_lea.vmem %s18, %s836
        $region108: #{tpu_custom_call.1} parent=47 // pred_fallthru
          _
        // Predicated region
        $region109: #{tpu_custom_call.1} parent=47 // pred_check
          %p838 = pneg %p544
        $region110: #{tpu_custom_call.1} parent=47 // pred_check_branch
          %840 = sbr.rel (%p838) target = $region112
        $region111: #{tpu_custom_call.1} parent=47 // pred_region
          %p841 = scmp.lt.s32.totalorder %s41, 1
          %s842 = scalar_select %p841, %s41, 1
          %s843 = scalar_lea.vmem %s19, %s842
        $region112: #{tpu_custom_call.1} parent=47 // pred_fallthru
          _
      $region48: #{tpu_custom_call.1} parent=5 // pred_fallthru
        _
      %p844 = scmp.le.s32.totalorder 1, %s33
      %p845 = scmp.lt.s32.totalorder %s33, 3
      %p846 = pnand %p844, %p845
      %p847 = pneg %p846
      // Predicated region
      $region113: #{tpu_custom_call.1} parent=5 // pred_check
        _
      $region114: #{tpu_custom_call.1} parent=5 // pred_check_branch
        %849 = sbr.rel (%p846) target = $region116
      $region115: #{tpu_custom_call.1} parent=5 // pred_region
        %s850 = ssub.s32 %s33, 1
        // Predicated region
        $region117: #{tpu_custom_call.1} parent=115 // pred_check
          %p851 = pneg %p113
        $region118: #{tpu_custom_call.1} parent=115 // pred_check_branch
          %853 = sbr.rel (%p851) target = $region120
        $region119: #{tpu_custom_call.1} parent=115 // pred_region
          %854 = dma.done [#allocation4], 256
        $region120: #{tpu_custom_call.1} parent=115 // pred_fallthru
          _
        // Predicated region
        $region121: #{tpu_custom_call.1} parent=115 // pred_check
          %p855 = pneg %p134
        $region122: #{tpu_custom_call.1} parent=115 // pred_check_branch
          %857 = sbr.rel (%p855) target = $region124
        $region123: #{tpu_custom_call.1} parent=115 // pred_region
          %858 = dma.done [#allocation7], 256
        $region124: #{tpu_custom_call.1} parent=115 // pred_fallthru
          _
        %s859 = smul.u32 2, %s42
        %p860 = scmp.lt.s32.totalorder %s859, 1
        %s861 = scalar_select %p860, %s859, 1
        %s862 = smul.addr %s861, 2
        %s863 = smul.addr %s862, 8
        %s864 = scalar_lea.vmem %s0, %s863
        %p865 = pneg %p71
        %p866 = pneg %p68
        %p867 = pneg %p92
        %p868 = pneg %p89
        %p869 = pneg %p113
        %p870 = pneg %p110
        %p871 = pneg %p134
        %p872 = pneg %p131
        %p873 = scmp.lt.s32.totalorder %s43, 1
        %s874 = scalar_select %p873, %s43, 1
        %s875 = scalar_lea.vmem %s4, %s874
        %p876 = pneg %p160
        %p877 = pneg %p157
        %p878 = scmp.lt.s32.totalorder %s43, 1
        %s879 = scalar_select %p878, %s43, 1
        %s880 = scalar_lea.vmem %s5, %s879
        %p881 = pneg %p186
        %p882 = pneg %p183
        %p883 = scmp.lt.s32.totalorder %s43, 1
        %s884 = scalar_select %p883, %s43, 1
        %s885 = smul.addr %s884, 8
        %s886 = smul.addr %s885, 4
        %s887 = scalar_lea.vmem %s6, %s886
        %p888 = pneg %p212
        %p889 = pneg %p209
        %p890 = scmp.lt.s32.totalorder %s43, 1
        %s891 = scalar_select %p890, %s43, 1
        %s892 = smul.addr %s891, 8
        %s893 = smul.addr %s892, 4
        %s894 = scalar_lea.vmem %s7, %s893
        %p895 = pneg %p238
        %p896 = pneg %p235
        %p897 = scmp.lt.s32.totalorder %s43, 1
        %s898 = scalar_select %p897, %s43, 1
        %s899 = smul.addr %s898, 8
        %s900 = smul.addr %s899, 4
        %s901 = scalar_lea.vmem %s8, %s900
        %p902 = pneg %p264
        %p903 = pneg %p261
        %p904 = scmp.lt.s32.totalorder %s43, 1
        %s905 = scalar_select %p904, %s43, 1
        %s906 = smul.addr %s905, 8
        %s907 = smul.addr %s906, 4
        %s908 = scalar_lea.vmem %s9, %s907
        %p909 = pneg %p290
        %p910 = pneg %p287
        %p911 = scmp.lt.s32.totalorder %s43, 1
        %s912 = scalar_select %p911, %s43, 1
        %s913 = smul.addr %s912, 8
        %s914 = smul.addr %s913, 4
        %s915 = scalar_lea.vmem %s10, %s914
        %p916 = pneg %p316
        %p917 = pneg %p313
        %p918 = scmp.lt.s32.totalorder %s43, 1
        %s919 = scalar_select %p918, %s43, 1
        %s920 = scalar_lea.vmem %s11, %s919
        %p921 = pneg %p342
        %p922 = pneg %p339
        %p923 = scmp.lt.s32.totalorder %s43, 1
        %s924 = scalar_select %p923, %s43, 1
        %s925 = scalar_lea.vmem %s12, %s924
        %p926 = pneg %p368
        %p927 = pneg %p365
        %p928 = scmp.lt.s32.totalorder %s43, 1
        %s929 = scalar_select %p928, %s43, 1
        %s930 = scalar_lea.vmem %s13, %s929
        %p931 = pneg %p394
        %p932 = pneg %p391
        %p933 = scmp.lt.s32.totalorder %s43, 1
        %s934 = scalar_select %p933, %s43, 1
        %s935 = smul.addr %s934, 8
        %s936 = smul.addr %s935, 4
        %s937 = scalar_lea.vmem %s14, %s936
        %p938 = pneg %p420
        %p939 = pneg %p417
        %p940 = scmp.lt.s32.totalorder %s43, 1
        %s941 = scalar_select %p940, %s43, 1
        %s942 = smul.addr %s941, 4
        %s943 = smul.addr %s942, 4
        %s944 = scalar_lea.vmem %s15, %s943
        %p945 = pneg %p446
        %p946 = pneg %p443
        %p947 = scmp.lt.s32.totalorder %s43, 1
        %s948 = scalar_select %p947, %s43, 1
        %s949 = scalar_lea.vmem %s16, %s948
        %p950 = pneg %p472
        %p951 = pneg %p469
        %p952 = scmp.lt.s32.totalorder %s43, 1
        %s953 = scalar_select %p952, %s43, 1
        %s954 = smul.addr %s953, 16
        %s955 = smul.addr %s954, 4
        %s956 = scalar_lea.vmem %s17, %s955
        %p957 = pneg %p498
        %p958 = pneg %p495
        %p959 = scmp.lt.s32.totalorder %s43, 1
        %s960 = scalar_select %p959, %s43, 1
        %s961 = smul.addr %s960, 4
        %s962 = smul.addr %s961, 4
        %s963 = scalar_lea.vmem %s18, %s962
        %p964 = pneg %p524
        %p965 = pneg %p521
        %p966 = scmp.lt.s32.totalorder %s43, 1
        %s967 = scalar_select %p966, %s43, 1
        %s968 = scalar_lea.vmem %s19, %s967
        %p969 = pneg %p550
        %p970 = pneg %p547
        %p971 = pneg %p571
        %p972 = pneg %p568
        %p973 = pneg %p592
        %p974 = pneg %p589
        %p975 = pneg %p613
        %p976 = pneg %p610
        %p977 = pneg %p634
        %p978 = pneg %p631
        %p979 = pneg %p660
        %p980 = pneg %p657
        %s981 = smul.u32 2, %s42
        %p982 = scmp.lt.s32.totalorder %s981, 1
        %s983 = scalar_select %p982, %s981, 1
        %s984 = smul.addr %s983, 2
        %s985 = smul.addr %s984, 8
        %s986 = scalar_lea.vmem %s0, %s985
        %s987 = smul.u32 2, %s42
        %p988 = scmp.lt.s32.totalorder %s43, 1
        %s989 = scalar_select %p988, %s43, 1
        %s990 = scalar_lea.vmem %s4, %s989
        %p991 = scmp.lt.s32.totalorder %s43, 1
        %s992 = scalar_select %p991, %s43, 1
        %s993 = scalar_lea.vmem %s5, %s992
        %p994 = scmp.lt.s32.totalorder %s43, 1
        %s995 = scalar_select %p994, %s43, 1
        %s996 = smul.addr %s995, 8
        %s997 = smul.addr %s996, 4
        %s998 = scalar_lea.vmem %s6, %s997
        %p999 = scmp.lt.s32.totalorder %s43, 1
        %s1000 = scalar_select %p999, %s43, 1
        %s1001 = smul.addr %s1000, 8
        %s1002 = smul.addr %s1001, 4
        %s1003 = scalar_lea.vmem %s7, %s1002
        %p1004 = scmp.lt.s32.totalorder %s43, 1
        %s1005 = scalar_select %p1004, %s43, 1
        %s1006 = smul.addr %s1005, 8
        %s1007 = smul.addr %s1006, 4
        %s1008 = scalar_lea.vmem %s8, %s1007
        %p1009 = scmp.lt.s32.totalorder %s43, 1
        %s1010 = scalar_select %p1009, %s43, 1
        %s1011 = smul.addr %s1010, 8
        %s1012 = smul.addr %s1011, 4
        %s1013 = scalar_lea.vmem %s9, %s1012
        %p1014 = scmp.lt.s32.totalorder %s43, 1
        %s1015 = scalar_select %p1014, %s43, 1
        %s1016 = smul.addr %s1015, 8
        %s1017 = smul.addr %s1016, 4
        %s1018 = scalar_lea.vmem %s10, %s1017
        %p1019 = scmp.lt.s32.totalorder %s43, 1
        %s1020 = scalar_select %p1019, %s43, 1
        %s1021 = scalar_lea.vmem %s11, %s1020
        %p1022 = scmp.lt.s32.totalorder %s43, 1
        %s1023 = scalar_select %p1022, %s43, 1
        %s1024 = scalar_lea.vmem %s12, %s1023
        %p1025 = scmp.lt.s32.totalorder %s43, 1
        %s1026 = scalar_select %p1025, %s43, 1
        %s1027 = scalar_lea.vmem %s13, %s1026
        %p1028 = scmp.lt.s32.totalorder %s43, 1
        %s1029 = scalar_select %p1028, %s43, 1
        %s1030 = smul.addr %s1029, 8
        %s1031 = smul.addr %s1030, 4
        %s1032 = scalar_lea.vmem %s14, %s1031
        %p1033 = scmp.lt.s32.totalorder %s43, 1
        %s1034 = scalar_select %p1033, %s43, 1
        %s1035 = smul.addr %s1034, 4
        %s1036 = smul.addr %s1035, 4
        %s1037 = scalar_lea.vmem %s15, %s1036
        %p1038 = scmp.lt.s32.totalorder %s43, 1
        %s1039 = scalar_select %p1038, %s43, 1
        %s1040 = scalar_lea.vmem %s16, %s1039
        %p1041 = scmp.lt.s32.totalorder %s43, 1
        %s1042 = scalar_select %p1041, %s43, 1
        %s1043 = smul.addr %s1042, 16
        %s1044 = smul.addr %s1043, 4
        %s1045 = scalar_lea.vmem %s17, %s1044
        %p1046 = scmp.lt.s32.totalorder %s43, 1
        %s1047 = scalar_select %p1046, %s43, 1
        %s1048 = smul.addr %s1047, 4
        %s1049 = smul.addr %s1048, 4
        %s1050 = scalar_lea.vmem %s18, %s1049
        %p1051 = scmp.lt.s32.totalorder %s43, 1
        %s1052 = scalar_select %p1051, %s43, 1
        %s1053 = scalar_lea.vmem %s19, %s1052
        %p1055 = scmp.eq.s32.totalorder %s43, 0
        // Predicated region
        $region125: #{tpu_custom_call.1} parent=115 // pred_check
          %p1056 = pneg %p1055
        $region126: #{tpu_custom_call.1} parent=115 // pred_check_branch
          %1058 = sbr.rel (%p1056) target = $region128
        $region127: #{tpu_custom_call.1} parent=115 // pred_region
          %v1059 = vld [vmem:[%s986] sm:$0xff]
          %v1060 = vld [vmem:[%s986 + $0x8] sm:$0xff]
          %v1061 = vld [vmem:[%s986 + $0x10] sm:$0xff]
          %v1062 = vld [vmem:[%s986 + $0x18] sm:$0xff]
          %v1063 = vpack.c.bf16 %v1061, %v1059
          %v1064 = vpack.c.bf16 %v1062, %v1060
          %v1065 = vld [vmem:[%s1] sm:$0xf]
          %v1066 = vld [vmem:[%s1 + $0x4] sm:$0xf]
          %v1067 = vld [vmem:[%s1 + $0x8] sm:$0xf]
          %v1068 = vld [vmem:[%s1 + $0xc] sm:$0xf]
          %v1069 = vld [vmem:[%s1 + $0x10] sm:$0xf]
          %v1070 = vld [vmem:[%s1 + $0x14] sm:$0xf]
          %v1071 = vld [vmem:[%s1 + $0x18] sm:$0xf]
          %v1072 = vld [vmem:[%s1 + $0x1c] sm:$0xf]
          %v1073 = vld [vmem:[%s1 + $0x20] sm:$0xf]
          %v1074 = vld [vmem:[%s1 + $0x24] sm:$0xf]
          %v1075 = vld [vmem:[%s1 + $0x28] sm:$0xf]
          %v1076 = vld [vmem:[%s1 + $0x2c] sm:$0xf]
          %v1077 = vld [vmem:[%s1 + $0x30] sm:$0xf]
          %v1078 = vld [vmem:[%s1 + $0x34] sm:$0xf]
          %v1079 = vld [vmem:[%s1 + $0x38] sm:$0xf]
          %v1080 = vld [vmem:[%s1 + $0x3c] sm:$0xf]
          %v1081 = vld [vmem:[%s1 + $0x40] sm:$0xf]
          %v1082 = vld [vmem:[%s1 + $0x44] sm:$0xf]
          %v1083 = vld [vmem:[%s1 + $0x48] sm:$0xf]
          %v1084 = vld [vmem:[%s1 + $0x4c] sm:$0xf]
          %v1085 = vld [vmem:[%s1 + $0x50] sm:$0xf]
          %v1086 = vld [vmem:[%s1 + $0x54] sm:$0xf]
          %v1087 = vld [vmem:[%s1 + $0x58] sm:$0xf]
          %v1088 = vld [vmem:[%s1 + $0x5c] sm:$0xf]
          %v1089 = vld [vmem:[#allocation3] sm:$0xff]
          %v1090 = vld [vmem:[#allocation3 + $0x8] sm:$0xff]
          %v1115 = vunpack.c.l.b16 %v1065
          %v1116 = vunpack.c.l.b16 %v1066
          %v1117 = vunpack.c.l.b16 %v1067
          %v1118 = vunpack.c.l.b16 %v1068
          %v1119 = vunpack.c.l.b16 %v1069
          %v1120 = vunpack.c.l.b16 %v1070
          %v1121 = vunpack.c.l.b16 %v1071
          %v1122 = vunpack.c.l.b16 %v1072
          %v1123 = vunpack.c.l.b16 %v1073
          %v1124 = vunpack.c.l.b16 %v1074
          %v1125 = vunpack.c.l.b16 %v1075
          %v1126 = vunpack.c.l.b16 %v1076
          %v1127 = vunpack.c.l.b16 %v1077
          %v1128 = vunpack.c.l.b16 %v1078
          %v1129 = vunpack.c.l.b16 %v1079
          %v1130 = vunpack.c.l.b16 %v1080
          %v1131 = vunpack.c.l.b16 %v1081
          %v1132 = vunpack.c.l.b16 %v1082
          %v1133 = vunpack.c.l.b16 %v1083
          %v1134 = vunpack.c.l.b16 %v1084
          %v1135 = vunpack.c.l.b16 %v1085
          %v1136 = vunpack.c.l.b16 %v1086
          %v1137 = vunpack.c.l.b16 %v1087
          %v1138 = vunpack.c.l.b16 %v1088
          %v1139 = vpack.c.b16 %v1116, %v1115
          %v1140 = vpack.c.b16 %v1118, %v1117
          %v1141 = vpack.c.b16 %v1120, %v1119
          %v1142 = vpack.c.b16 %v1122, %v1121
          %v1143 = vpack.c.b16 %v1124, %v1123
          %v1144 = vpack.c.b16 %v1126, %v1125
          %v1145 = vpack.c.b16 %v1128, %v1127
          %v1146 = vpack.c.b16 %v1130, %v1129
          %v1147 = vpack.c.b16 %v1132, %v1131
          %v1148 = vpack.c.b16 %v1134, %v1133
          %v1149 = vpack.c.b16 %v1136, %v1135
          %v1150 = vpack.c.b16 %v1138, %v1137
          %vm1163 = vcmask 523264
          %v1165 = vsel %vm1163, %v1064, 0
          %1167 = vmatprep.subr.bf16.mxu0 0
          %1168 = vmatpush1.bf16.msra.mxu0 %v1139
          %1169 = vmatprep.subr.bf16.mxu0 0
          %1170 = vmatpush1.bf16.msra.mxu0 %v1140
          %1171 = vmatprep.subr.bf16.mxu0 0
          %1172 = vmatpush1.bf16.msra.mxu0 %v1141
          %1173 = vmatprep.subr.bf16.mxu0 0
          %1174 = vmatpush1.bf16.msra.mxu0 %v1142
          %1175 = vmatprep.subr.bf16.mxu0 0
          %1176 = vmatpush1.bf16.msra.mxu0 %v1143
          %1177 = vmatprep.subr.bf16.mxu0 0
          %1178 = vmatpush1.bf16.msra.mxu0 %v1144
          %1179 = vmatprep.subr.bf16.mxu0 0
          %1180 = vmatpush1.bf16.msra.mxu0 %v1145
          %1181 = vmatprep.subr.bf16.mxu0 0
          %1182 = vmatpush1.bf16.msra.mxu0 %v1146
          %1183 = vmatprep.subr.bf16.mxu0 0
          %1184 = vmatpush1.bf16.msra.mxu0 %v1147
          %1185 = vmatprep.subr.bf16.mxu0 0
          %1186 = vmatpush1.bf16.msra.mxu0 %v1148
          %1187 = vmatprep.subr.bf16.mxu0 0
          %1188 = vmatpush1.bf16.msra.mxu0 %v1149
          %1189 = vmatprep.subr.bf16.mxu0 0
          %1190 = vmatpush1.bf16.msra.mxu0 %v1150
          %1191 = vmatprep.subr.bf16.mxu0 0
          %1192 = vmatpush1.bf16.msra.mxu0 0
          %1193 = vmatprep.subr.bf16.mxu0 0
          %1194 = vmatpush1.bf16.msra.mxu0 0
          %1195 = vmatprep.subr.bf16.mxu0 0
          %1196 = vmatpush1.bf16.msra.mxu0 0
          %1197 = vmatprep.subr.bf16.mxu0 0
          %1198 = vmatpush1.bf16.msra.mxu0 0
          %1199 = vmatprep.mubr.bf16.mxu0 %v1165
          %1200 = vmatmul.mubr.bf16.gmra.mrb[0].mxu0 %v1063
          %v1201 = vpop.f32.mrb[0].mxu0
          %v1202 = vadd.f32 %v1089, %v1201
          %v1203 = vpop.f32.mrb[0].mxu0
          %v1204 = vpop.f32.mrb[0].mxu0
          %v1205 = vadd.f32 %v1090, %v1204
          %v1206 = vpop.f32.mrb[0].mxu0
          %1207 = vdwg.mxu0
          %1208 = vst.msk [vmem:[#allocation2] sm:$0xff] %vm1163, %v1202
          %1209 = vst.msk [vmem:[#allocation2 + $0x8] sm:$0xff] %vm1163, %v1205
        $region128: #{tpu_custom_call.1} parent=115 // pred_fallthru
          _
        %v1210 = vld [vmem:[#allocation2] sm:$0xff]
        %v1211 = vld [vmem:[#allocation2 + $0x8] sm:$0xff]
        %v1212 = vld [vmem:[#allocation6] sm:$0xff]
        %v1213 = vld [vmem:[#allocation6 + $0x8] sm:$0xff]
        %v1214 = vld [vmem:[%s990] sm:$0x1]
        %v1215 = vld [vmem:[%s993] sm:$0x1]
        %vm1216 = vcmask 523264
        %v1217 = vsel %vm1216, %v1210, 0.0
        %1218 = vadd.xlane.f32.xlu0 %v1217
        %v1219 = vpop.xlane.xlu0 %1218
        %v1220 = vsel %vm1216, %v1211, 0.0
        %1221 = vadd.xlane.f32.xlu0 %v1220
        %v1222 = vpop.xlane.xlu0 %1221
        %v1223 = vrcp.pop 64.0
        %v1224 = vmul.f32 %v1219, %v1223
        %v1225 = vmul.f32 %v1222, %v1223
        %v1226 = vsub.f32 %v1210, %v1224
        %v1227 = vsub.f32 %v1211, %v1225
        %v1228 = vmul.f32 %v1226, %v1226
        %v1229 = vmul.f32 %v1227, %v1227
        %v1230 = vsel %vm1216, %v1228, 0.0
        %1231 = vadd.xlane.f32.xlu0 %v1230
        %v1232 = vpop.xlane.xlu0 %1231
        %v1233 = vsel %vm1216, %v1229, 0.0
        %1234 = vadd.xlane.f32.xlu0 %v1233
        %v1235 = vpop.xlane.xlu0 %1234
        %v1236 = vmul.f32 %v1232, %v1223
        %v1237 = vmul.f32 %v1235, %v1223
        %v1238 = vadd.f32 %v1236, 1e-05
        %v1239 = vadd.f32 %v1237, 1e-05
        %v1240 = vrsqrt.pop %v1238
        %v1241 = vrsqrt.pop %v1239
        %v1242 = vmul.f32 %v1226, %v1240
        %v1243 = vmul.f32 %v1227, %v1241
        %v1245 = vlaneseq
        %v1246 = vshrl.u32 %v1245, 7
        %v1247 = vsub.s32 0, %v1246
        %v1248 = vrot.slane %v1214, %v1247
        %v1250 = vmul.f32 %v1242, %v1248
        %v1251 = vmul.f32 %v1243, %v1248
        %v1253 = vlaneseq
        %v1254 = vshrl.u32 %v1253, 7
        %v1255 = vsub.s32 0, %v1254
        %v1256 = vrot.slane %v1215, %v1255
        %v1258 = vadd.f32 %v1250, %v1256
        %v1259 = vadd.f32 %v1251, %v1256
        %v1260 = vpack.c.bf16 %v1259, %v1258
        %v1261 = vld [vmem:[%s998] sm:$0xf]
        %v1262 = vld [vmem:[%s998 + $0x4] sm:$0xf]
        %v1263 = vld [vmem:[%s998 + $0x8] sm:$0xf]
        %v1264 = vld [vmem:[%s998 + $0xc] sm:$0xf]
        %v1265 = vld [vmem:[%s998 + $0x10] sm:$0xf]
        %v1266 = vld [vmem:[%s998 + $0x14] sm:$0xf]
        %v1267 = vld [vmem:[%s998 + $0x18] sm:$0xf]
        %v1268 = vld [vmem:[%s998 + $0x1c] sm:$0xf]
        %v1277 = vunpack.c.l.b16 %v1261
        %v1278 = vunpack.c.l.b16 %v1262
        %v1279 = vunpack.c.l.b16 %v1263
        %v1280 = vunpack.c.l.b16 %v1264
        %v1281 = vunpack.c.l.b16 %v1265
        %v1282 = vunpack.c.l.b16 %v1266
        %v1283 = vunpack.c.l.b16 %v1267
        %v1284 = vunpack.c.l.b16 %v1268
        %v1285 = vpack.c.b16 %v1278, %v1277
        %v1286 = vpack.c.b16 %v1280, %v1279
        %v1287 = vpack.c.b16 %v1282, %v1281
        %v1288 = vpack.c.b16 %v1284, %v1283
        %v1294 = vsel %vm1216, %v1260, 0
        %1296 = vmatprep.subr.bf16.mxu0 0
        %1297 = vmatpush1.bf16.msra.mxu0 %v1285
        %1298 = vmatprep.subr.bf16.mxu0 0
        %1299 = vmatpush1.bf16.msra.mxu0 %v1286
        %1300 = vmatprep.subr.bf16.mxu0 0
        %1301 = vmatpush1.bf16.msra.mxu0 %v1287
        %1302 = vmatprep.subr.bf16.mxu0 0
        %1303 = vmatpush1.bf16.msra.mxu0 %v1288
        %1304 = vmatprep.subr.bf16.mxu0 0
        %1305 = vmatpush1.bf16.msra.mxu0 0
        %1306 = vmatprep.subr.bf16.mxu0 0
        %1307 = vmatpush1.bf16.msra.mxu0 0
        %1308 = vmatprep.subr.bf16.mxu0 0
        %1309 = vmatpush1.bf16.msra.mxu0 0
        %1310 = vmatprep.subr.bf16.mxu0 0
        %1311 = vmatpush1.bf16.msra.mxu0 0
        %1312 = vmatprep.subr.bf16.mxu0 0
        %1313 = vmatpush1.bf16.msra.mxu0 0
        %1314 = vmatprep.subr.bf16.mxu0 0
        %1315 = vmatpush1.bf16.msra.mxu0 0
        %1316 = vmatprep.subr.bf16.mxu0 0
        %1317 = vmatpush1.bf16.msra.mxu0 0
        %1318 = vmatprep.subr.bf16.mxu0 0
        %1319 = vmatpush1.bf16.msra.mxu0 0
        %1320 = vmatprep.subr.bf16.mxu0 0
        %1321 = vmatpush1.bf16.msra.mxu0 0
        %1322 = vmatprep.subr.bf16.mxu0 0
        %1323 = vmatpush1.bf16.msra.mxu0 0
        %1324 = vmatprep.subr.bf16.mxu0 0
        %1325 = vmatpush1.bf16.msra.mxu0 0
        %1326 = vmatprep.subr.bf16.mxu0 0
        %1327 = vmatpush1.bf16.msra.mxu0 0
        %1328 = vmatprep.mubr.bf16.mxu0 0
        %1329 = vmatmul.mubr.bf16.gmra.mrb[0].mxu0 %v1294
        %v1330 = vpop.f32.mrb[0].mxu0
        %v1331 = vadd.f32 0.0, %v1330
        %v1332 = vpop.f32.mrb[0].mxu0
        %v1333 = vpop.f32.mrb[0].mxu0
        %v1334 = vadd.f32 0.0, %v1333
        %v1335 = vpop.f32.mrb[0].mxu0
        %1336 = vdwg.mxu0
        %v1337 = vpack.c.bf16 %v1334, %v1331
        %v1338 = vld [vmem:[%s1003] sm:$0xf]
        %v1339 = vld [vmem:[%s1003 + $0x4] sm:$0xf]
        %v1340 = vld [vmem:[%s1003 + $0x8] sm:$0xf]
        %v1341 = vld [vmem:[%s1003 + $0xc] sm:$0xf]
        %v1346 = vunpack.c.l.b16 %v1338
        %v1347 = vunpack.c.l.b16 %v1339
        %v1348 = vunpack.c.l.b16 %v1340
        %v1349 = vunpack.c.l.b16 %v1341
        %v1350 = vpack.c.b16 %v1347, %v1346
        %v1351 = vpack.c.b16 %v1349, %v1348
        %vm1354 = vcmask 261120
        %v1356 = vsel %vm1354, %v1337, 0
        %1358 = vmatprep.subr.bf16.mxu0 0
        %1359 = vmatpush1.bf16.msra.mxu0 %v1350
        %1360 = vmatprep.subr.bf16.mxu0 0
        %1361 = vmatpush1.bf16.msra.mxu0 %v1351
        %1362 = vmatprep.subr.bf16.mxu0 0
        %1363 = vmatpush1.bf16.msra.mxu0 0
        %1364 = vmatprep.subr.bf16.mxu0 0
        %1365 = vmatpush1.bf16.msra.mxu0 0
        %1366 = vmatprep.subr.bf16.mxu0 0
        %1367 = vmatpush1.bf16.msra.mxu0 0
        %1368 = vmatprep.subr.bf16.mxu0 0
        %1369 = vmatpush1.bf16.msra.mxu0 0
        %1370 = vmatprep.subr.bf16.mxu0 0
        %1371 = vmatpush1.bf16.msra.mxu0 0
        %1372 = vmatprep.subr.bf16.mxu0 0
        %1373 = vmatpush1.bf16.msra.mxu0 0
        %1374 = vmatprep.subr.bf16.mxu0 0
        %1375 = vmatpush1.bf16.msra.mxu0 0
        %1376 = vmatprep.subr.bf16.mxu0 0
        %1377 = vmatpush1.bf16.msra.mxu0 0
        %1378 = vmatprep.subr.bf16.mxu0 0
        %1379 = vmatpush1.bf16.msra.mxu0 0
        %1380 = vmatprep.subr.bf16.mxu0 0
        %1381 = vmatpush1.bf16.msra.mxu0 0
        %1382 = vmatprep.subr.bf16.mxu0 0
        %1383 = vmatpush1.bf16.msra.mxu0 0
        %1384 = vmatprep.subr.bf16.mxu0 0
        %1385 = vmatpush1.bf16.msra.mxu0 0
        %1386 = vmatprep.subr.bf16.mxu0 0
        %1387 = vmatpush1.bf16.msra.mxu0 0
        %1388 = vmatprep.subr.bf16.mxu0 0
        %1389 = vmatpush1.bf16.msra.mxu0 0
        %1390 = vmatprep.mubr.bf16.mxu0 0
        %1391 = vmatmul.mubr.bf16.gmra.mrb[0].mxu0 %v1356
        %v1392 = vpop.f32.mrb[0].mxu0
        %v1393 = vadd.f32 0.0, %v1392
        %v1394 = vpop.f32.mrb[0].mxu0
        %v1395 = vpop.f32.mrb[0].mxu0
        %v1396 = vadd.f32 0.0, %v1395
        %v1397 = vpop.f32.mrb[0].mxu0
        %1398 = vdwg.mxu0
        %v1399 = vld [vmem:[%s1008] sm:$0xf]
        %v1400 = vld [vmem:[%s1008 + $0x4] sm:$0xf]
        %v1401 = vld [vmem:[%s1008 + $0x8] sm:$0xf]
        %v1402 = vld [vmem:[%s1008 + $0xc] sm:$0xf]
        %v1407 = vunpack.c.l.b16 %v1399
        %v1408 = vunpack.c.l.b16 %v1400
        %v1409 = vunpack.c.l.b16 %v1401
        %v1410 = vunpack.c.l.b16 %v1402
        %v1411 = vpack.c.b16 %v1408, %v1407
        %v1412 = vpack.c.b16 %v1410, %v1409
        %1415 = vmatprep.subr.bf16.mxu0 0
        %1416 = vmatpush1.bf16.msra.mxu0 %v1411
        %1417 = vmatprep.subr.bf16.mxu0 0
        %1418 = vmatpush1.bf16.msra.mxu0 %v1412
        %1419 = vmatprep.subr.bf16.mxu0 0
        %1420 = vmatpush1.bf16.msra.mxu0 0
        %1421 = vmatprep.subr.bf16.mxu0 0
        %1422 = vmatpush1.bf16.msra.mxu0 0
        %1423 = vmatprep.subr.bf16.mxu0 0
        %1424 = vmatpush1.bf16.msra.mxu0 0
        %1425 = vmatprep.subr.bf16.mxu0 0
        %1426 = vmatpush1.bf16.msra.mxu0 0
        %1427 = vmatprep.subr.bf16.mxu0 0
        %1428 = vmatpush1.bf16.msra.mxu0 0
        %1429 = vmatprep.subr.bf16.mxu0 0
        %1430 = vmatpush1.bf16.msra.mxu0 0
        %1431 = vmatprep.subr.bf16.mxu0 0
        %1432 = vmatpush1.bf16.msra.mxu0 0
        %1433 = vmatprep.subr.bf16.mxu0 0
        %1434 = vmatpush1.bf16.msra.mxu0 0
        %1435 = vmatprep.subr.bf16.mxu0 0
        %1436 = vmatpush1.bf16.msra.mxu0 0
        %1437 = vmatprep.subr.bf16.mxu0 0
        %1438 = vmatpush1.bf16.msra.mxu0 0
        %1439 = vmatprep.subr.bf16.mxu0 0
        %1440 = vmatpush1.bf16.msra.mxu0 0
        %1441 = vmatprep.subr.bf16.mxu0 0
        %1442 = vmatpush1.bf16.msra.mxu0 0
        %1443 = vmatprep.subr.bf16.mxu0 0
        %1444 = vmatpush1.bf16.msra.mxu0 0
        %1445 = vmatprep.subr.bf16.mxu0 0
        %1446 = vmatpush1.bf16.msra.mxu0 0
        %1447 = vmatprep.mubr.bf16.mxu0 0
        %1448 = vmatmul.mubr.bf16.gmra.mrb[0].mxu0 %v1356
        %v1449 = vpop.f32.mrb[0].mxu0
        %v1450 = vadd.f32 0.0, %v1449
        %v1451 = vpop.f32.mrb[0].mxu0
        %v1452 = vpop.f32.mrb[0].mxu0
        %v1453 = vadd.f32 0.0, %v1452
        %v1454 = vpop.f32.mrb[0].mxu0
        %1455 = vdwg.mxu0
        %v1456 = vld [vmem:[%s1013] sm:$0xf]
        %v1457 = vld [vmem:[%s1013 + $0x4] sm:$0xf]
        %v1458 = vld [vmem:[%s1013 + $0x8] sm:$0xf]
        %v1459 = vld [vmem:[%s1013 + $0xc] sm:$0xf]
        %v1464 = vunpack.c.l.b16 %v1456
        %v1465 = vunpack.c.l.b16 %v1457
        %v1466 = vunpack.c.l.b16 %v1458
        %v1467 = vunpack.c.l.b16 %v1459
        %v1468 = vpack.c.b16 %v1465, %v1464
        %v1469 = vpack.c.b16 %v1467, %v1466
        %1472 = vmatprep.subr.bf16.mxu0 0
        %1473 = vmatpush1.bf16.msra.mxu0 %v1468
        %1474 = vmatprep.subr.bf16.mxu0 0
        %1475 = vmatpush1.bf16.msra.mxu0 %v1469
        %1476 = vmatprep.subr.bf16.mxu0 0
        %1477 = vmatpush1.bf16.msra.mxu0 0
        %1478 = vmatprep.subr.bf16.mxu0 0
        %1479 = vmatpush1.bf16.msra.mxu0 0
        %1480 = vmatprep.subr.bf16.mxu0 0
        %1481 = vmatpush1.bf16.msra.mxu0 0
        %1482 = vmatprep.subr.bf16.mxu0 0
        %1483 = vmatpush1.bf16.msra.mxu0 0
        %1484 = vmatprep.subr.bf16.mxu0 0
        %1485 = vmatpush1.bf16.msra.mxu0 0
        %1486 = vmatprep.subr.bf16.mxu0 0
        %1487 = vmatpush1.bf16.msra.mxu0 0
        %1488 = vmatprep.subr.bf16.mxu0 0
        %1489 = vmatpush1.bf16.msra.mxu0 0
        %1490 = vmatprep.subr.bf16.mxu0 0
        %1491 = vmatpush1.bf16.msra.mxu0 0
        %1492 = vmatprep.subr.bf16.mxu0 0
        %1493 = vmatpush1.bf16.msra.mxu0 0
        %1494 = vmatprep.subr.bf16.mxu0 0
        %1495 = vmatpush1.bf16.msra.mxu0 0
        %1496 = vmatprep.subr.bf16.mxu0 0
        %1497 = vmatpush1.bf16.msra.mxu0 0
        %1498 = vmatprep.subr.bf16.mxu0 0
        %1499 = vmatpush1.bf16.msra.mxu0 0
        %1500 = vmatprep.subr.bf16.mxu0 0
        %1501 = vmatpush1.bf16.msra.mxu0 0
        %1502 = vmatprep.subr.bf16.mxu0 0
        %1503 = vmatpush1.bf16.msra.mxu0 0
        %1504 = vmatprep.mubr.bf16.mxu0 0
        %1505 = vmatmul.mubr.bf16.gmra.mrb[0].mxu0 %v1356
        %v1506 = vpop.f32.mrb[0].mxu0
        %v1507 = vadd.f32 0.0, %v1506
        %v1508 = vpop.f32.mrb[0].mxu0
        %v1509 = vpop.f32.mrb[0].mxu0
        %v1510 = vadd.f32 0.0, %v1509
        %v1511 = vpop.f32.mrb[0].mxu0
        %1512 = vdwg.mxu0
        %v1513 = vpack.c.bf16 %v1396, %v1393
        %v1514 = vpack.c.bf16 %v1453, %v1450
        %v1516 = vsel %vm1354, %v1513, 0
        %v1519 = vsel %vm1354, %v1514, 0
        %1521 = vmatprep.subr.bf16.mxu0 0
        %1522 = vmatpush1.bf16.xpose.msra.mxu0 %v1519
        %1523 = vmatprep.subr.bf16.mxu0 0
        %1524 = vmatpush1.bf16.xpose.msra.mxu0 0
        %1525 = vmatprep.subr.bf16.mxu0 0
        %1526 = vmatpush1.bf16.xpose.msra.mxu0 0
        %1527 = vmatprep.subr.bf16.mxu0 0
        %1528 = vmatpush1.bf16.xpose.msra.mxu0 0
        %1529 = vmatprep.subr.bf16.mxu0 0
        %1530 = vmatpush1.bf16.xpose.msra.mxu0 0
        %1531 = vmatprep.subr.bf16.mxu0 0
        %1532 = vmatpush1.bf16.xpose.msra.mxu0 0
        %1533 = vmatprep.subr.bf16.mxu0 0
        %1534 = vmatpush1.bf16.xpose.msra.mxu0 0
        %1535 = vmatprep.subr.bf16.mxu0 0
        %1536 = vmatpush1.bf16.xpose.msra.mxu0 0
        %1537 = vmatprep.subr.bf16.mxu0 0
        %1538 = vmatpush1.bf16.xpose.msra.mxu0 0
        %1539 = vmatprep.subr.bf16.mxu0 0
        %1540 = vmatpush1.bf16.xpose.msra.mxu0 0
        %1541 = vmatprep.subr.bf16.mxu0 0
        %1542 = vmatpush1.bf16.xpose.msra.mxu0 0
        %1543 = vmatprep.subr.bf16.mxu0 0
        %1544 = vmatpush1.bf16.xpose.msra.mxu0 0
        %1545 = vmatprep.subr.bf16.mxu0 0
        %1546 = vmatpush1.bf16.xpose.msra.mxu0 0
        %1547 = vmatprep.subr.bf16.mxu0 0
        %1548 = vmatpush1.bf16.xpose.msra.mxu0 0
        %1549 = vmatprep.subr.bf16.mxu0 0
        %1550 = vmatpush1.bf16.xpose.msra.mxu0 0
        %1551 = vmatprep.subr.bf16.mxu0 0
        %1552 = vmatpush1.bf16.xpose.msra.mxu0 0
        %1553 = vmatprep.mubr.bf16.mxu0 0
        %1554 = vmatmul.mubr.bf16.gmra.mrb[0].mxu0 %v1516
        %v1555 = vpop.f32.mrb[0].mxu0
        %v1556 = vadd.f32 0.0, %v1555
        %v1557 = vpop.f32.mrb[0].mxu0
        %v1558 = vpop.f32.mrb[0].mxu0
        %v1559 = vadd.f32 0.0, %v1558
        %v1560 = vpop.f32.mrb[0].mxu0
        %1561 = vdwg.mxu0
        %v1562 = vmul.f32 %v1556, 0.17677669
        %v1563 = vmul.f32 %v1559, 0.17677669
        %v1564 = vadd.f32 %v1562, %v1212
        %v1565 = vadd.f32 %v1563, %v1213
        %vm1566 = vcmask 130048
        %v1567 = vsel %vm1566, %v1564, -inf
        %1568 = vmax.xlane.f32.xlu0 %v1567
        %v1569 = vpop.xlane.xlu0 %1568
        %v1570 = vsel %vm1566, %v1565, -inf
        %1571 = vmax.xlane.f32.xlu0 %v1570
        %v1572 = vpop.xlane.xlu0 %1571
        %v1573 = vsub.f32 %v1564, %v1569
        %v1574 = vsub.f32 %v1565, %v1572
        %v1575 = vmul.f32 %v1573, 1.442695
        %v1576 = vpow.pop %v1575
        %v1577 = vmul.f32 %v1574, 1.442695
        %v1578 = vpow.pop %v1577
        %v1579 = vsel %vm1566, %v1576, 0.0
        %1580 = vadd.xlane.f32.xlu0 %v1579
        %v1581 = vpop.xlane.xlu0 %1580
        %v1582 = vsel %vm1566, %v1578, 0.0
        %1583 = vadd.xlane.f32.xlu0 %v1582
        %v1584 = vpop.xlane.xlu0 %1583
        %v1585 = vrcp.pop %v1581
        %v1586 = vrcp.pop %v1584
        %v1587 = vmul.f32 %v1576, %v1585
        %v1588 = vmul.f32 %v1578, %v1586
        %v1589 = vpack.c.bf16 %v1588, %v1587
        %v1590 = vpack.c.bf16 %v1510, %v1507
        %v1592 = vsel %vm1566, %v1589, 0
        %1594 = vmatprep.subr.bf16.mxu0 0
        %1595 = vmatpush1.bf16.msra.mxu0 %v1590
        %1596 = vmatprep.subr.bf16.mxu0 0
        %1597 = vmatpush1.bf16.msra.mxu0 0
        %1598 = vmatprep.subr.bf16.mxu0 0
        %1599 = vmatpush1.bf16.msra.mxu0 0
        %1600 = vmatprep.subr.bf16.mxu0 0
        %1601 = vmatpush1.bf16.msra.mxu0 0
        %1602 = vmatprep.subr.bf16.mxu0 0
        %1603 = vmatpush1.bf16.msra.mxu0 0
        %1604 = vmatprep.subr.bf16.mxu0 0
        %1605 = vmatpush1.bf16.msra.mxu0 0
        %1606 = vmatprep.subr.bf16.mxu0 0
        %1607 = vmatpush1.bf16.msra.mxu0 0
        %1608 = vmatprep.subr.bf16.mxu0 0
        %1609 = vmatpush1.bf16.msra.mxu0 0
        %1610 = vmatprep.subr.bf16.mxu0 0
        %1611 = vmatpush1.bf16.msra.mxu0 0
        %1612 = vmatprep.subr.bf16.mxu0 0
        %1613 = vmatpush1.bf16.msra.mxu0 0
        %1614 = vmatprep.subr.bf16.mxu0 0
        %1615 = vmatpush1.bf16.msra.mxu0 0
        %1616 = vmatprep.subr.bf16.mxu0 0
        %1617 = vmatpush1.bf16.msra.mxu0 0
        %1618 = vmatprep.subr.bf16.mxu0 0
        %1619 = vmatpush1.bf16.msra.mxu0 0
        %1620 = vmatprep.subr.bf16.mxu0 0
        %1621 = vmatpush1.bf16.msra.mxu0 0
        %1622 = vmatprep.subr.bf16.mxu0 0
        %1623 = vmatpush1.bf16.msra.mxu0 0
        %1624 = vmatprep.subr.bf16.mxu0 0
        %1625 = vmatpush1.bf16.msra.mxu0 0
        %1626 = vmatprep.mubr.bf16.mxu0 0
        %1627 = vmatmul.mubr.bf16.gmra.mrb[0].mxu0 %v1592
        %v1628 = vpop.f32.mrb[0].mxu0
        %v1629 = vadd.f32 0.0, %v1628
        %v1630 = vpop.f32.mrb[0].mxu0
        %v1631 = vpop.f32.mrb[0].mxu0
        %v1632 = vadd.f32 0.0, %v1631
        %v1633 = vpop.f32.mrb[0].mxu0
        %1634 = vdwg.mxu0
        %v1635 = vpack.c.bf16 %v1632, %v1629
        %v1636 = vld [vmem:[%s1018] sm:$0xf]
        %v1637 = vld [vmem:[%s1018 + $0x4] sm:$0xf]
        %v1638 = vld [vmem:[%s1018 + $0x8] sm:$0xf]
        %v1639 = vld [vmem:[%s1018 + $0xc] sm:$0xf]
        %s1640 = scalar_lea.vmem %s1003, 16
        %v1641 = vld [vmem:[%s1640] sm:$0xf]
        %v1642 = vld [vmem:[%s1640 + $0x4] sm:$0xf]
        %v1643 = vld [vmem:[%s1640 + $0x8] sm:$0xf]
        %v1644 = vld [vmem:[%s1640 + $0xc] sm:$0xf]
        %v1649 = vunpack.c.l.b16 %v1641
        %v1650 = vunpack.c.l.b16 %v1642
        %v1651 = vunpack.c.l.b16 %v1643
        %v1652 = vunpack.c.l.b16 %v1644
        %v1653 = vpack.c.b16 %v1650, %v1649
        %v1654 = vpack.c.b16 %v1652, %v1651
        %1657 = vmatprep.subr.bf16.mxu0 0
        %1658 = vmatpush1.bf16.msra.mxu0 %v1653
        %1659 = vmatprep.subr.bf16.mxu0 0
        %1660 = vmatpush1.bf16.msra.mxu0 %v1654
        %1661 = vmatprep.subr.bf16.mxu0 0
        %1662 = vmatpush1.bf16.msra.mxu0 0
        %1663 = vmatprep.subr.bf16.mxu0 0
        %1664 = vmatpush1.bf16.msra.mxu0 0
        %1665 = vmatprep.subr.bf16.mxu0 0
        %1666 = vmatpush1.bf16.msra.mxu0 0
        %1667 = vmatprep.subr.bf16.mxu0 0
        %1668 = vmatpush1.bf16.msra.mxu0 0
        %1669 = vmatprep.subr.bf16.mxu0 0
        %1670 = vmatpush1.bf16.msra.mxu0 0
        %1671 = vmatprep.subr.bf16.mxu0 0
        %1672 = vmatpush1.bf16.msra.mxu0 0
        %1673 = vmatprep.subr.bf16.mxu0 0
        %1674 = vmatpush1.bf16.msra.mxu0 0
        %1675 = vmatprep.subr.bf16.mxu0 0
        %1676 = vmatpush1.bf16.msra.mxu0 0
        %1677 = vmatprep.subr.bf16.mxu0 0
        %1678 = vmatpush1.bf16.msra.mxu0 0
        %1679 = vmatprep.subr.bf16.mxu0 0
        %1680 = vmatpush1.bf16.msra.mxu0 0
        %1681 = vmatprep.subr.bf16.mxu0 0
        %1682 = vmatpush1.bf16.msra.mxu0 0
        %1683 = vmatprep.subr.bf16.mxu0 0
        %1684 = vmatpush1.bf16.msra.mxu0 0
        %1685 = vmatprep.subr.bf16.mxu0 0
        %1686 = vmatpush1.bf16.msra.mxu0 0
        %1687 = vmatprep.subr.bf16.mxu0 0
        %1688 = vmatpush1.bf16.msra.mxu0 0
        %1689 = vmatprep.mubr.bf16.mxu0 0
        %1690 = vmatmul.mubr.bf16.gmra.mrb[0].mxu0 %v1356
        %v1691 = vpop.f32.mrb[0].mxu0
        %v1692 = vadd.f32 0.0, %v1691
        %v1693 = vpop.f32.mrb[0].mxu0
        %v1694 = vpop.f32.mrb[0].mxu0
        %v1695 = vadd.f32 0.0, %v1694
        %v1696 = vpop.f32.mrb[0].mxu0
        %1697 = vdwg.mxu0
        %s1698 = scalar_lea.vmem %s1008, 16
        %v1699 = vld [vmem:[%s1698] sm:$0xf]
        %v1700 = vld [vmem:[%s1698 + $0x4] sm:$0xf]
        %v1701 = vld [vmem:[%s1698 + $0x8] sm:$0xf]
        %v1702 = vld [vmem:[%s1698 + $0xc] sm:$0xf]
        %v1707 = vunpack.c.l.b16 %v1699
        %v1708 = vunpack.c.l.b16 %v1700
        %v1709 = vunpack.c.l.b16 %v1701
        %v1710 = vunpack.c.l.b16 %v1702
        %v1711 = vpack.c.b16 %v1708, %v1707
        %v1712 = vpack.c.b16 %v1710, %v1709
        %1715 = vmatprep.subr.bf16.mxu0 0
        %1716 = vmatpush1.bf16.msra.mxu0 %v1711
        %1717 = vmatprep.subr.bf16.mxu0 0
        %1718 = vmatpush1.bf16.msra.mxu0 %v1712
        %1719 = vmatprep.subr.bf16.mxu0 0
        %1720 = vmatpush1.bf16.msra.mxu0 0
        %1721 = vmatprep.subr.bf16.mxu0 0
        %1722 = vmatpush1.bf16.msra.mxu0 0
        %1723 = vmatprep.subr.bf16.mxu0 0
        %1724 = vmatpush1.bf16.msra.mxu0 0
        %1725 = vmatprep.subr.bf16.mxu0 0
        %1726 = vmatpush1.bf16.msra.mxu0 0
        %1727 = vmatprep.subr.bf16.mxu0 0
        %1728 = vmatpush1.bf16.msra.mxu0 0
        %1729 = vmatprep.subr.bf16.mxu0 0
        %1730 = vmatpush1.bf16.msra.mxu0 0
        %1731 = vmatprep.subr.bf16.mxu0 0
        %1732 = vmatpush1.bf16.msra.mxu0 0
        %1733 = vmatprep.subr.bf16.mxu0 0
        %1734 = vmatpush1.bf16.msra.mxu0 0
        %1735 = vmatprep.subr.bf16.mxu0 0
        %1736 = vmatpush1.bf16.msra.mxu0 0
        %1737 = vmatprep.subr.bf16.mxu0 0
        %1738 = vmatpush1.bf16.msra.mxu0 0
        %1739 = vmatprep.subr.bf16.mxu0 0
        %1740 = vmatpush1.bf16.msra.mxu0 0
        %1741 = vmatprep.subr.bf16.mxu0 0
        %1742 = vmatpush1.bf16.msra.mxu0 0
        %1743 = vmatprep.subr.bf16.mxu0 0
        %1744 = vmatpush1.bf16.msra.mxu0 0
        %1745 = vmatprep.subr.bf16.mxu0 0
        %1746 = vmatpush1.bf16.msra.mxu0 0
        %1747 = vmatprep.mubr.bf16.mxu0 0
        %1748 = vmatmul.mubr.bf16.gmra.mrb[0].mxu0 %v1356
        %v1749 = vpop.f32.mrb[0].mxu0
        %v1750 = vadd.f32 0.0, %v1749
        %v1751 = vpop.f32.mrb[0].mxu0
        %v1752 = vpop.f32.mrb[0].mxu0
        %v1753 = vadd.f32 0.0, %v1752
        %v1754 = vpop.f32.mrb[0].mxu0
        %1755 = vdwg.mxu0
        %s1756 = scalar_lea.vmem %s1013, 16
        %v1757 = vld [vmem:[%s1756] sm:$0xf]
        %v1758 = vld [vmem:[%s1756 + $0x4] sm:$0xf]
        %v1759 = vld [vmem:[%s1756 + $0x8] sm:$0xf]
        %v1760 = vld [vmem:[%s1756 + $0xc] sm:$0xf]
        %v1765 = vunpack.c.l.b16 %v1757
        %v1766 = vunpack.c.l.b16 %v1758
        %v1767 = vunpack.c.l.b16 %v1759
        %v1768 = vunpack.c.l.b16 %v1760
        %v1769 = vpack.c.b16 %v1766, %v1765
        %v1770 = vpack.c.b16 %v1768, %v1767
        %1773 = vmatprep.subr.bf16.mxu0 0
        %1774 = vmatpush1.bf16.msra.mxu0 %v1769
        %1775 = vmatprep.subr.bf16.mxu0 0
        %1776 = vmatpush1.bf16.msra.mxu0 %v1770
        %1777 = vmatprep.subr.bf16.mxu0 0
        %1778 = vmatpush1.bf16.msra.mxu0 0
        %1779 = vmatprep.subr.bf16.mxu0 0
        %1780 = vmatpush1.bf16.msra.mxu0 0
        %1781 = vmatprep.subr.bf16.mxu0 0
        %1782 = vmatpush1.bf16.msra.mxu0 0
        %1783 = vmatprep.subr.bf16.mxu0 0
        %1784 = vmatpush1.bf16.msra.mxu0 0
        %1785 = vmatprep.subr.bf16.mxu0 0
        %1786 = vmatpush1.bf16.msra.mxu0 0
        %1787 = vmatprep.subr.bf16.mxu0 0
        %1788 = vmatpush1.bf16.msra.mxu0 0
        %1789 = vmatprep.subr.bf16.mxu0 0
        %1790 = vmatpush1.bf16.msra.mxu0 0
        %1791 = vmatprep.subr.bf16.mxu0 0
        %1792 = vmatpush1.bf16.msra.mxu0 0
        %1793 = vmatprep.subr.bf16.mxu0 0
        %1794 = vmatpush1.bf16.msra.mxu0 0
        %1795 = vmatprep.subr.bf16.mxu0 0
        %1796 = vmatpush1.bf16.msra.mxu0 0
        %1797 = vmatprep.subr.bf16.mxu0 0
        %1798 = vmatpush1.bf16.msra.mxu0 0
        %1799 = vmatprep.subr.bf16.mxu0 0
        %1800 = vmatpush1.bf16.msra.mxu0 0
        %1801 = vmatprep.subr.bf16.mxu0 0
        %1802 = vmatpush1.bf16.msra.mxu0 0
        %1803 = vmatprep.subr.bf16.mxu0 0
        %1804 = vmatpush1.bf16.msra.mxu0 0
        %1805 = vmatprep.mubr.bf16.mxu0 0
        %1806 = vmatmul.mubr.bf16.gmra.mrb[0].mxu0 %v1356
        %v1807 = vpop.f32.mrb[0].mxu0
        %v1808 = vadd.f32 0.0, %v1807
        %v1809 = vpop.f32.mrb[0].mxu0
        %v1810 = vpop.f32.mrb[0].mxu0
        %v1811 = vadd.f32 0.0, %v1810
        %v1812 = vpop.f32.mrb[0].mxu0
        %1813 = vdwg.mxu0
        %v1814 = vpack.c.bf16 %v1695, %v1692
        %v1815 = vpack.c.bf16 %v1753, %v1750
        %v1817 = vsel %vm1354, %v1814, 0
        %v1820 = vsel %vm1354, %v1815, 0
        %1822 = vmatprep.subr.bf16.mxu0 0
        %1823 = vmatpush1.bf16.xpose.msra.mxu0 %v1820
        %1824 = vmatprep.subr.bf16.mxu0 0
        %1825 = vmatpush1.bf16.xpose.msra.mxu0 0
        %1826 = vmatprep.subr.bf16.mxu0 0
        %1827 = vmatpush1.bf16.xpose.msra.mxu0 0
        %1828 = vmatprep.subr.bf16.mxu0 0
        %1829 = vmatpush1.bf16.xpose.msra.mxu0 0
        %1830 = vmatprep.subr.bf16.mxu0 0
        %1831 = vmatpush1.bf16.xpose.msra.mxu0 0
        %1832 = vmatprep.subr.bf16.mxu0 0
        %1833 = vmatpush1.bf16.xpose.msra.mxu0 0
        %1834 = vmatprep.subr.bf16.mxu0 0
        %1835 = vmatpush1.bf16.xpose.msra.mxu0 0
        %1836 = vmatprep.subr.bf16.mxu0 0
        %1837 = vmatpush1.bf16.xpose.msra.mxu0 0
        %1838 = vmatprep.subr.bf16.mxu0 0
        %1839 = vmatpush1.bf16.xpose.msra.mxu0 0
        %1840 = vmatprep.subr.bf16.mxu0 0
        %1841 = vmatpush1.bf16.xpose.msra.mxu0 0
        %1842 = vmatprep.subr.bf16.mxu0 0
        %1843 = vmatpush1.bf16.xpose.msra.mxu0 0
        %1844 = vmatprep.subr.bf16.mxu0 0
        %1845 = vmatpush1.bf16.xpose.msra.mxu0 0
        %1846 = vmatprep.subr.bf16.mxu0 0
        %1847 = vmatpush1.bf16.xpose.msra.mxu0 0
        %1848 = vmatprep.subr.bf16.mxu0 0
        %1849 = vmatpush1.bf16.xpose.msra.mxu0 0
        %1850 = vmatprep.subr.bf16.mxu0 0
        %1851 = vmatpush1.bf16.xpose.msra.mxu0 0
        %1852 = vmatprep.subr.bf16.mxu0 0
        %1853 = vmatpush1.bf16.xpose.msra.mxu0 0
        %1854 = vmatprep.mubr.bf16.mxu0 0
        %1855 = vmatmul.mubr.bf16.gmra.mrb[0].mxu0 %v1817
        %v1856 = vpop.f32.mrb[0].mxu0
        %v1857 = vadd.f32 0.0, %v1856
        %v1858 = vpop.f32.mrb[0].mxu0
        %v1859 = vpop.f32.mrb[0].mxu0
        %v1860 = vadd.f32 0.0, %v1859
        %v1861 = vpop.f32.mrb[0].mxu0
        %1862 = vdwg.mxu0
        %v1863 = vmul.f32 %v1857, 0.17677669
        %v1864 = vmul.f32 %v1860, 0.17677669
        %v1865 = vadd.f32 %v1863, %v1212
        %v1866 = vadd.f32 %v1864, %v1213
        %v1867 = vsel %vm1566, %v1865, -inf
        %1868 = vmax.xlane.f32.xlu0 %v1867
        %v1869 = vpop.xlane.xlu0 %1868
        %v1870 = vsel %vm1566, %v1866, -inf
        %1871 = vmax.xlane.f32.xlu0 %v1870
        %v1872 = vpop.xlane.xlu0 %1871
        %v1873 = vsub.f32 %v1865, %v1869
        %v1874 = vsub.f32 %v1866, %v1872
        %v1875 = vmul.f32 %v1873, 1.442695
        %v1876 = vpow.pop %v1875
        %v1877 = vmul.f32 %v1874, 1.442695
        %v1878 = vpow.pop %v1877
        %v1879 = vsel %vm1566, %v1876, 0.0
        %1880 = vadd.xlane.f32.xlu0 %v1879
        %v1881 = vpop.xlane.xlu0 %1880
        %v1882 = vsel %vm1566, %v1878, 0.0
        %1883 = vadd.xlane.f32.xlu0 %v1882
        %v1884 = vpop.xlane.xlu0 %1883
        %v1885 = vrcp.pop %v1881
        %v1886 = vrcp.pop %v1884
        %v1887 = vmul.f32 %v1876, %v1885
        %v1888 = vmul.f32 %v1878, %v1886
        %v1889 = vpack.c.bf16 %v1888, %v1887
        %v1890 = vpack.c.bf16 %v1811, %v1808
        %v1892 = vsel %vm1566, %v1889, 0
        %1894 = vmatprep.subr.bf16.mxu0 0
        %1895 = vmatpush1.bf16.msra.mxu0 %v1890
        %1896 = vmatprep.subr.bf16.mxu0 0
        %1897 = vmatpush1.bf16.msra.mxu0 0
        %1898 = vmatprep.subr.bf16.mxu0 0
        %1899 = vmatpush1.bf16.msra.mxu0 0
        %1900 = vmatprep.subr.bf16.mxu0 0
        %1901 = vmatpush1.bf16.msra.mxu0 0
        %1902 = vmatprep.subr.bf16.mxu0 0
        %1903 = vmatpush1.bf16.msra.mxu0 0
        %1904 = vmatprep.subr.bf16.mxu0 0
        %1905 = vmatpush1.bf16.msra.mxu0 0
        %1906 = vmatprep.subr.bf16.mxu0 0
        %1907 = vmatpush1.bf16.msra.mxu0 0
        %1908 = vmatprep.subr.bf16.mxu0 0
        %1909 = vmatpush1.bf16.msra.mxu0 0
        %1910 = vmatprep.subr.bf16.mxu0 0
        %1911 = vmatpush1.bf16.msra.mxu0 0
        %1912 = vmatprep.subr.bf16.mxu0 0
        %1913 = vmatpush1.bf16.msra.mxu0 0
        %1914 = vmatprep.subr.bf16.mxu0 0
        %1915 = vmatpush1.bf16.msra.mxu0 0
        %1916 = vmatprep.subr.bf16.mxu0 0
        %1917 = vmatpush1.bf16.msra.mxu0 0
        %1918 = vmatprep.subr.bf16.mxu0 0
        %1919 = vmatpush1.bf16.msra.mxu0 0
        %1920 = vmatprep.subr.bf16.mxu0 0
        %1921 = vmatpush1.bf16.msra.mxu0 0
        %1922 = vmatprep.subr.bf16.mxu0 0
        %1923 = vmatpush1.bf16.msra.mxu0 0
        %1924 = vmatprep.subr.bf16.mxu0 0
        %1925 = vmatpush1.bf16.msra.mxu0 0
        %1926 = vmatprep.mubr.bf16.mxu0 0
        %1927 = vmatmul.mubr.bf16.gmra.mrb[0].mxu0 %v1892
        %v1928 = vpop.f32.mrb[0].mxu0
        %v1929 = vadd.f32 0.0, %v1928
        %v1930 = vpop.f32.mrb[0].mxu0
        %v1931 = vpop.f32.mrb[0].mxu0
        %v1932 = vadd.f32 0.0, %v1931
        %v1933 = vpop.f32.mrb[0].mxu0
        %1934 = vdwg.mxu0
        %v1935 = vpack.c.bf16 %v1932, %v1929
        %s1936 = scalar_lea.vmem %s1018, 16
        %v1937 = vld [vmem:[%s1936] sm:$0xf]
        %v1938 = vld [vmem:[%s1936 + $0x4] sm:$0xf]
        %v1939 = vld [vmem:[%s1936 + $0x8] sm:$0xf]
        %v1940 = vld [vmem:[%s1936 + $0xc] sm:$0xf]
        %v1945 = vunpack.c.l.b16 %v1937
        %v1946 = vunpack.c.l.b16 %v1938
        %v1947 = vunpack.c.l.b16 %v1939
        %v1948 = vunpack.c.l.b16 %v1940
        %v1949 = vpack.c.b16 %v1946, %v1945
        %v1950 = vpack.c.b16 %v1948, %v1947
        %v1954 = vsel %vm1354, %v1935, 0
        %1956 = vmatprep.subr.bf16.mxu0 0
        %1957 = vmatpush1.bf16.msra.mxu0 %v1949
        %1958 = vmatprep.subr.bf16.mxu0 0
        %1959 = vmatpush1.bf16.msra.mxu0 %v1950
        %1960 = vmatprep.subr.bf16.mxu0 0
        %1961 = vmatpush1.bf16.msra.mxu0 0
        %1962 = vmatprep.subr.bf16.mxu0 0
        %1963 = vmatpush1.bf16.msra.mxu0 0
        %1964 = vmatprep.subr.bf16.mxu0 0
        %1965 = vmatpush1.bf16.msra.mxu0 0
        %1966 = vmatprep.subr.bf16.mxu0 0
        %1967 = vmatpush1.bf16.msra.mxu0 0
        %1968 = vmatprep.subr.bf16.mxu0 0
        %1969 = vmatpush1.bf16.msra.mxu0 0
        %1970 = vmatprep.subr.bf16.mxu0 0
        %1971 = vmatpush1.bf16.msra.mxu0 0
        %1972 = vmatprep.subr.bf16.mxu0 0
        %1973 = vmatpush1.bf16.msra.mxu0 0
        %1974 = vmatprep.subr.bf16.mxu0 0
        %1975 = vmatpush1.bf16.msra.mxu0 0
        %1976 = vmatprep.subr.bf16.mxu0 0
        %1977 = vmatpush1.bf16.msra.mxu0 0
        %1978 = vmatprep.subr.bf16.mxu0 0
        %1979 = vmatpush1.bf16.msra.mxu0 0
        %1980 = vmatprep.subr.bf16.mxu0 0
        %1981 = vmatpush1.bf16.msra.mxu0 0
        %1982 = vmatprep.subr.bf16.mxu0 0
        %1983 = vmatpush1.bf16.msra.mxu0 0
        %1984 = vmatprep.subr.bf16.mxu0 0
        %1985 = vmatpush1.bf16.msra.mxu0 0
        %1986 = vmatprep.subr.bf16.mxu0 0
        %1987 = vmatpush1.bf16.msra.mxu0 0
        %1988 = vmatprep.mubr.bf16.mxu0 0
        %1989 = vmatmul.mubr.bf16.gmra.mrb[0].mxu0 %v1954
        %v1990 = vpop.f32.mrb[0].mxu0
        %v1991 = vadd.f32 0.0, %v1990
        %v1992 = vpop.f32.mrb[0].mxu0
        %v1993 = vpop.f32.mrb[0].mxu0
        %v1994 = vadd.f32 0.0, %v1993
        %v1995 = vpop.f32.mrb[0].mxu0
        %1996 = vdwg.mxu0
        %v2001 = vunpack.c.l.b16 %v1636
        %v2002 = vunpack.c.l.b16 %v1637
        %v2003 = vunpack.c.l.b16 %v1638
        %v2004 = vunpack.c.l.b16 %v1639
        %v2005 = vpack.c.b16 %v2002, %v2001
        %v2006 = vpack.c.b16 %v2004, %v2003
        %v2010 = vsel %vm1354, %v1635, 0
        %2012 = vmatprep.subr.bf16.mxu0 0
        %2013 = vmatpush1.bf16.msra.mxu0 %v2005
        %2014 = vmatprep.subr.bf16.mxu0 0
        %2015 = vmatpush1.bf16.msra.mxu0 %v2006
        %2016 = vmatprep.subr.bf16.mxu0 0
        %2017 = vmatpush1.bf16.msra.mxu0 0
        %2018 = vmatprep.subr.bf16.mxu0 0
        %2019 = vmatpush1.bf16.msra.mxu0 0
        %2020 = vmatprep.subr.bf16.mxu0 0
        %2021 = vmatpush1.bf16.msra.mxu0 0
        %2022 = vmatprep.subr.bf16.mxu0 0
        %2023 = vmatpush1.bf16.msra.mxu0 0
        %2024 = vmatprep.subr.bf16.mxu0 0
        %2025 = vmatpush1.bf16.msra.mxu0 0
        %2026 = vmatprep.subr.bf16.mxu0 0
        %2027 = vmatpush1.bf16.msra.mxu0 0
        %2028 = vmatprep.subr.bf16.mxu0 0
        %2029 = vmatpush1.bf16.msra.mxu0 0
        %2030 = vmatprep.subr.bf16.mxu0 0
        %2031 = vmatpush1.bf16.msra.mxu0 0
        %2032 = vmatprep.subr.bf16.mxu0 0
        %2033 = vmatpush1.bf16.msra.mxu0 0
        %2034 = vmatprep.subr.bf16.mxu0 0
        %2035 = vmatpush1.bf16.msra.mxu0 0
        %2036 = vmatprep.subr.bf16.mxu0 0
        %2037 = vmatpush1.bf16.msra.mxu0 0
        %2038 = vmatprep.subr.bf16.mxu0 0
        %2039 = vmatpush1.bf16.msra.mxu0 0
        %2040 = vmatprep.subr.bf16.mxu0 0
        %2041 = vmatpush1.bf16.msra.mxu0 0
        %2042 = vmatprep.subr.bf16.mxu0 0
        %2043 = vmatpush1.bf16.msra.mxu0 0
        %2044 = vmatprep.mubr.bf16.mxu0 0
        %2045 = vmatmul.mubr.bf16.gmra.mrb[0].mxu0 %v2010
        %v2046 = vpop.f32.mrb[0].mxu0
        %v2047 = vadd.f32 %v1991, %v2046
        %v2048 = vpop.f32.mrb[0].mxu0
        %v2049 = vpop.f32.mrb[0].mxu0
        %v2050 = vadd.f32 %v1994, %v2049
        %v2051 = vpop.f32.mrb[0].mxu0
        %2052 = vdwg.mxu0
        %v2053 = vadd.f32 %v1210, %v2047
        %v2054 = vadd.f32 %v1211, %v2050
        %v2055 = vld [vmem:[%s1021] sm:$0x1]
        %v2057 = vlaneseq
        %v2058 = vshrl.u32 %v2057, 7
        %v2059 = vsub.s32 0, %v2058
        %v2060 = vrot.slane %v2055, %v2059
        %v2062 = vadd.f32 %v2053, %v2060
        %v2063 = vadd.f32 %v2054, %v2060
        %v2064 = vld [vmem:[%s1024] sm:$0x1]
        %v2065 = vld [vmem:[%s1027] sm:$0x1]
        %v2066 = vsel %vm1216, %v2062, 0.0
        %2067 = vadd.xlane.f32.xlu0 %v2066
        %v2068 = vpop.xlane.xlu0 %2067
        %v2069 = vsel %vm1216, %v2063, 0.0
        %2070 = vadd.xlane.f32.xlu0 %v2069
        %v2071 = vpop.xlane.xlu0 %2070
        %v2072 = vmul.f32 %v2068, %v1223
        %v2073 = vmul.f32 %v2071, %v1223
        %v2074 = vsub.f32 %v2062, %v2072
        %v2075 = vsub.f32 %v2063, %v2073
        %v2076 = vmul.f32 %v2074, %v2074
        %v2077 = vmul.f32 %v2075, %v2075
        %v2078 = vsel %vm1216, %v2076, 0.0
        %2079 = vadd.xlane.f32.xlu0 %v2078
        %v2080 = vpop.xlane.xlu0 %2079
        %v2081 = vsel %vm1216, %v2077, 0.0
        %2082 = vadd.xlane.f32.xlu0 %v2081
        %v2083 = vpop.xlane.xlu0 %2082
        %v2084 = vmul.f32 %v2080, %v1223
        %v2085 = vmul.f32 %v2083, %v1223
        %v2086 = vadd.f32 %v2084, 1e-05
        %v2087 = vadd.f32 %v2085, 1e-05
        %v2088 = vrsqrt.pop %v2086
        %v2089 = vrsqrt.pop %v2087
        %v2090 = vmul.f32 %v2074, %v2088
        %v2091 = vmul.f32 %v2075, %v2089
        %v2093 = vlaneseq
        %v2094 = vshrl.u32 %v2093, 7
        %v2095 = vsub.s32 0, %v2094
        %v2096 = vrot.slane %v2064, %v2095
        %v2098 = vmul.f32 %v2090, %v2096
        %v2099 = vmul.f32 %v2091, %v2096
        %v2101 = vlaneseq
        %v2102 = vshrl.u32 %v2101, 7
        %v2103 = vsub.s32 0, %v2102
        %v2104 = vrot.slane %v2065, %v2103
        %v2106 = vadd.f32 %v2098, %v2104
        %v2107 = vadd.f32 %v2099, %v2104
        %v2108 = vpack.c.bf16 %v2107, %v2106
        %v2109 = vld [vmem:[%s1032] sm:$0xf]
        %v2110 = vld [vmem:[%s1032 + $0x4] sm:$0xf]
        %v2111 = vld [vmem:[%s1032 + $0x8] sm:$0xf]
        %v2112 = vld [vmem:[%s1032 + $0xc] sm:$0xf]
        %v2113 = vld [vmem:[%s1032 + $0x10] sm:$0xf]
        %v2114 = vld [vmem:[%s1032 + $0x14] sm:$0xf]
        %v2115 = vld [vmem:[%s1032 + $0x18] sm:$0xf]
        %v2116 = vld [vmem:[%s1032 + $0x1c] sm:$0xf]
        %v2125 = vunpack.c.l.b16 %v2109
        %v2126 = vunpack.c.l.b16 %v2110
        %v2127 = vunpack.c.l.b16 %v2111
        %v2128 = vunpack.c.l.b16 %v2112
        %v2129 = vunpack.c.l.b16 %v2113
        %v2130 = vunpack.c.l.b16 %v2114
        %v2131 = vunpack.c.l.b16 %v2115
        %v2132 = vunpack.c.l.b16 %v2116
        %v2133 = vpack.c.b16 %v2126, %v2125
        %v2134 = vpack.c.b16 %v2128, %v2127
        %v2135 = vpack.c.b16 %v2130, %v2129
        %v2136 = vpack.c.b16 %v2132, %v2131
        %v2142 = vsel %vm1216, %v2108, 0
        %2144 = vmatprep.subr.bf16.mxu0 0
        %2145 = vmatpush1.bf16.msra.mxu0 %v2133
        %2146 = vmatprep.subr.bf16.mxu0 0
        %2147 = vmatpush1.bf16.msra.mxu0 %v2134
        %2148 = vmatprep.subr.bf16.mxu0 0
        %2149 = vmatpush1.bf16.msra.mxu0 %v2135
        %2150 = vmatprep.subr.bf16.mxu0 0
        %2151 = vmatpush1.bf16.msra.mxu0 %v2136
        %2152 = vmatprep.subr.bf16.mxu0 0
        %2153 = vmatpush1.bf16.msra.mxu0 0
        %2154 = vmatprep.subr.bf16.mxu0 0
        %2155 = vmatpush1.bf16.msra.mxu0 0
        %2156 = vmatprep.subr.bf16.mxu0 0
        %2157 = vmatpush1.bf16.msra.mxu0 0
        %2158 = vmatprep.subr.bf16.mxu0 0
        %2159 = vmatpush1.bf16.msra.mxu0 0
        %2160 = vmatprep.subr.bf16.mxu0 0
        %2161 = vmatpush1.bf16.msra.mxu0 0
        %2162 = vmatprep.subr.bf16.mxu0 0
        %2163 = vmatpush1.bf16.msra.mxu0 0
        %2164 = vmatprep.subr.bf16.mxu0 0
        %2165 = vmatpush1.bf16.msra.mxu0 0
        %2166 = vmatprep.subr.bf16.mxu0 0
        %2167 = vmatpush1.bf16.msra.mxu0 0
        %2168 = vmatprep.subr.bf16.mxu0 0
        %2169 = vmatpush1.bf16.msra.mxu0 0
        %2170 = vmatprep.subr.bf16.mxu0 0
        %2171 = vmatpush1.bf16.msra.mxu0 0
        %2172 = vmatprep.subr.bf16.mxu0 0
        %2173 = vmatpush1.bf16.msra.mxu0 0
        %2174 = vmatprep.subr.bf16.mxu0 0
        %2175 = vmatpush1.bf16.msra.mxu0 0
        %2176 = vmatprep.mubr.bf16.mxu0 0
        %2177 = vmatmul.mubr.bf16.gmra.mrb[0].mxu0 %v2142
        %v2178 = vpop.f32.mrb[0].mxu0
        %v2179 = vadd.f32 0.0, %v2178
        %v2180 = vpop.f32.mrb[0].mxu0
        %v2181 = vpop.f32.mrb[0].mxu0
        %v2182 = vadd.f32 0.0, %v2181
        %v2183 = vpop.f32.mrb[0].mxu0
        %2184 = vdwg.mxu0
        %v2185 = vpack.c.bf16 %v2182, %v2179
        %v2186 = vld [vmem:[%s1037] sm:$0xf]
        %v2187 = vld [vmem:[%s1037 + $0x4] sm:$0xf]
        %v2188 = vld [vmem:[%s1037 + $0x8] sm:$0xf]
        %v2189 = vld [vmem:[%s1037 + $0xc] sm:$0xf]
        %v2190 = vld [vmem:[%s1040] sm:$0x1]
        %v2192 = vlaneseq
        %v2193 = vshrl.u32 %v2192, 7
        %v2194 = vsub.s32 0, %v2193
        %v2195 = vrot.slane %v2190, %v2194
        %v2201 = vunpack.c.l.b16 %v2186
        %v2202 = vunpack.c.l.b16 %v2187
        %v2203 = vunpack.c.l.b16 %v2188
        %v2204 = vunpack.c.l.b16 %v2189
        %v2205 = vpack.c.b16 %v2202, %v2201
        %v2206 = vpack.c.b16 %v2204, %v2203
        %v2210 = vsel %vm1354, %v2185, 0
        %2212 = vmatprep.subr.bf16.mxu0 0
        %2213 = vmatpush1.bf16.msra.mxu0 %v2205
        %2214 = vmatprep.subr.bf16.mxu0 0
        %2215 = vmatpush1.bf16.msra.mxu0 %v2206
        %2216 = vmatprep.subr.bf16.mxu0 0
        %2217 = vmatpush1.bf16.msra.mxu0 0
        %2218 = vmatprep.subr.bf16.mxu0 0
        %2219 = vmatpush1.bf16.msra.mxu0 0
        %2220 = vmatprep.subr.bf16.mxu0 0
        %2221 = vmatpush1.bf16.msra.mxu0 0
        %2222 = vmatprep.subr.bf16.mxu0 0
        %2223 = vmatpush1.bf16.msra.mxu0 0
        %2224 = vmatprep.subr.bf16.mxu0 0
        %2225 = vmatpush1.bf16.msra.mxu0 0
        %2226 = vmatprep.subr.bf16.mxu0 0
        %2227 = vmatpush1.bf16.msra.mxu0 0
        %2228 = vmatprep.subr.bf16.mxu0 0
        %2229 = vmatpush1.bf16.msra.mxu0 0
        %2230 = vmatprep.subr.bf16.mxu0 0
        %2231 = vmatpush1.bf16.msra.mxu0 0
        %2232 = vmatprep.subr.bf16.mxu0 0
        %2233 = vmatpush1.bf16.msra.mxu0 0
        %2234 = vmatprep.subr.bf16.mxu0 0
        %2235 = vmatpush1.bf16.msra.mxu0 0
        %2236 = vmatprep.subr.bf16.mxu0 0
        %2237 = vmatpush1.bf16.msra.mxu0 0
        %2238 = vmatprep.subr.bf16.mxu0 0
        %2239 = vmatpush1.bf16.msra.mxu0 0
        %2240 = vmatprep.subr.bf16.mxu0 0
        %2241 = vmatpush1.bf16.msra.mxu0 0
        %2242 = vmatprep.subr.bf16.mxu0 0
        %2243 = vmatpush1.bf16.msra.mxu0 0
        %2244 = vmatprep.mubr.bf16.mxu0 0
        %2245 = vmatmul.mubr.bf16.gmra.mrb[0].mxu0 %v2210
        %v2246 = vpop.f32.mrb[0].mxu0
        %v2247 = vadd.f32 %v2195, %v2246
        %v2248 = vpop.f32.mrb[0].mxu0
        %v2249 = vpop.f32.mrb[0].mxu0
        %v2250 = vadd.f32 %v2195, %v2249
        %v2251 = vpop.f32.mrb[0].mxu0
        %2252 = vdwg.mxu0
        %v2253 = vmul.f32 %v2247, 0.5
        %v2254 = vmul.f32 %v2250, 0.5
        %v2255 = vmul.f32 %v2247, 0.044715
        %v2256 = vmul.f32 %v2250, 0.044715
        %v2257 = vmul.f32 %v2255, %v2247
        %v2258 = vmul.f32 %v2256, %v2250
        %v2259 = vmul.f32 %v2257, %v2247
        %v2260 = vmul.f32 %v2258, %v2250
        %v2261 = vadd.f32 %v2247, %v2259
        %v2262 = vadd.f32 %v2250, %v2260
        %v2263 = vmul.f32 %v2261, 0.7978846
        %v2264 = vmul.f32 %v2262, 0.7978846
        %v2265 = vtanh.pop %v2263
        %v2266 = vtanh.pop %v2264
        %v2267 = vadd.f32 %v2265, 1.0
        %v2268 = vadd.f32 %v2266, 1.0
        %v2269 = vmul.f32 %v2253, %v2267
        %v2270 = vmul.f32 %v2254, %v2268
        %v2271 = vpack.c.bf16 %v2270, %v2269
        %v2272 = vld [vmem:[%s1045] sm:$0xf]
        %v2273 = vld [vmem:[%s1045 + $0x4] sm:$0xf]
        %v2274 = vld [vmem:[%s1045 + $0x8] sm:$0xf]
        %v2275 = vld [vmem:[%s1045 + $0xc] sm:$0xf]
        %v2276 = vld [vmem:[%s1045 + $0x10] sm:$0xf]
        %v2277 = vld [vmem:[%s1045 + $0x14] sm:$0xf]
        %v2278 = vld [vmem:[%s1045 + $0x18] sm:$0xf]
        %v2279 = vld [vmem:[%s1045 + $0x1c] sm:$0xf]
        %v2280 = vld [vmem:[%s1045 + $0x20] sm:$0xf]
        %v2281 = vld [vmem:[%s1045 + $0x24] sm:$0xf]
        %v2282 = vld [vmem:[%s1045 + $0x28] sm:$0xf]
        %v2283 = vld [vmem:[%s1045 + $0x2c] sm:$0xf]
        %v2284 = vld [vmem:[%s1045 + $0x30] sm:$0xf]
        %v2285 = vld [vmem:[%s1045 + $0x34] sm:$0xf]
        %v2286 = vld [vmem:[%s1045 + $0x38] sm:$0xf]
        %v2287 = vld [vmem:[%s1045 + $0x3c] sm:$0xf]
        %v2304 = vunpack.c.l.b16 %v2272
        %v2305 = vunpack.c.l.b16 %v2273
        %v2306 = vunpack.c.l.b16 %v2274
        %v2307 = vunpack.c.l.b16 %v2275
        %v2308 = vunpack.c.l.b16 %v2276
        %v2309 = vunpack.c.l.b16 %v2277
        %v2310 = vunpack.c.l.b16 %v2278
        %v2311 = vunpack.c.l.b16 %v2279
        %v2312 = vunpack.c.l.b16 %v2280
        %v2313 = vunpack.c.l.b16 %v2281
        %v2314 = vunpack.c.l.b16 %v2282
        %v2315 = vunpack.c.l.b16 %v2283
        %v2316 = vunpack.c.l.b16 %v2284
        %v2317 = vunpack.c.l.b16 %v2285
        %v2318 = vunpack.c.l.b16 %v2286
        %v2319 = vunpack.c.l.b16 %v2287
        %v2320 = vpack.c.b16 %v2305, %v2304
        %v2321 = vpack.c.b16 %v2307, %v2306
        %v2322 = vpack.c.b16 %v2309, %v2308
        %v2323 = vpack.c.b16 %v2311, %v2310
        %v2324 = vpack.c.b16 %v2313, %v2312
        %v2325 = vpack.c.b16 %v2315, %v2314
        %v2326 = vpack.c.b16 %v2317, %v2316
        %v2327 = vpack.c.b16 %v2319, %v2318
        %2336 = vmatprep.subr.bf16.mxu0 0
        %2337 = vmatpush1.bf16.msra.mxu0 %v2320
        %2338 = vmatprep.subr.bf16.mxu0 0
        %2339 = vmatpush1.bf16.msra.mxu0 %v2321
        %2340 = vmatprep.subr.bf16.mxu0 0
        %2341 = vmatpush1.bf16.msra.mxu0 %v2322
        %2342 = vmatprep.subr.bf16.mxu0 0
        %2343 = vmatpush1.bf16.msra.mxu0 %v2323
        %2344 = vmatprep.subr.bf16.mxu0 0
        %2345 = vmatpush1.bf16.msra.mxu0 %v2324
        %2346 = vmatprep.subr.bf16.mxu0 0
        %2347 = vmatpush1.bf16.msra.mxu0 %v2325
        %2348 = vmatprep.subr.bf16.mxu0 0
        %2349 = vmatpush1.bf16.msra.mxu0 %v2326
        %2350 = vmatprep.subr.bf16.mxu0 0
        %2351 = vmatpush1.bf16.msra.mxu0 %v2327
        %2352 = vmatprep.subr.bf16.mxu0 0
        %2353 = vmatpush1.bf16.msra.mxu0 0
        %2354 = vmatprep.subr.bf16.mxu0 0
        %2355 = vmatpush1.bf16.msra.mxu0 0
        %2356 = vmatprep.subr.bf16.mxu0 0
        %2357 = vmatpush1.bf16.msra.mxu0 0
        %2358 = vmatprep.subr.bf16.mxu0 0
        %2359 = vmatpush1.bf16.msra.mxu0 0
        %2360 = vmatprep.subr.bf16.mxu0 0
        %2361 = vmatpush1.bf16.msra.mxu0 0
        %2362 = vmatprep.subr.bf16.mxu0 0
        %2363 = vmatpush1.bf16.msra.mxu0 0
        %2364 = vmatprep.subr.bf16.mxu0 0
        %2365 = vmatpush1.bf16.msra.mxu0 0
        %2366 = vmatprep.subr.bf16.mxu0 0
        %2367 = vmatpush1.bf16.msra.mxu0 0
        %2368 = vmatprep.mubr.bf16.mxu0 0
        %2369 = vmatmul.mubr.bf16.gmra.mrb[0].mxu0 %v2271
        %v2370 = vpop.f32.mrb[0].mxu0
        %v2371 = vadd.f32 0.0, %v2370
        %v2372 = vpop.f32.mrb[0].mxu0
        %v2373 = vpop.f32.mrb[0].mxu0
        %v2374 = vadd.f32 0.0, %v2373
        %v2375 = vpop.f32.mrb[0].mxu0
        %2376 = vdwg.mxu0
        %v2377 = vpack.c.bf16 %v2374, %v2371
        %v2378 = vld [vmem:[%s1050] sm:$0xf]
        %v2379 = vld [vmem:[%s1050 + $0x4] sm:$0xf]
        %v2380 = vld [vmem:[%s1050 + $0x8] sm:$0xf]
        %v2381 = vld [vmem:[%s1050 + $0xc] sm:$0xf]
        %v2382 = vld [vmem:[%s1053] sm:$0x1]
        %v2384 = vlaneseq
        %v2385 = vshrl.u32 %v2384, 7
        %v2386 = vsub.s32 0, %v2385
        %v2387 = vrot.slane %v2382, %v2386
        %v2393 = vunpack.c.l.b16 %v2378
        %v2394 = vunpack.c.l.b16 %v2379
        %v2395 = vunpack.c.l.b16 %v2380
        %v2396 = vunpack.c.l.b16 %v2381
        %v2397 = vpack.c.b16 %v2394, %v2393
        %v2398 = vpack.c.b16 %v2396, %v2395
        %v2402 = vsel %vm1354, %v2377, 0
        %2404 = vmatprep.subr.bf16.mxu0 0
        %2405 = vmatpush1.bf16.msra.mxu0 %v2397
        %2406 = vmatprep.subr.bf16.mxu0 0
        %2407 = vmatpush1.bf16.msra.mxu0 %v2398
        %2408 = vmatprep.subr.bf16.mxu0 0
        %2409 = vmatpush1.bf16.msra.mxu0 0
        %2410 = vmatprep.subr.bf16.mxu0 0
        %2411 = vmatpush1.bf16.msra.mxu0 0
        %2412 = vmatprep.subr.bf16.mxu0 0
        %2413 = vmatpush1.bf16.msra.mxu0 0
        %2414 = vmatprep.subr.bf16.mxu0 0
        %2415 = vmatpush1.bf16.msra.mxu0 0
        %2416 = vmatprep.subr.bf16.mxu0 0
        %2417 = vmatpush1.bf16.msra.mxu0 0
        %2418 = vmatprep.subr.bf16.mxu0 0
        %2419 = vmatpush1.bf16.msra.mxu0 0
        %2420 = vmatprep.subr.bf16.mxu0 0
        %2421 = vmatpush1.bf16.msra.mxu0 0
        %2422 = vmatprep.subr.bf16.mxu0 0
        %2423 = vmatpush1.bf16.msra.mxu0 0
        %2424 = vmatprep.subr.bf16.mxu0 0
        %2425 = vmatpush1.bf16.msra.mxu0 0
        %2426 = vmatprep.subr.bf16.mxu0 0
        %2427 = vmatpush1.bf16.msra.mxu0 0
        %2428 = vmatprep.subr.bf16.mxu0 0
        %2429 = vmatpush1.bf16.msra.mxu0 0
        %2430 = vmatprep.subr.bf16.mxu0 0
        %2431 = vmatpush1.bf16.msra.mxu0 0
        %2432 = vmatprep.subr.bf16.mxu0 0
        %2433 = vmatpush1.bf16.msra.mxu0 0
        %2434 = vmatprep.subr.bf16.mxu0 0
        %2435 = vmatpush1.bf16.msra.mxu0 0
        %2436 = vmatprep.mubr.bf16.mxu0 0
        %2437 = vmatmul.mubr.bf16.gmra.mrb[0].mxu0 %v2402
        %v2438 = vpop.f32.mrb[0].mxu0
        %v2439 = vadd.f32 %v2387, %v2438
        %v2440 = vpop.f32.mrb[0].mxu0
        %v2441 = vpop.f32.mrb[0].mxu0
        %v2442 = vadd.f32 %v2387, %v2441
        %v2443 = vpop.f32.mrb[0].mxu0
        %2444 = vdwg.mxu0
        %v2445 = vadd.f32 %v2062, %v2439
        %v2446 = vadd.f32 %v2063, %v2442
        %2447 = vst.msk [vmem:[#allocation2] sm:$0xff] %vm1216, %v2445
        %2448 = vst.msk [vmem:[#allocation2 + $0x8] sm:$0xff] %vm1216, %v2446
        %p2449 = scmp.eq.s32.totalorder %s43, 1
        // Predicated region
        $region129: #{tpu_custom_call.1} parent=115 // pred_check
          %p2450 = pneg %p2449
        $region130: #{tpu_custom_call.1} parent=115 // pred_check_branch
          %2452 = sbr.rel (%p2450) target = $region132
        $region131: #{tpu_custom_call.1} parent=115 // pred_region
          %v2453 = vld [vmem:[%s20] sm:$0x1]
          %v2454 = vld [vmem:[%s21] sm:$0x1]
          %v2457 = vrot.slane %v2446, 7
          %vm2458 = vcmask 1041409
          %v2459 = vsel %vm2458, %v2457, %v2445
          %vm2461 = vcmask 517120
          %v2462 = vsel %vm2461, %v2459, 0.0
          %2463 = vadd.xlane.f32.xlu0 %v2462
          %v2464 = vpop.xlane.xlu0 %2463
          %v2465 = vmul.f32 %v2464, %v1223
          %v2467 = vrot.slane %v2465, 1
          %v2470 = vsub.f32 %v2445, %v2465
          %v2471 = vsub.f32 %v2446, %v2467
          %v2472 = vmul.f32 %v2470, %v2470
          %v2473 = vmul.f32 %v2471, %v2471
          %v2476 = vrot.slane %v2473, 7
          %v2477 = vsel %vm2458, %v2476, %v2472
          %v2479 = vsel %vm2461, %v2477, 0.0
          %2480 = vadd.xlane.f32.xlu0 %v2479
          %v2481 = vpop.xlane.xlu0 %2480
          %v2482 = vmul.f32 %v2481, %v1223
          %v2483 = vadd.f32 %v2482, 1e-05
          %v2484 = vrsqrt.pop %v2483
          %v2486 = vrot.slane %v2484, 1
          %v2489 = vmul.f32 %v2470, %v2484
          %v2490 = vmul.f32 %v2471, %v2486
          %v2492 = vlaneseq
          %v2493 = vshrl.u32 %v2492, 7
          %v2494 = vsub.s32 0, %v2493
          %v2495 = vrot.slane %v2453, %v2494
          %v2497 = vmul.f32 %v2489, %v2495
          %v2498 = vmul.f32 %v2490, %v2495
          %v2500 = vlaneseq
          %v2501 = vshrl.u32 %v2500, 7
          %v2502 = vsub.s32 0, %v2501
          %v2503 = vrot.slane %v2454, %v2502
          %v2505 = vadd.f32 %v2497, %v2503
          %v2506 = vadd.f32 %v2498, %v2503
          %v2507 = vpack.c.bf16 %v2505, %v2505
          %v2508 = vpack.c.bf16 %v2506, %v2506
          %v2509 = vld [vmem:[%s22] sm:$0xf]
          %v2510 = vld [vmem:[%s22 + $0x4] sm:$0xf]
          %v2511 = vld [vmem:[%s22 + $0x8] sm:$0xf]
          %v2512 = vld [vmem:[%s22 + $0xc] sm:$0xf]
          %v2513 = vld [vmem:[%s22 + $0x10] sm:$0xf]
          %v2514 = vld [vmem:[%s22 + $0x14] sm:$0xf]
          %v2515 = vld [vmem:[%s22 + $0x18] sm:$0xf]
          %v2516 = vld [vmem:[%s22 + $0x1c] sm:$0xf]
          %v2517 = vld [vmem:[%s23] sm:$0x1]
          %v2519 = vlaneseq
          %v2520 = vshrl.u32 %v2519, 7
          %v2521 = vsub.s32 0, %v2520
          %v2522 = vrot.slane %v2517, %v2521
          %v2526 = vunpack.c.l.b16 %v2507
          %v2527 = vunpack.c.l.b16 %v2508
          %v2528 = vrot.slane %v2527, 7
          %v2529 = vsel %vm2458, %v2528, %v2526
          %v2530 = vpack.c.b16 %v2529, %v2529
          %v2539 = vunpack.c.l.b16 %v2509
          %v2540 = vunpack.c.l.b16 %v2510
          %v2541 = vunpack.c.l.b16 %v2511
          %v2542 = vunpack.c.l.b16 %v2512
          %v2543 = vunpack.c.l.b16 %v2513
          %v2544 = vunpack.c.l.b16 %v2514
          %v2545 = vunpack.c.l.b16 %v2515
          %v2546 = vunpack.c.l.b16 %v2516
          %v2547 = vpack.c.b16 %v2540, %v2539
          %v2548 = vpack.c.b16 %v2542, %v2541
          %v2549 = vpack.c.b16 %v2544, %v2543
          %v2550 = vpack.c.b16 %v2546, %v2545
          %v2556 = vsel %vm1216, %v2530, 0
          %2558 = vmatprep.subr.bf16.mxu0 0
          %2559 = vmatpush1.bf16.msra.mxu0 %v2547
          %2560 = vmatprep.subr.bf16.mxu0 0
          %2561 = vmatpush1.bf16.msra.mxu0 %v2548
          %2562 = vmatprep.subr.bf16.mxu0 0
          %2563 = vmatpush1.bf16.msra.mxu0 %v2549
          %2564 = vmatprep.subr.bf16.mxu0 0
          %2565 = vmatpush1.bf16.msra.mxu0 %v2550
          %2566 = vmatprep.subr.bf16.mxu0 0
          %2567 = vmatpush1.bf16.msra.mxu0 0
          %2568 = vmatprep.subr.bf16.mxu0 0
          %2569 = vmatpush1.bf16.msra.mxu0 0
          %2570 = vmatprep.subr.bf16.mxu0 0
          %2571 = vmatpush1.bf16.msra.mxu0 0
          %2572 = vmatprep.subr.bf16.mxu0 0
          %2573 = vmatpush1.bf16.msra.mxu0 0
          %2574 = vmatprep.subr.bf16.mxu0 0
          %2575 = vmatpush1.bf16.msra.mxu0 0
          %2576 = vmatprep.subr.bf16.mxu0 0
          %2577 = vmatpush1.bf16.msra.mxu0 0
          %2578 = vmatprep.subr.bf16.mxu0 0
          %2579 = vmatpush1.bf16.msra.mxu0 0
          %2580 = vmatprep.subr.bf16.mxu0 0
          %2581 = vmatpush1.bf16.msra.mxu0 0
          %2582 = vmatprep.subr.bf16.mxu0 0
          %2583 = vmatpush1.bf16.msra.mxu0 0
          %2584 = vmatprep.subr.bf16.mxu0 0
          %2585 = vmatpush1.bf16.msra.mxu0 0
          %2586 = vmatprep.subr.bf16.mxu0 0
          %2587 = vmatpush1.bf16.msra.mxu0 0
          %2588 = vmatprep.subr.bf16.mxu0 0
          %2589 = vmatpush1.bf16.msra.mxu0 0
          %2590 = vmatprep.mubr.bf16.mxu0 0
          %2591 = vmatmul.mubr.bf16.gmra.mrb[0].mxu0 %v2556
          %v2592 = vpop.f32.mrb[0].mxu0
          %v2593 = vadd.f32 %v2522, %v2592
          %v2594 = vpop.f32.mrb[0].mxu0
          %v2595 = vpop.f32.mrb[0].mxu0
          %v2596 = vpop.f32.mrb[0].mxu0
          %2597 = vdwg.mxu0
          %2598 = vst [vmem:[#allocation8] sm:$0x3] %v2593
        $region132: #{tpu_custom_call.1} parent=115 // pred_fallthru
          _
        // Predicated region
        $region133: #{tpu_custom_call.1} parent=115 // pred_check
          %p2599 = pneg %p657
        $region134: #{tpu_custom_call.1} parent=115 // pred_check_branch
          %2601 = sbr.rel (%p2599) target = $region136
        $region135: #{tpu_custom_call.1} parent=115 // pred_region
          %s2603 = ssub.s32 32, 32
          %2604 = vsyncadd [#allocation5], %s2603
          %s2605 = smul.addr %s42, 32
          %s2606 = scalar_lea.hbm %s24, %s2605
          %s2608 = sshll.u32 [#allocation8], 4
          %s2609 = int_to_ptr.vmem [resolvable:$true] %s2608
          %2611 = dma.vmem_to_hbm [thread:$0]  %s2609, 32, %s2606, [#allocation5]
        $region136: #{tpu_custom_call.1} parent=115 // pred_fallthru
          _
        // Predicated region
        $region137: #{tpu_custom_call.1} parent=115 // pred_check
          %p2612 = pneg %p657
        $region138: #{tpu_custom_call.1} parent=115 // pred_check_branch
          %2614 = sbr.rel (%p2612) target = $region140
        $region139: #{tpu_custom_call.1} parent=115 // pred_region
          %2615 = dma.done [#allocation5], 32
        $region140: #{tpu_custom_call.1} parent=115 // pred_fallthru
          _
      $region116: #{tpu_custom_call.1} parent=5 // pred_fallthru
        _
      %p2616 = scmp.le.s32.totalorder 2, %s33
      // Predicated region
      $region141: #{tpu_custom_call.1} parent=5 // pred_check
        %p2617 = pneg %p2616
      $region142: #{tpu_custom_call.1} parent=5 // pred_check_branch
        %2619 = sbr.rel (%p2617) target = $region144
      $region143: #{tpu_custom_call.1} parent=5 // pred_region
        %s2620 = ssub.s32 %s33, 2
      $region144: #{tpu_custom_call.1} parent=5 // pred_fallthru
        _
    $region6: #{tpu_custom_call.1} parent=1 // loop_footer
      %s37 = sadd.s32 1, %s33
    $region7: #{tpu_custom_call.1} parent=1 // loop_footer_branch
      %32 = sbr.rel target = $region3
    $region8: #{tpu_custom_call.1} parent=1 // loop_exit
      _
    %2621 = vsyncpa [#allocation4], 1
    %s2622 = scalar_lea.sflag [#allocation4], 1
    %2623 = vsyncpa %s2622, 1
    %2624 = vsyncpa [#allocation7], 1
    %2625 = vsyncpa [#allocation5], 1
    %s2626 = scalar_lea.sflag [#allocation5], 1
    %2627 = vsyncpa %s2626, 1

</llo_original>
